<compile_context>
chip_gen: v7x
topology: tpu7x:2x2x1
jax: 0.10.0
libtpu: 0.0.40
codegen_flags: <defaults>
</compile_context>

<pallas_src>
import functools
import math

import jax
import jax.numpy as jnp
from jax import lax
from jax.experimental import pallas as pl
from jax.experimental.pallas import tpu as pltpu

# float32 eps, matches torch.finfo(torch.float32).eps used by F.rms_norm(eps=None)
RMS_EPS = 1.1920928955078125e-07
# Large finite negative instead of -inf: avoids exp(-inf - -inf) NaNs for
# fully-masked tiles while behaving identically for causal masks.
NEG_INF = -1e30


def _vmem_limit_bytes():
    # Stay within ~3/4 of physical VMEM (64 MiB on v7x, 128 MiB on v5e/v6e),
    # capped at 48 MiB; fall back to the compiler default if the query fails.
    try:
        cap = pltpu.get_tpu_info().vmem_capacity_bytes
        return int(min(48 * 1024 * 1024, (cap * 3) // 4))
    except Exception:  # pragma: no cover - defensive
        return None


# --------------------------------------------------------------------------
# Kernel 1: fused QKV projection + per-head RMS-norm + rotary embedding
# --------------------------------------------------------------------------
def _qkv_rope_kernel(x_ref, wq_ref, bq_ref, wkv_ref, bkv_ref,
                     cosq_ref, sinq_ref, cosk_ref, sink_ref,
                     q_out_ref, k_out_ref, v_out_ref,
                     *, n_head, n_kv, head_dim):
    hd = head_dim
    half = hd // 2
    kv_dim = n_kv * hd

    x = x_ref[0].astype(jnp.bfloat16)                         # (tt, C) bf16 MXU operand

    q = jnp.dot(x, wq_ref[...], preferred_element_type=jnp.float32) + bq_ref[...]
    kv = jnp.dot(x, wkv_ref[...], preferred_element_type=jnp.float32) + bkv_ref[...]

    def rms_norm(t):                                          # f32 elementwise
        ms = jnp.mean(t * t, axis=-1, keepdims=True)
        return t * lax.rsqrt(ms + RMS_EPS)

    def rope(t, cos_row, sin_row):
        # NOTE: the rotary table is indexed by the *head* axis, faithfully
        # mirroring the PyTorch reference (cos[None, :x.size(-3), None, :]
        # where x has already been transposed to (B, heads, T, hd)).
        x1 = t[:, :half]
        x2 = t[:, half:]
        return jnp.concatenate(
            [x1 * cos_row + x2 * sin_row, -x1 * sin_row + x2 * cos_row], axis=-1)

    # Per-head loop: live set per iteration is a single (tt, hd) tile, written
    # straight into the head-major output refs (no big concatenates).
    for h in range(n_head):
        qh = rope(rms_norm(q[:, h * hd:(h + 1) * hd]),
                  cosq_ref[pl.ds(h, 1), :], sinq_ref[pl.ds(h, 1), :])
        q_out_ref[0, h] = qh.astype(q_out_ref.dtype)

    for g in range(n_kv):
        kg = rope(rms_norm(kv[:, g * hd:(g + 1) * hd]),
                  cosk_ref[pl.ds(g, 1), :], sink_ref[pl.ds(g, 1), :])
        k_out_ref[0, g] = kg.astype(k_out_ref.dtype)
        v_out_ref[0, g] = kv[:, kv_dim + g * hd: kv_dim + (g + 1) * hd].astype(
            v_out_ref.dtype)


# --------------------------------------------------------------------------
# Kernel 2: flash attention with online softmax (GQA: `group` q-heads / kv head)
# --------------------------------------------------------------------------
def _flash_attn_kernel(q_ref, k_ref, v_ref, mask_ref, o_ref,
                       m_scr, l_scr, acc_scr):
    ki = pl.program_id(3)

    @pl.when(ki == 0)
    def _():
        m_scr[...] = jnp.full_like(m_scr, NEG_INF)
        l_scr[...] = jnp.zeros_like(l_scr)
        acc_scr[...] = jnp.zeros_like(acc_scr)

    q = q_ref[0]                                   # (group, tq, hd) bf16
    k = k_ref[0, 0]                                # (tk, hd)        bf16
    v = v_ref[0, 0]                                # (tk, hd)        bf16
    grp, tq, hd = q.shape
    tk = k.shape[0]
    scale = 1.0 / math.sqrt(hd)

    # (group*tq, hd) x (tk, hd) contracted on the last dim of BOTH operands:
    # no explicit K transpose (the MXU consumes K in its native layout).
    s = lax.dot_general(q.reshape(grp * tq, hd), k,
                        dimension_numbers=(((1,), (1,)), ((), ())),
                        preferred_element_type=jnp.float32)
    s = s.reshape(grp, tq, tk) * scale

    # Bool-mask semantics of F.scaled_dot_product_attention: mask > 0 => attend.
    s = s + jnp.where(mask_ref[...] > 0.0, 0.0, NEG_INF)[None, :, :]

    m_prev = m_scr[...]                                        # (group, tq, 1)
    m_new = jnp.maximum(m_prev, jnp.max(s, axis=-1, keepdims=True))
    alpha = jnp.exp(m_prev - m_new)
    p = jnp.exp(s - m_new)                                     # unnormalized, f32

    l_scr[...] = alpha * l_scr[...] + jnp.sum(p, axis=-1, keepdims=True)
    pv = jnp.dot(p.reshape(grp * tq, tk).astype(jnp.bfloat16), v,
                 preferred_element_type=jnp.float32)
    acc_scr[...] = alpha * acc_scr[...] + pv.reshape(grp, tq, hd)
    m_scr[...] = m_new

    @pl.when(ki == pl.num_programs(3) - 1)
    def _():
        # Deferred softmax normalization: one reciprocal per row on the EUP.
        o_ref[0] = (acc_scr[...] * pl.reciprocal(l_scr[...], approx=True)
                    ).astype(o_ref.dtype)


# --------------------------------------------------------------------------
# Kernel 3: output projection (head-wise accumulation == concat(heads) @ Wo)
# --------------------------------------------------------------------------
def _out_proj_kernel(y_ref, wo_ref, bo_ref, o_ref, *, n_head, head_dim):
    hd = head_dim
    tt = y_ref.shape[2]
    C = wo_ref.shape[1]
    acc = jnp.zeros((tt, C), jnp.float32)
    for h in range(n_head):
        acc = acc + jnp.dot(y_ref[0, h], wo_ref[pl.ds(h * hd, hd), :],
                            preferred_element_type=jnp.float32)
    o_ref[0] = (acc + bo_ref[...]).astype(o_ref.dtype)


# --------------------------------------------------------------------------
# Wrapper
# --------------------------------------------------------------------------
def attention_forward(x, mask_f, params, *, n_head, n_kv, head_dim,
                      q_tile=128, kv_tile=128, proj_tile=128):
    B, T, C = x.shape
    assert C == n_head * head_dim and n_head % n_kv == 0
    wq, bq, wkv, bkv, wo, bo, cosq, sinq, cosk, sink = params
    hd = head_dim
    group = n_head // n_kv
    kv_dim = n_kv * hd

    tq = min(q_tile, T)
    tk = min(kv_tile, T)
    tt = min(proj_tile, T)
    assert T % tq == 0 and T % tk == 0 and T % tt == 0

    # bf16 operands for every MXU matmul (f32 accumulation); biases stay f32.
    wq_b = wq.astype(jnp.bfloat16)
    wkv_b = wkv.astype(jnp.bfloat16)
    wo_b = wo.astype(jnp.bfloat16)

    vmem_limit = _vmem_limit_bytes()
    full = lambda a: pl.BlockSpec(a.shape, lambda *_: (0,) * a.ndim)

    # ---- 1) fused QKV projection + per-head RMS-norm + rotary ----
    qkv_kernel = functools.partial(_qkv_rope_kernel, n_head=n_head, n_kv=n_kv,
                                   head_dim=hd)
    q_h, k_h, v_h = pl.pallas_call(
        qkv_kernel,
        out_shape=(jax.ShapeDtypeStruct((B, n_head, T, hd), jnp.bfloat16),
                   jax.ShapeDtypeStruct((B, n_kv, T, hd), jnp.bfloat16),
                   jax.ShapeDtypeStruct((B, n_kv, T, hd), jnp.bfloat16)),
        grid_spec=pltpu.PrefetchScalarGridSpec(
            num_scalar_prefetch=0,
            grid=(B, T // tt),
            in_specs=[
                pl.BlockSpec((1, tt, C), lambda b, i: (b, i, 0)),
                full(wq_b), full(bq), full(wkv_b), full(bkv),
                full(cosq), full(sinq), full(cosk), full(sink),
            ],
            out_specs=(
                pl.BlockSpec((1, n_head, tt, hd), lambda b, i: (b, 0, i, 0)),
                pl.BlockSpec((1, n_kv, tt, hd), lambda b, i: (b, 0, i, 0)),
                pl.BlockSpec((1, n_kv, tt, hd), lambda b, i: (b, 0, i, 0)),
            ),
        ),
        compiler_params=pltpu.CompilerParams(
            dimension_semantics=("parallel", "parallel"),
            vmem_limit_bytes=vmem_limit),
        cost_estimate=pl.CostEstimate(
            flops=2 * B * T * C * (C + 2 * kv_dim),
            transcendentals=0,
            bytes_accessed=4 * B * T * C + 2 * C * (C + 2 * kv_dim)
                           + 2 * B * T * (C + 2 * kv_dim)),
    )(x, wq_b, bq, wkv_b, bkv, cosq, sinq, cosk, sink)

    # ---- 2) flash attention: grid (B, kv_head, q_tiles, kv_tiles) ----
    y_h = pl.pallas_call(
        _flash_attn_kernel,
        out_shape=jax.ShapeDtypeStruct((B, n_head, T, hd), jnp.bfloat16),
        grid_spec=pltpu.PrefetchScalarGridSpec(
            num_scalar_prefetch=0,
            grid=(B, n_kv, T // tq, T // tk),
            in_specs=[
                pl.BlockSpec((1, group, tq, hd),
                             lambda b, g, qi, ki: (b, g, qi, 0)),
                pl.BlockSpec((1, 1, tk, hd),
                             lambda b, g, qi, ki: (b, g, ki, 0)),
                pl.BlockSpec((1, 1, tk, hd),
                             lambda b, g, qi, ki: (b, g, ki, 0)),
                pl.BlockSpec((tq, tk), lambda b, g, qi, ki: (qi, ki)),
            ],
            out_specs=pl.BlockSpec((1, group, tq, hd),
                                   lambda b, g, qi, ki: (b, g, qi, 0)),
            scratch_shapes=[
                pltpu.VMEM((group, tq, 1), jnp.float32),    # running max m
                pltpu.VMEM((group, tq, 1), jnp.float32),    # running sum l
                pltpu.VMEM((group, tq, hd), jnp.float32),   # unnormalized acc
            ],
        ),
        compiler_params=pltpu.CompilerParams(
            dimension_semantics=("parallel", "parallel", "parallel", "arbitrary"),
            vmem_limit_bytes=vmem_limit),
        cost_estimate=pl.CostEstimate(
            flops=4 * B * n_head * T * T * hd,
            transcendentals=B * n_head * T * T,
            bytes_accessed=2 * B * n_head * T * hd
                           + 2 * B * 2 * n_kv * T * hd * (T // tq)
                           + 4 * B * n_kv * (T // tq) * T * T
                           + 2 * B * n_head * T * hd),
    )(q_h, k_h, v_h, mask_f)

    # ---- 3) output projection ----
    proj_kernel = functools.partial(_out_proj_kernel, n_head=n_head, head_dim=hd)
    return pl.pallas_call(
        proj_kernel,
        out_shape=jax.ShapeDtypeStruct((B, T, C), x.dtype),
        grid_spec=pltpu.PrefetchScalarGridSpec(
            num_scalar_prefetch=0,
            grid=(B, T // tt),
            in_specs=[
                pl.BlockSpec((1, n_head, tt, hd), lambda b, i: (b, 0, i, 0)),
                full(wo_b), full(bo),
            ],
            out_specs=pl.BlockSpec((1, tt, C), lambda b, i: (b, i, 0)),
        ),
        compiler_params=pltpu.CompilerParams(
            dimension_semantics=("parallel", "parallel"),
            vmem_limit_bytes=vmem_limit),
        cost_estimate=pl.CostEstimate(
            flops=2 * B * T * C * C,
            transcendentals=0,
            bytes_accessed=2 * B * T * C + 2 * C * C + 4 * B * T * C),
    )(y_h, wo_b, bo)


# --------------------------------------------------------------------------
# Rotary tables + pure-JAX reference
# --------------------------------------------------------------------------
def make_rotary_tables(head_dim, n_rows):
    # Matches Rotary.__init__: (1/1024)**linspace(0,1,dim//4) concat zeros(dim//4).
    quarter = head_dim // 4
    ang = (1.0 / 1024.0) ** jnp.linspace(0.0, 1.0, quarter, dtype=jnp.float32)
    ang = jnp.concatenate([ang, jnp.zeros((quarter,), jnp.float32)])
    t = jnp.arange(n_rows, dtype=jnp.float32)
    theta = t[:, None] * ang[None, :]                     # (n_rows, head_dim//2)
    return jnp.cos(theta), jnp.sin(theta)


def reference_forward(x, mask_f, params, *, n_head, n_kv, head_dim,
                      mxu_bf16=True):
    # Pure-JAX mirror of the PyTorch forward. With mxu_bf16=True the matmul
    # operands are cast to bf16 (same precision policy as the kernel).
    wq, bq, wkv, bkv, wo, bo, cosq, sinq, cosk, sink = params
    hd, half = head_dim, head_dim // 2
    group = n_head // n_kv
    cast = (lambda t: t.astype(jnp.bfloat16)) if mxu_bf16 else (lambda t: t)

    q = jnp.dot(cast(x), cast(wq), preferred_element_type=jnp.float32) + bq
    kv = jnp.dot(cast(x), cast(wkv), preferred_element_type=jnp.float32) + bkv
    k_all, v_all = kv[..., :n_kv * hd], kv[..., n_kv * hd:]

    def rms(t):
        return t * lax.rsqrt(jnp.mean(t * t, -1, keepdims=True) + RMS_EPS)

    def rope(t, c, s_):
        x1, x2 = t[..., :half], t[..., half:]
        return jnp.concatenate([x1 * c + x2 * s_, -x1 * s_ + x2 * c], -1)

    keep = mask_f > 0.0
    scale = 1.0 / math.sqrt(hd)
    outs = []
    for h in range(n_head):
        qh = rope(rms(q[..., h * hd:(h + 1) * hd]), cosq[h], sinq[h])
        g = h // group
        kg = rope(rms(k_all[..., g * hd:(g + 1) * hd]), cosk[g], sink[g])
        vg = v_all[..., g * hd:(g + 1) * hd]
        s = jnp.einsum("btd,bsd->bts", cast(qh), cast(kg),
                       preferred_element_type=jnp.float32) * scale
        s = jnp.where(keep[None], s, NEG_INF)
        p = jax.nn.softmax(s, axis=-1)
        outs.append(jnp.einsum("bts,bsd->btd", cast(p), cast(vg),
                               preferred_element_type=jnp.float32))
    y = jnp.concatenate(outs, -1)
    return jnp.dot(cast(y), cast(wo), preferred_element_type=jnp.float32) + bo


if __name__ == "__main__":
    # Small config consistent with the module (embed_dim = n_head * head_dim,
    # head_dim = 64 as in the default Config): exercises 2x2 flash tiles.
    B, T = 2, 256
    n_head, n_kv, head_dim = 4, 2, 64
    C = n_head * head_dim            # 256
    kv_out = 2 * n_kv * head_dim     # 256

    key = jax.random.PRNGKey(0)
    ks = jax.random.split(key, 8)
    x = jax.random.normal(ks[0], (B, T, C), jnp.float32)

    # Deterministic synthetic parameters (stored (in_features, out_features)).
    wq = 0.05 * jax.random.normal(ks[1], (C, C), jnp.float32)
    bq = 0.01 * jax.random.normal(ks[2], (1, C), jnp.float32)
    wkv = 0.05 * jax.random.normal(ks[3], (C, kv_out), jnp.float32)
    bkv = 0.01 * jax.random.normal(ks[4], (1, kv_out), jnp.float32)
    wo = 0.05 * jax.random.normal(ks[5], (C, C), jnp.float32)
    bo = 0.01 * jax.random.normal(ks[6], (1, C), jnp.float32)

    # Rotary tables; faithful to the reference the table is sliced by the head
    # axis (x.size(-3) after the transpose), so only max(n_head, n_kv) rows.
    cos_tab, sin_tab = make_rotary_tables(head_dim, max(n_head, n_kv))
    cosq, sinq = cos_tab[:n_head], sin_tab[:n_head]
    cosk, sink = cos_tab[:n_kv], sin_tab[:n_kv]

    # Boolean causal mask encoded as float32 (>0 = attend), streamed as tiles.
    mask_f = jnp.tril(jnp.ones((T, T), jnp.float32))

    params = (wq, bq, wkv, bkv, wo, bo, cosq, sinq, cosk, sink)

    out = attention_forward(x, mask_f, params,
                            n_head=n_head, n_kv=n_kv, head_dim=head_dim)
    out = jax.block_until_ready(out)
    assert out.shape == (B, T, C)
    assert not bool(jnp.any(jnp.isnan(out)))

    # Check vs a reference using the same bf16-at-the-MXU precision policy.
    ref_bf16 = reference_forward(x, mask_f, params, n_head=n_head, n_kv=n_kv,
                                 head_dim=head_dim, mxu_bf16=True)
    assert jnp.allclose(out, ref_bf16, atol=2e-2, rtol=2e-2), \
        "mismatch vs bf16-matched JAX reference"

    # Looser check vs the full-f32 module semantics.
    ref_f32 = reference_forward(x, mask_f, params, n_head=n_head, n_kv=n_kv,
                                head_dim=head_dim, mxu_bf16=False)
    assert jnp.allclose(out, ref_f32, atol=5e-2, rtol=5e-2), \
        "mismatch vs f32 JAX reference"

    print("KERNEL_OK")
</pallas_src>

<mosaic_0001>
module attributes {stable_mosaic.version = 11 : i64} {
  func.func @_qkv_rope_kernel(%arg0: i32, %arg1: i32, %arg2: memref<1x128x256xf32, #tpu.memory_space<vmem>>, %arg3: memref<256x256xbf16, #tpu.memory_space<vmem>>, %arg4: memref<1x256xf32, #tpu.memory_space<vmem>>, %arg5: memref<256x256xbf16, #tpu.memory_space<vmem>>, %arg6: memref<1x256xf32, #tpu.memory_space<vmem>>, %arg7: memref<4x32xf32, #tpu.memory_space<vmem>>, %arg8: memref<4x32xf32, #tpu.memory_space<vmem>>, %arg9: memref<2x32xf32, #tpu.memory_space<vmem>>, %arg10: memref<2x32xf32, #tpu.memory_space<vmem>>, %arg11: memref<1x4x128x64xbf16, #tpu.memory_space<vmem>>, %arg12: memref<1x2x128x64xbf16, #tpu.memory_space<vmem>>, %arg13: memref<1x2x128x64xbf16, #tpu.memory_space<vmem>>) attributes {dimension_semantics = [#tpu.dimension_semantics<parallel>, #tpu.dimension_semantics<parallel>], iteration_bounds = array<i64: 2, 2>, scalar_prefetch = 0 : i64, scratch_operands = 0 : i64, tpu.core_type = #tpu.core_type<tc>, window_params = [{transform_indices = @transform_0, window_bounds = array<i64: 1, 128, 256>}, {pipeline_mode = #tpu.pipeline_mode<synchronous>, transform_indices = @transform_1, window_bounds = array<i64: 256, 256>}, {pipeline_mode = #tpu.pipeline_mode<synchronous>, transform_indices = @transform_2, window_bounds = array<i64: 1, 256>}, {pipeline_mode = #tpu.pipeline_mode<synchronous>, transform_indices = @transform_3, window_bounds = array<i64: 256, 256>}, {pipeline_mode = #tpu.pipeline_mode<synchronous>, transform_indices = @transform_4, window_bounds = array<i64: 1, 256>}, {pipeline_mode = #tpu.pipeline_mode<synchronous>, transform_indices = @transform_5, window_bounds = array<i64: 4, 32>}, {pipeline_mode = #tpu.pipeline_mode<synchronous>, transform_indices = @transform_6, window_bounds = array<i64: 4, 32>}, {pipeline_mode = #tpu.pipeline_mode<synchronous>, transform_indices = @transform_7, window_bounds = array<i64: 2, 32>}, {pipeline_mode = #tpu.pipeline_mode<synchronous>, transform_indices = @transform_8, window_bounds = array<i64: 2, 32>}, {transform_indices = @transform_9, window_bounds = array<i64: 1, 4, 128, 64>}, {transform_indices = @transform_10, window_bounds = array<i64: 1, 2, 128, 64>}, {transform_indices = @transform_11, window_bounds = array<i64: 1, 2, 128, 64>}]} {
    %c0 = arith.constant 0 : index
    %c0_0 = arith.constant 0 : index
    %c0_1 = arith.constant 0 : index
    %0 = vector.load %arg2[%c0, %c0_0, %c0_1] : memref<1x128x256xf32, #tpu.memory_space<vmem>>, vector<1x128x256xf32>
    %1 = vector.shape_cast %0 : vector<1x128x256xf32> to vector<128x256xf32>
    %2 = arith.truncf %1 : vector<128x256xf32> to vector<128x256xbf16>
    %c0_2 = arith.constant 0 : index
    %c0_3 = arith.constant 0 : index
    %3 = vector.load %arg3[%c0_2, %c0_3] : memref<256x256xbf16, #tpu.memory_space<vmem>>, vector<256x256xbf16>
    %cst = arith.constant dense<0.000000e+00> : vector<128x256xf32>
    %4 = tpu.matmul %2, %3, %cst {dimension_numbers = #tpu.dot_dimension_numbers<[1], [0], [0], [1], [0, 0, 1, 1], [], []>} : vector<128x256xbf16>, vector<256x256xbf16>, vector<128x256xf32> -> vector<128x256xf32>
    %c0_4 = arith.constant 0 : index
    %c0_5 = arith.constant 0 : index
    %5 = vector.load %arg4[%c0_4, %c0_5] : memref<1x256xf32, #tpu.memory_space<vmem>>, vector<1x256xf32>
    %6 = vector.broadcast %5 : vector<1x256xf32> to vector<128x256xf32>
    %7 = arith.addf %4, %6 : vector<128x256xf32>
    %c0_6 = arith.constant 0 : index
    %c0_7 = arith.constant 0 : index
    %8 = vector.load %arg5[%c0_6, %c0_7] : memref<256x256xbf16, #tpu.memory_space<vmem>>, vector<256x256xbf16>
    %cst_8 = arith.constant dense<0.000000e+00> : vector<128x256xf32>
    %9 = tpu.matmul %2, %8, %cst_8 {dimension_numbers = #tpu.dot_dimension_numbers<[1], [0], [0], [1], [0, 0, 1, 1], [], []>} : vector<128x256xbf16>, vector<256x256xbf16>, vector<128x256xf32> -> vector<128x256xf32>
    %c0_9 = arith.constant 0 : index
    %c0_10 = arith.constant 0 : index
    %10 = vector.load %arg6[%c0_9, %c0_10] : memref<1x256xf32, #tpu.memory_space<vmem>>, vector<1x256xf32>
    %11 = vector.broadcast %10 : vector<1x256xf32> to vector<128x256xf32>
    %12 = arith.addf %9, %11 : vector<128x256xf32>
    %13 = vector.extract_strided_slice %7 {offsets = [0, 0], sizes = [128, 64], strides = [1, 1]} : vector<128x256xf32> to vector<128x64xf32>
    %14 = arith.mulf %13, %13 : vector<128x64xf32>
    %cst_11 = arith.constant dense<0.000000e+00> : vector<128xf32>
    %15 = vector.multi_reduction <add>, %14, %cst_11 [1] : vector<128x64xf32> to vector<128xf32>
    %16 = vector.shape_cast %15 : vector<128xf32> to vector<128x1xf32>
    %cst_12 = arith.constant 6.400000e+01 : f32
    %17 = vector.broadcast %cst_12 : f32 to vector<128x1xf32>
    %18 = arith.divf %16, %17 : vector<128x1xf32>
    %cst_13 = arith.constant 1.1920929E-7 : f32
    %19 = vector.broadcast %cst_13 : f32 to vector<128x1xf32>
    %20 = arith.addf %18, %19 : vector<128x1xf32>
    %21 = math.rsqrt %20 : vector<128x1xf32>
    %22 = vector.broadcast %21 : vector<128x1xf32> to vector<128x64xf32>
    %23 = arith.mulf %13, %22 : vector<128x64xf32>
    %c0_14 = arith.constant 0 : index
    %c0_15 = arith.constant 0 : index
    %24 = vector.load %arg7[%c0_14, %c0_15] : memref<4x32xf32, #tpu.memory_space<vmem>>, vector<1x32xf32>
    %c0_16 = arith.constant 0 : index
    %c0_17 = arith.constant 0 : index
    %25 = vector.load %arg8[%c0_16, %c0_17] : memref<4x32xf32, #tpu.memory_space<vmem>>, vector<1x32xf32>
    %26 = vector.extract_strided_slice %23 {offsets = [0, 0], sizes = [128, 32], strides = [1, 1]} : vector<128x64xf32> to vector<128x32xf32>
    %27 = vector.extract_strided_slice %23 {offsets = [0, 32], sizes = [128, 32], strides = [1, 1]} : vector<128x64xf32> to vector<128x32xf32>
    %28 = vector.broadcast %24 : vector<1x32xf32> to vector<128x32xf32>
    %29 = arith.mulf %26, %28 : vector<128x32xf32>
    %30 = vector.broadcast %25 : vector<1x32xf32> to vector<128x32xf32>
    %31 = arith.mulf %27, %30 : vector<128x32xf32>
    %32 = arith.addf %29, %31 : vector<128x32xf32>
    %cst_18 = arith.constant 0.000000e+00 : f32
    %33 = vector.broadcast %cst_18 : f32 to vector<128x32xf32>
    %34 = arith.subf %33, %26 : vector<128x32xf32>
    %35 = vector.broadcast %25 : vector<1x32xf32> to vector<128x32xf32>
    %36 = arith.mulf %34, %35 : vector<128x32xf32>
    %37 = vector.broadcast %24 : vector<1x32xf32> to vector<128x32xf32>
    %38 = arith.mulf %27, %37 : vector<128x32xf32>
    %39 = arith.addf %36, %38 : vector<128x32xf32>
    %40 = tpu.concatenate %32, %39 in 1 : vector<128x32xf32>, vector<128x32xf32> -> vector<128x64xf32>
    %41 = arith.truncf %40 : vector<128x64xf32> to vector<128x64xbf16>
    %c0_19 = arith.constant 0 : index
    %c0_20 = arith.constant 0 : index
    %c0_21 = arith.constant 0 : index
    %c0_22 = arith.constant 0 : index
    %42 = vector.load %arg11[%c0_19, %c0_20, %c0_21, %c0_22] : memref<1x4x128x64xbf16, #tpu.memory_space<vmem>>, vector<1x1x128x64xbf16>
    %43 = vector.shape_cast %42 : vector<1x1x128x64xbf16> to vector<128x64xbf16>
    %44 = vector.shape_cast %41 : vector<128x64xbf16> to vector<1x1x128x64xbf16>
    tpu.vector_store %arg11[%c0_19, %c0_20, %c0_21, %c0_22], %44 {strides = array<i32>} : memref<1x4x128x64xbf16, #tpu.memory_space<vmem>>, vector<1x1x128x64xbf16>,
    %45 = vector.extract_strided_slice %7 {offsets = [0, 64], sizes = [128, 64], strides = [1, 1]} : vector<128x256xf32> to vector<128x64xf32>
    %46 = arith.mulf %45, %45 : vector<128x64xf32>
    %cst_23 = arith.constant dense<0.000000e+00> : vector<128xf32>
    %47 = vector.multi_reduction <add>, %46, %cst_23 [1] : vector<128x64xf32> to vector<128xf32>
    %48 = vector.shape_cast %47 : vector<128xf32> to vector<128x1xf32>
    %cst_24 = arith.constant 6.400000e+01 : f32
    %49 = vector.broadcast %cst_24 : f32 to vector<128x1xf32>
    %50 = arith.divf %48, %49 : vector<128x1xf32>
    %cst_25 = arith.constant 1.1920929E-7 : f32
    %51 = vector.broadcast %cst_25 : f32 to vector<128x1xf32>
    %52 = arith.addf %50, %51 : vector<128x1xf32>
    %53 = math.rsqrt %52 : vector<128x1xf32>
    %54 = vector.broadcast %53 : vector<128x1xf32> to vector<128x64xf32>
    %55 = arith.mulf %45, %54 : vector<128x64xf32>
    %c1 = arith.constant 1 : index
    %c0_26 = arith.constant 0 : index
    %56 = vector.load %arg7[%c1, %c0_26] : memref<4x32xf32, #tpu.memory_space<vmem>>, vector<1x32xf32>
    %c1_27 = arith.constant 1 : index
    %c0_28 = arith.constant 0 : index
    %57 = vector.load %arg8[%c1_27, %c0_28] : memref<4x32xf32, #tpu.memory_space<vmem>>, vector<1x32xf32>
    %58 = vector.extract_strided_slice %55 {offsets = [0, 0], sizes = [128, 32], strides = [1, 1]} : vector<128x64xf32> to vector<128x32xf32>
    %59 = vector.extract_strided_slice %55 {offsets = [0, 32], sizes = [128, 32], strides = [1, 1]} : vector<128x64xf32> to vector<128x32xf32>
    %60 = vector.broadcast %56 : vector<1x32xf32> to vector<128x32xf32>
    %61 = arith.mulf %58, %60 : vector<128x32xf32>
    %62 = vector.broadcast %57 : vector<1x32xf32> to vector<128x32xf32>
    %63 = arith.mulf %59, %62 : vector<128x32xf32>
    %64 = arith.addf %61, %63 : vector<128x32xf32>
    %cst_29 = arith.constant 0.000000e+00 : f32
    %65 = vector.broadcast %cst_29 : f32 to vector<128x32xf32>
    %66 = arith.subf %65, %58 : vector<128x32xf32>
    %67 = vector.broadcast %57 : vector<1x32xf32> to vector<128x32xf32>
    %68 = arith.mulf %66, %67 : vector<128x32xf32>
    %69 = vector.broadcast %56 : vector<1x32xf32> to vector<128x32xf32>
    %70 = arith.mulf %59, %69 : vector<128x32xf32>
    %71 = arith.addf %68, %70 : vector<128x32xf32>
    %72 = tpu.concatenate %64, %71 in 1 : vector<128x32xf32>, vector<128x32xf32> -> vector<128x64xf32>
    %73 = arith.truncf %72 : vector<128x64xf32> to vector<128x64xbf16>
    %c0_30 = arith.constant 0 : index
    %c1_31 = arith.constant 1 : index
    %c0_32 = arith.constant 0 : index
    %c0_33 = arith.constant 0 : index
    %74 = vector.load %arg11[%c0_30, %c1_31, %c0_32, %c0_33] : memref<1x4x128x64xbf16, #tpu.memory_space<vmem>>, vector<1x1x128x64xbf16>
    %75 = vector.shape_cast %74 : vector<1x1x128x64xbf16> to vector<128x64xbf16>
    %76 = vector.shape_cast %73 : vector<128x64xbf16> to vector<1x1x128x64xbf16>
    tpu.vector_store %arg11[%c0_30, %c1_31, %c0_32, %c0_33], %76 {strides = array<i32>} : memref<1x4x128x64xbf16, #tpu.memory_space<vmem>>, vector<1x1x128x64xbf16>,
    %77 = vector.extract_strided_slice %7 {offsets = [0, 128], sizes = [128, 64], strides = [1, 1]} : vector<128x256xf32> to vector<128x64xf32>
    %78 = arith.mulf %77, %77 : vector<128x64xf32>
    %cst_34 = arith.constant dense<0.000000e+00> : vector<128xf32>
    %79 = vector.multi_reduction <add>, %78, %cst_34 [1] : vector<128x64xf32> to vector<128xf32>
    %80 = vector.shape_cast %79 : vector<128xf32> to vector<128x1xf32>
    %cst_35 = arith.constant 6.400000e+01 : f32
    %81 = vector.broadcast %cst_35 : f32 to vector<128x1xf32>
    %82 = arith.divf %80, %81 : vector<128x1xf32>
    %cst_36 = arith.constant 1.1920929E-7 : f32
    %83 = vector.broadcast %cst_36 : f32 to vector<128x1xf32>
    %84 = arith.addf %82, %83 : vector<128x1xf32>
    %85 = math.rsqrt %84 : vector<128x1xf32>
    %86 = vector.broadcast %85 : vector<128x1xf32> to vector<128x64xf32>
    %87 = arith.mulf %77, %86 : vector<128x64xf32>
    %c2 = arith.constant 2 : index
    %c0_37 = arith.constant 0 : index
    %88 = vector.load %arg7[%c2, %c0_37] : memref<4x32xf32, #tpu.memory_space<vmem>>, vector<1x32xf32>
    %c2_38 = arith.constant 2 : index
    %c0_39 = arith.constant 0 : index
    %89 = vector.load %arg8[%c2_38, %c0_39] : memref<4x32xf32, #tpu.memory_space<vmem>>, vector<1x32xf32>
    %90 = vector.extract_strided_slice %87 {offsets = [0, 0], sizes = [128, 32], strides = [1, 1]} : vector<128x64xf32> to vector<128x32xf32>
    %91 = vector.extract_strided_slice %87 {offsets = [0, 32], sizes = [128, 32], strides = [1, 1]} : vector<128x64xf32> to vector<128x32xf32>
    %92 = vector.broadcast %88 : vector<1x32xf32> to vector<128x32xf32>
    %93 = arith.mulf %90, %92 : vector<128x32xf32>
    %94 = vector.broadcast %89 : vector<1x32xf32> to vector<128x32xf32>
    %95 = arith.mulf %91, %94 : vector<128x32xf32>
    %96 = arith.addf %93, %95 : vector<128x32xf32>
    %cst_40 = arith.constant 0.000000e+00 : f32
    %97 = vector.broadcast %cst_40 : f32 to vector<128x32xf32>
    %98 = arith.subf %97, %90 : vector<128x32xf32>
    %99 = vector.broadcast %89 : vector<1x32xf32> to vector<128x32xf32>
    %100 = arith.mulf %98, %99 : vector<128x32xf32>
    %101 = vector.broadcast %88 : vector<1x32xf32> to vector<128x32xf32>
    %102 = arith.mulf %91, %101 : vector<128x32xf32>
    %103 = arith.addf %100, %102 : vector<128x32xf32>
    %104 = tpu.concatenate %96, %103 in 1 : vector<128x32xf32>, vector<128x32xf32> -> vector<128x64xf32>
    %105 = arith.truncf %104 : vector<128x64xf32> to vector<128x64xbf16>
    %c0_41 = arith.constant 0 : index
    %c2_42 = arith.constant 2 : index
    %c0_43 = arith.constant 0 : index
    %c0_44 = arith.constant 0 : index
    %106 = vector.load %arg11[%c0_41, %c2_42, %c0_43, %c0_44] : memref<1x4x128x64xbf16, #tpu.memory_space<vmem>>, vector<1x1x128x64xbf16>
    %107 = vector.shape_cast %106 : vector<1x1x128x64xbf16> to vector<128x64xbf16>
    %108 = vector.shape_cast %105 : vector<128x64xbf16> to vector<1x1x128x64xbf16>
    tpu.vector_store %arg11[%c0_41, %c2_42, %c0_43, %c0_44], %108 {strides = array<i32>} : memref<1x4x128x64xbf16, #tpu.memory_space<vmem>>, vector<1x1x128x64xbf16>,
    %109 = vector.extract_strided_slice %7 {offsets = [0, 192], sizes = [128, 64], strides = [1, 1]} : vector<128x256xf32> to vector<128x64xf32>
    %110 = arith.mulf %109, %109 : vector<128x64xf32>
    %cst_45 = arith.constant dense<0.000000e+00> : vector<128xf32>
    %111 = vector.multi_reduction <add>, %110, %cst_45 [1] : vector<128x64xf32> to vector<128xf32>
    %112 = vector.shape_cast %111 : vector<128xf32> to vector<128x1xf32>
    %cst_46 = arith.constant 6.400000e+01 : f32
    %113 = vector.broadcast %cst_46 : f32 to vector<128x1xf32>
    %114 = arith.divf %112, %113 : vector<128x1xf32>
    %cst_47 = arith.constant 1.1920929E-7 : f32
    %115 = vector.broadcast %cst_47 : f32 to vector<128x1xf32>
    %116 = arith.addf %114, %115 : vector<128x1xf32>
    %117 = math.rsqrt %116 : vector<128x1xf32>
    %118 = vector.broadcast %117 : vector<128x1xf32> to vector<128x64xf32>
    %119 = arith.mulf %109, %118 : vector<128x64xf32>
    %c3 = arith.constant 3 : index
    %c0_48 = arith.constant 0 : index
    %120 = vector.load %arg7[%c3, %c0_48] : memref<4x32xf32, #tpu.memory_space<vmem>>, vector<1x32xf32>
    %c3_49 = arith.constant 3 : index
    %c0_50 = arith.constant 0 : index
    %121 = vector.load %arg8[%c3_49, %c0_50] : memref<4x32xf32, #tpu.memory_space<vmem>>, vector<1x32xf32>
    %122 = vector.extract_strided_slice %119 {offsets = [0, 0], sizes = [128, 32], strides = [1, 1]} : vector<128x64xf32> to vector<128x32xf32>
    %123 = vector.extract_strided_slice %119 {offsets = [0, 32], sizes = [128, 32], strides = [1, 1]} : vector<128x64xf32> to vector<128x32xf32>
    %124 = vector.broadcast %120 : vector<1x32xf32> to vector<128x32xf32>
    %125 = arith.mulf %122, %124 : vector<128x32xf32>
    %126 = vector.broadcast %121 : vector<1x32xf32> to vector<128x32xf32>
    %127 = arith.mulf %123, %126 : vector<128x32xf32>
    %128 = arith.addf %125, %127 : vector<128x32xf32>
    %cst_51 = arith.constant 0.000000e+00 : f32
    %129 = vector.broadcast %cst_51 : f32 to vector<128x32xf32>
    %130 = arith.subf %129, %122 : vector<128x32xf32>
    %131 = vector.broadcast %121 : vector<1x32xf32> to vector<128x32xf32>
    %132 = arith.mulf %130, %131 : vector<128x32xf32>
    %133 = vector.broadcast %120 : vector<1x32xf32> to vector<128x32xf32>
    %134 = arith.mulf %123, %133 : vector<128x32xf32>
    %135 = arith.addf %132, %134 : vector<128x32xf32>
    %136 = tpu.concatenate %128, %135 in 1 : vector<128x32xf32>, vector<128x32xf32> -> vector<128x64xf32>
    %137 = arith.truncf %136 : vector<128x64xf32> to vector<128x64xbf16>
    %c0_52 = arith.constant 0 : index
    %c3_53 = arith.constant 3 : index
    %c0_54 = arith.constant 0 : index
    %c0_55 = arith.constant 0 : index
    %138 = vector.load %arg11[%c0_52, %c3_53, %c0_54, %c0_55] : memref<1x4x128x64xbf16, #tpu.memory_space<vmem>>, vector<1x1x128x64xbf16>
    %139 = vector.shape_cast %138 : vector<1x1x128x64xbf16> to vector<128x64xbf16>
    %140 = vector.shape_cast %137 : vector<128x64xbf16> to vector<1x1x128x64xbf16>
    tpu.vector_store %arg11[%c0_52, %c3_53, %c0_54, %c0_55], %140 {strides = array<i32>} : memref<1x4x128x64xbf16, #tpu.memory_space<vmem>>, vector<1x1x128x64xbf16>,
    %141 = vector.extract_strided_slice %12 {offsets = [0, 0], sizes = [128, 64], strides = [1, 1]} : vector<128x256xf32> to vector<128x64xf32>
    %142 = arith.mulf %141, %141 : vector<128x64xf32>
    %cst_56 = arith.constant dense<0.000000e+00> : vector<128xf32>
    %143 = vector.multi_reduction <add>, %142, %cst_56 [1] : vector<128x64xf32> to vector<128xf32>
    %144 = vector.shape_cast %143 : vector<128xf32> to vector<128x1xf32>
    %cst_57 = arith.constant 6.400000e+01 : f32
    %145 = vector.broadcast %cst_57 : f32 to vector<128x1xf32>
    %146 = arith.divf %144, %145 : vector<128x1xf32>
    %cst_58 = arith.constant 1.1920929E-7 : f32
    %147 = vector.broadcast %cst_58 : f32 to vector<128x1xf32>
    %148 = arith.addf %146, %147 : vector<128x1xf32>
    %149 = math.rsqrt %148 : vector<128x1xf32>
    %150 = vector.broadcast %149 : vector<128x1xf32> to vector<128x64xf32>
    %151 = arith.mulf %141, %150 : vector<128x64xf32>
    %c0_59 = arith.constant 0 : index
    %c0_60 = arith.constant 0 : index
    %152 = vector.load %arg9[%c0_59, %c0_60] : memref<2x32xf32, #tpu.memory_space<vmem>>, vector<1x32xf32>
    %c0_61 = arith.constant 0 : index
    %c0_62 = arith.constant 0 : index
    %153 = vector.load %arg10[%c0_61, %c0_62] : memref<2x32xf32, #tpu.memory_space<vmem>>, vector<1x32xf32>
    %154 = vector.extract_strided_slice %151 {offsets = [0, 0], sizes = [128, 32], strides = [1, 1]} : vector<128x64xf32> to vector<128x32xf32>
    %155 = vector.extract_strided_slice %151 {offsets = [0, 32], sizes = [128, 32], strides = [1, 1]} : vector<128x64xf32> to vector<128x32xf32>
    %156 = vector.broadcast %152 : vector<1x32xf32> to vector<128x32xf32>
    %157 = arith.mulf %154, %156 : vector<128x32xf32>
    %158 = vector.broadcast %153 : vector<1x32xf32> to vector<128x32xf32>
    %159 = arith.mulf %155, %158 : vector<128x32xf32>
    %160 = arith.addf %157, %159 : vector<128x32xf32>
    %cst_63 = arith.constant 0.000000e+00 : f32
    %161 = vector.broadcast %cst_63 : f32 to vector<128x32xf32>
    %162 = arith.subf %161, %154 : vector<128x32xf32>
    %163 = vector.broadcast %153 : vector<1x32xf32> to vector<128x32xf32>
    %164 = arith.mulf %162, %163 : vector<128x32xf32>
    %165 = vector.broadcast %152 : vector<1x32xf32> to vector<128x32xf32>
    %166 = arith.mulf %155, %165 : vector<128x32xf32>
    %167 = arith.addf %164, %166 : vector<128x32xf32>
    %168 = tpu.concatenate %160, %167 in 1 : vector<128x32xf32>, vector<128x32xf32> -> vector<128x64xf32>
    %169 = arith.truncf %168 : vector<128x64xf32> to vector<128x64xbf16>
    %c0_64 = arith.constant 0 : index
    %c0_65 = arith.constant 0 : index
    %c0_66 = arith.constant 0 : index
    %c0_67 = arith.constant 0 : index
    %170 = vector.load %arg12[%c0_64, %c0_65, %c0_66, %c0_67] : memref<1x2x128x64xbf16, #tpu.memory_space<vmem>>, vector<1x1x128x64xbf16>
    %171 = vector.shape_cast %170 : vector<1x1x128x64xbf16> to vector<128x64xbf16>
    %172 = vector.shape_cast %169 : vector<128x64xbf16> to vector<1x1x128x64xbf16>
    tpu.vector_store %arg12[%c0_64, %c0_65, %c0_66, %c0_67], %172 {strides = array<i32>} : memref<1x2x128x64xbf16, #tpu.memory_space<vmem>>, vector<1x1x128x64xbf16>,
    %173 = vector.extract_strided_slice %12 {offsets = [0, 128], sizes = [128, 64], strides = [1, 1]} : vector<128x256xf32> to vector<128x64xf32>
    %174 = arith.truncf %173 : vector<128x64xf32> to vector<128x64xbf16>
    %c0_68 = arith.constant 0 : index
    %c0_69 = arith.constant 0 : index
    %c0_70 = arith.constant 0 : index
    %c0_71 = arith.constant 0 : index
    %175 = vector.load %arg13[%c0_68, %c0_69, %c0_70, %c0_71] : memref<1x2x128x64xbf16, #tpu.memory_space<vmem>>, vector<1x1x128x64xbf16>
    %176 = vector.shape_cast %175 : vector<1x1x128x64xbf16> to vector<128x64xbf16>
    %177 = vector.shape_cast %174 : vector<128x64xbf16> to vector<1x1x128x64xbf16>
    tpu.vector_store %arg13[%c0_68, %c0_69, %c0_70, %c0_71], %177 {strides = array<i32>} : memref<1x2x128x64xbf16, #tpu.memory_space<vmem>>, vector<1x1x128x64xbf16>,
    %178 = vector.extract_strided_slice %12 {offsets = [0, 64], sizes = [128, 64], strides = [1, 1]} : vector<128x256xf32> to vector<128x64xf32>
    %179 = arith.mulf %178, %178 : vector<128x64xf32>
    %cst_72 = arith.constant dense<0.000000e+00> : vector<128xf32>
    %180 = vector.multi_reduction <add>, %179, %cst_72 [1] : vector<128x64xf32> to vector<128xf32>
    %181 = vector.shape_cast %180 : vector<128xf32> to vector<128x1xf32>
    %cst_73 = arith.constant 6.400000e+01 : f32
    %182 = vector.broadcast %cst_73 : f32 to vector<128x1xf32>
    %183 = arith.divf %181, %182 : vector<128x1xf32>
    %cst_74 = arith.constant 1.1920929E-7 : f32
    %184 = vector.broadcast %cst_74 : f32 to vector<128x1xf32>
    %185 = arith.addf %183, %184 : vector<128x1xf32>
    %186 = math.rsqrt %185 : vector<128x1xf32>
    %187 = vector.broadcast %186 : vector<128x1xf32> to vector<128x64xf32>
    %188 = arith.mulf %178, %187 : vector<128x64xf32>
    %c1_75 = arith.constant 1 : index
    %c0_76 = arith.constant 0 : index
    %189 = vector.load %arg9[%c1_75, %c0_76] : memref<2x32xf32, #tpu.memory_space<vmem>>, vector<1x32xf32>
    %c1_77 = arith.constant 1 : index
    %c0_78 = arith.constant 0 : index
    %190 = vector.load %arg10[%c1_77, %c0_78] : memref<2x32xf32, #tpu.memory_space<vmem>>, vector<1x32xf32>
    %191 = vector.extract_strided_slice %188 {offsets = [0, 0], sizes = [128, 32], strides = [1, 1]} : vector<128x64xf32> to vector<128x32xf32>
    %192 = vector.extract_strided_slice %188 {offsets = [0, 32], sizes = [128, 32], strides = [1, 1]} : vector<128x64xf32> to vector<128x32xf32>
    %193 = vector.broadcast %189 : vector<1x32xf32> to vector<128x32xf32>
    %194 = arith.mulf %191, %193 : vector<128x32xf32>
    %195 = vector.broadcast %190 : vector<1x32xf32> to vector<128x32xf32>
    %196 = arith.mulf %192, %195 : vector<128x32xf32>
    %197 = arith.addf %194, %196 : vector<128x32xf32>
    %cst_79 = arith.constant 0.000000e+00 : f32
    %198 = vector.broadcast %cst_79 : f32 to vector<128x32xf32>
    %199 = arith.subf %198, %191 : vector<128x32xf32>
    %200 = vector.broadcast %190 : vector<1x32xf32> to vector<128x32xf32>
    %201 = arith.mulf %199, %200 : vector<128x32xf32>
    %202 = vector.broadcast %189 : vector<1x32xf32> to vector<128x32xf32>
    %203 = arith.mulf %192, %202 : vector<128x32xf32>
    %204 = arith.addf %201, %203 : vector<128x32xf32>
    %205 = tpu.concatenate %197, %204 in 1 : vector<128x32xf32>, vector<128x32xf32> -> vector<128x64xf32>
    %206 = arith.truncf %205 : vector<128x64xf32> to vector<128x64xbf16>
    %c0_80 = arith.constant 0 : index
    %c1_81 = arith.constant 1 : index
    %c0_82 = arith.constant 0 : index
    %c0_83 = arith.constant 0 : index
    %207 = vector.load %arg12[%c0_80, %c1_81, %c0_82, %c0_83] : memref<1x2x128x64xbf16, #tpu.memory_space<vmem>>, vector<1x1x128x64xbf16>
    %208 = vector.shape_cast %207 : vector<1x1x128x64xbf16> to vector<128x64xbf16>
    %209 = vector.shape_cast %206 : vector<128x64xbf16> to vector<1x1x128x64xbf16>
    tpu.vector_store %arg12[%c0_80, %c1_81, %c0_82, %c0_83], %209 {strides = array<i32>} : memref<1x2x128x64xbf16, #tpu.memory_space<vmem>>, vector<1x1x128x64xbf16>,
    %210 = vector.extract_strided_slice %12 {offsets = [0, 192], sizes = [128, 64], strides = [1, 1]} : vector<128x256xf32> to vector<128x64xf32>
    %211 = arith.truncf %210 : vector<128x64xf32> to vector<128x64xbf16>
    %c0_84 = arith.constant 0 : index
    %c1_85 = arith.constant 1 : index
    %c0_86 = arith.constant 0 : index
    %c0_87 = arith.constant 0 : index
    %212 = vector.load %arg13[%c0_84, %c1_85, %c0_86, %c0_87] : memref<1x2x128x64xbf16, #tpu.memory_space<vmem>>, vector<1x1x128x64xbf16>
    %213 = vector.shape_cast %212 : vector<1x1x128x64xbf16> to vector<128x64xbf16>
    %214 = vector.shape_cast %211 : vector<128x64xbf16> to vector<1x1x128x64xbf16>
    tpu.vector_store %arg13[%c0_84, %c1_85, %c0_86, %c0_87], %214 {strides = array<i32>} : memref<1x2x128x64xbf16, #tpu.memory_space<vmem>>, vector<1x1x128x64xbf16>,
    return
  }
  func.func @transform_0(%arg0: i32, %arg1: i32) -> (i32, i32, i32) {
    %c0_i32 = arith.constant 0 : i32
    %c0_i32_0 = arith.constant 0 : i32
    return %arg0, %arg1, %c0_i32 : i32, i32, i32
  }
  func.func @transform_1(%arg0: i32, %arg1: i32) -> (i32, i32) {
    %c0_i32 = arith.constant 0 : i32
    %c0_i32_0 = arith.constant 0 : i32
    %c0_i32_1 = arith.constant 0 : i32
    return %c0_i32, %c0_i32_0 : i32, i32
  }
  func.func @transform_2(%arg0: i32, %arg1: i32) -> (i32, i32) {
    %c0_i32 = arith.constant 0 : i32
    %c0_i32_0 = arith.constant 0 : i32
    %c0_i32_1 = arith.constant 0 : i32
    return %c0_i32, %c0_i32_0 : i32, i32
  }
  func.func @transform_3(%arg0: i32, %arg1: i32) -> (i32, i32) {
    %c0_i32 = arith.constant 0 : i32
    %c0_i32_0 = arith.constant 0 : i32
    %c0_i32_1 = arith.constant 0 : i32
    return %c0_i32, %c0_i32_0 : i32, i32
  }
  func.func @transform_4(%arg0: i32, %arg1: i32) -> (i32, i32) {
    %c0_i32 = arith.constant 0 : i32
    %c0_i32_0 = arith.constant 0 : i32
    %c0_i32_1 = arith.constant 0 : i32
    return %c0_i32, %c0_i32_0 : i32, i32
  }
  func.func @transform_5(%arg0: i32, %arg1: i32) -> (i32, i32) {
    %c0_i32 = arith.constant 0 : i32
    %c0_i32_0 = arith.constant 0 : i32
    %c0_i32_1 = arith.constant 0 : i32
    return %c0_i32, %c0_i32_0 : i32, i32
  }
  func.func @transform_6(%arg0: i32, %arg1: i32) -> (i32, i32) {
    %c0_i32 = arith.constant 0 : i32
    %c0_i32_0 = arith.constant 0 : i32
    %c0_i32_1 = arith.constant 0 : i32
    return %c0_i32, %c0_i32_0 : i32, i32
  }
  func.func @transform_7(%arg0: i32, %arg1: i32) -> (i32, i32) {
    %c0_i32 = arith.constant 0 : i32
    %c0_i32_0 = arith.constant 0 : i32
    %c0_i32_1 = arith.constant 0 : i32
    return %c0_i32, %c0_i32_0 : i32, i32
  }
  func.func @transform_8(%arg0: i32, %arg1: i32) -> (i32, i32) {
    %c0_i32 = arith.constant 0 : i32
    %c0_i32_0 = arith.constant 0 : i32
    %c0_i32_1 = arith.constant 0 : i32
    return %c0_i32, %c0_i32_0 : i32, i32
  }
  func.func @transform_9(%arg0: i32, %arg1: i32) -> (i32, i32, i32, i32) {
    %c0_i32 = arith.constant 0 : i32
    %c0_i32_0 = arith.constant 0 : i32
    %c0_i32_1 = arith.constant 0 : i32
    return %arg0, %c0_i32, %arg1, %c0_i32_0 : i32, i32, i32, i32
  }
  func.func @transform_10(%arg0: i32, %arg1: i32) -> (i32, i32, i32, i32) {
    %c0_i32 = arith.constant 0 : i32
    %c0_i32_0 = arith.constant 0 : i32
    %c0_i32_1 = arith.constant 0 : i32
    return %arg0, %c0_i32, %arg1, %c0_i32_0 : i32, i32, i32, i32
  }
  func.func @transform_11(%arg0: i32, %arg1: i32) -> (i32, i32, i32, i32) {
    %c0_i32 = arith.constant 0 : i32
    %c0_i32_0 = arith.constant 0 : i32
    %c0_i32_1 = arith.constant 0 : i32
    return %arg0, %c0_i32, %arg1, %c0_i32_0 : i32, i32, i32, i32
  }
}

</mosaic_0001>

<llo_original>
// kernel: tpu_custom_call.1
$region0: #{tpu_custom_call.1}
  #allocation0 [shape = 'u32[]', space=smem, size = 0x4, offset = 0x4, fixed_abs, tag = 'smem constant byte address 0x4 - core index']
  #allocation1 [shape = 'u32[144,128]{1,0:T(1,128)}', space=vmem, size = 0x12000, scoped, tag = 'internal scratch']
  %s0 = inlined_call_operand.hbm [shape: f32[2,256,256], index: 0, kind: input, shape index: {}]
  %s1 = inlined_call_operand.hbm [shape: bf16[256,256], index: 1, kind: input, shape index: {}]
  %s2 = inlined_call_operand.vmem [shape: f32[1,256], index: 2, kind: input, shape index: {}]
  %s3 = inlined_call_operand.hbm [shape: bf16[256,256], index: 3, kind: input, shape index: {}]
  %s4 = inlined_call_operand.vmem [shape: f32[1,256], index: 4, kind: input, shape index: {}]
  %s5 = inlined_call_operand.vmem [shape: f32[4,32], index: 5, kind: input, shape index: {}]
  %s6 = inlined_call_operand.vmem [shape: f32[4,32], index: 6, kind: input, shape index: {}]
  %s7 = inlined_call_operand.vmem [shape: f32[2,32], index: 7, kind: input, shape index: {}]
  %s8 = inlined_call_operand.vmem [shape: f32[2,32], index: 8, kind: input, shape index: {}]
  %s9 = inlined_call_operand.vmem [shape: bf16[2,4,256,64], index: 9, kind: output, shape index: {0}]
  %s10 = inlined_call_operand.vmem [shape: bf16[2,2,256,64], index: 10, kind: output, shape index: {1}]
  %s11 = inlined_call_operand.vmem [shape: bf16[2,2,256,64], index: 11, kind: output, shape index: {2}]
  %12 = xla_tuple %s9, %s10, %s11
  %s13 = sld [smem:[#allocation0]]
  $region208: #{tpu_custom_call.1} parent=0
    _
  %s15 = ssub.s32 1, %s13
  %s16 = scalar_select 0, %s15, %s13
  $region1: #{tpu_custom_call.1} parent=0
    #allocation2 [shape = 'u8[262144]{0}', space=vmem, size = 0x40000, scoped, tag = 'input window, operand 0']
    #allocation3 [shape = 's32[2]{0}', space=sflag, size = 0x8, scoped, tag = 'scoped memory for tpu_custom_call.1']
    #allocation4 [shape = 'u8[131072]{0}', space=vmem, size = 0x20000, scoped, tag = 'input window, operand 1, single buffered']
    #allocation5 [shape = 's32[1]{0}', space=sflag, size = 0x4, scoped, tag = 'scoped memory for tpu_custom_call.1']
    #allocation6 [shape = 'u8[131072]{0}', space=vmem, size = 0x20000, scoped, tag = 'input window, operand 3, single buffered']
    #allocation7 [shape = 'u8[262144]{0}', space=vmem, size = 0x40000, scoped, tag = 'output window, operand 0']
    #allocation8 [shape = 'u8[131072]{0}', space=vmem, size = 0x20000, scoped, tag = 'output window, operand 1']
    #allocation9 [shape = 'u8[131072]{0}', space=vmem, size = 0x20000, scoped, tag = 'output window, operand 2']
    %17 = vsyncpa [#allocation3], 0
    %s18 = scalar_lea.sflag [#allocation3], 1
    %19 = vsyncpa %s18, 0
    %20 = vsyncpa [#allocation5], 0
    loop: start=0, step=1, limit=6
    $region2: #{tpu_custom_call.1} parent=1 // loop_pre_header
      _
    $region3: #{tpu_custom_call.1} parent=1 // loop_header
      %s22 = sphi 0, %s26
      %p23 = scmp.ge.s32.totalorder %s22, 6
      %s29 = sphi 0, %s41
      %s30 = sphi 0, %s37
      %s31 = sphi 0, %s29
      %s32 = sphi 0, %s30
      %s33 = sphi 0, %s31
      %s34 = sphi 0, %s32
      %s46 = sphi 0, %s48
      %s49 = sphi 0, %s46
      %s50 = sphi 0, %s49
      %s66 = sphi 0, %s50
      %s70 = sphi 0, %s70
      %s72 = sphi 0, %s70
      %s73 = sphi 0, %s72
      %s87 = sphi 0, %s73
      %s91 = sphi 0, %s91
      %s93 = sphi 0, %s91
      %s94 = sphi 0, %s93
      %s108 = sphi 0, %s94
      %s112 = sphi 0, %s112
      %s114 = sphi 0, %s112
      %s115 = sphi 0, %s114
      %s129 = sphi 0, %s115
      %s133 = sphi 0, %s133
      %s135 = sphi 0, %s133
      %s136 = sphi 0, %s135
      %s150 = sphi 0, %s136
      %s154 = sphi 0, %s154
      %s156 = sphi 0, %s154
      %s157 = sphi 0, %s156
      %s171 = sphi 0, %s157
      %s175 = sphi 0, %s175
      %s177 = sphi 0, %s175
      %s178 = sphi 0, %s177
      %s192 = sphi 0, %s178
      %s196 = sphi 0, %s196
      %s198 = sphi 0, %s196
      %s199 = sphi 0, %s198
      %s213 = sphi 0, %s199
      %s217 = sphi 0, %s217
      %s219 = sphi 0, %s217
      %s220 = sphi 0, %s219
      %s234 = sphi 0, %s220
      %s242 = sphi 0, %s244
      %s245 = sphi 0, %s242
      %s246 = sphi 0, %s245
      %s262 = sphi 0, %s246
      %s270 = sphi 0, %s272
      %s273 = sphi 0, %s270
      %s274 = sphi 0, %s273
      %s290 = sphi 0, %s274
      %s298 = sphi 0, %s300
      %s301 = sphi 0, %s298
      %s302 = sphi 0, %s301
      %s318 = sphi 0, %s302
    $region4: #{tpu_custom_call.1} parent=1 // loop_header_branch
      %25 = sbr.rel (%p23) target = $region8
    $region5: #{tpu_custom_call.1} parent=1 // loop_body
      %s27 = ssub.s32 %s22, 1
      %s28 = ssub.s32 %s22, 2
      %s35 = sadd.s32 1, %s30
      %p36 = scmp.ge.s32.totalorder %s35, 2
      %s37 = scalar_select %p36, 0, %s35
      %s38 = sadd.s32 1, %s29
      %s39 = scalar_select %p36, %s38, %s29
      %p40 = scmp.ge.s32.totalorder %s39, 2
      %s41 = scalar_select %p40, 0, %s39
      %s42 = ssub.s32 %s29, %s41
      %s43 = ssub.s32 %s30, %s37
      %s44 = sor.u32 %s42, %s43
      %p45 = scmp.eq.s32.totalorder %s44, 0
      %s47 = sadd.s32 %s46, 1
      %s48 = scalar_select %p45, %s46, %s47
      %p51 = pneg %p45
      %p52 = scmp.eq.s32.totalorder %s22, 3
      %p53 = por %p51, %p52
      %p54 = scmp.ne.s32.totalorder %s46, %s49
      %p55 = scmp.eq.s32.totalorder %s22, 0
      %p56 = por %p54, %p55
      %p57 = scmp.ne.s32.totalorder %s46, %s49
      %p58 = scmp.eq.s32.totalorder %s27, 3
      %p59 = por %p57, %p58
      %p60 = scmp.ne.s32.totalorder %s49, %s50
      %p61 = scmp.eq.s32.totalorder %s27, 0
      %p62 = por %p60, %p61
      %p63 = scmp.ne.s32.totalorder %s49, %s50
      %p64 = scmp.eq.s32.totalorder %s28, 3
      %p65 = por %p63, %p64
      %p67 = scmp.ne.s32.totalorder %s50, %s66
      %p68 = scmp.eq.s32.totalorder %s28, 0
      %p69 = por %p67, %p68
      %s71 = sadd.s32 %s70, 1
      %p74 = scmp.eq.s32.totalorder %s22, 3
      %p75 = scmp.ne.s32.totalorder %s70, %s72
      %p76 = scmp.eq.s32.totalorder %s22, 0
      %p77 = por %p75, %p76
      %p78 = scmp.ne.s32.totalorder %s70, %s72
      %p79 = scmp.eq.s32.totalorder %s27, 3
      %p80 = por %p78, %p79
      %p81 = scmp.ne.s32.totalorder %s72, %s73
      %p82 = scmp.eq.s32.totalorder %s27, 0
      %p83 = por %p81, %p82
      %p84 = scmp.ne.s32.totalorder %s72, %s73
      %p85 = scmp.eq.s32.totalorder %s28, 3
      %p86 = por %p84, %p85
      %p88 = scmp.ne.s32.totalorder %s73, %s87
      %p89 = scmp.eq.s32.totalorder %s28, 0
      %p90 = por %p88, %p89
      %s92 = sadd.s32 %s91, 1
      %p95 = scmp.eq.s32.totalorder %s22, 3
      %p96 = scmp.ne.s32.totalorder %s91, %s93
      %p97 = scmp.eq.s32.totalorder %s22, 0
      %p98 = por %p96, %p97
      %p99 = scmp.ne.s32.totalorder %s91, %s93
      %p100 = scmp.eq.s32.totalorder %s27, 3
      %p101 = por %p99, %p100
      %p102 = scmp.ne.s32.totalorder %s93, %s94
      %p103 = scmp.eq.s32.totalorder %s27, 0
      %p104 = por %p102, %p103
      %p105 = scmp.ne.s32.totalorder %s93, %s94
      %p106 = scmp.eq.s32.totalorder %s28, 3
      %p107 = por %p105, %p106
      %p109 = scmp.ne.s32.totalorder %s94, %s108
      %p110 = scmp.eq.s32.totalorder %s28, 0
      %p111 = por %p109, %p110
      %s113 = sadd.s32 %s112, 1
      %p116 = scmp.eq.s32.totalorder %s22, 3
      %p117 = scmp.ne.s32.totalorder %s112, %s114
      %p118 = scmp.eq.s32.totalorder %s22, 0
      %p119 = por %p117, %p118
      %p120 = scmp.ne.s32.totalorder %s112, %s114
      %p121 = scmp.eq.s32.totalorder %s27, 3
      %p122 = por %p120, %p121
      %p123 = scmp.ne.s32.totalorder %s114, %s115
      %p124 = scmp.eq.s32.totalorder %s27, 0
      %p125 = por %p123, %p124
      %p126 = scmp.ne.s32.totalorder %s114, %s115
      %p127 = scmp.eq.s32.totalorder %s28, 3
      %p128 = por %p126, %p127
      %p130 = scmp.ne.s32.totalorder %s115, %s129
      %p131 = scmp.eq.s32.totalorder %s28, 0
      %p132 = por %p130, %p131
      %s134 = sadd.s32 %s133, 1
      %p137 = scmp.eq.s32.totalorder %s22, 3
      %p138 = scmp.ne.s32.totalorder %s133, %s135
      %p139 = scmp.eq.s32.totalorder %s22, 0
      %p140 = por %p138, %p139
      %p141 = scmp.ne.s32.totalorder %s133, %s135
      %p142 = scmp.eq.s32.totalorder %s27, 3
      %p143 = por %p141, %p142
      %p144 = scmp.ne.s32.totalorder %s135, %s136
      %p145 = scmp.eq.s32.totalorder %s27, 0
      %p146 = por %p144, %p145
      %p147 = scmp.ne.s32.totalorder %s135, %s136
      %p148 = scmp.eq.s32.totalorder %s28, 3
      %p149 = por %p147, %p148
      %p151 = scmp.ne.s32.totalorder %s136, %s150
      %p152 = scmp.eq.s32.totalorder %s28, 0
      %p153 = por %p151, %p152
      %s155 = sadd.s32 %s154, 1
      %p158 = scmp.eq.s32.totalorder %s22, 3
      %p159 = scmp.ne.s32.totalorder %s154, %s156
      %p160 = scmp.eq.s32.totalorder %s22, 0
      %p161 = por %p159, %p160
      %p162 = scmp.ne.s32.totalorder %s154, %s156
      %p163 = scmp.eq.s32.totalorder %s27, 3
      %p164 = por %p162, %p163
      %p165 = scmp.ne.s32.totalorder %s156, %s157
      %p166 = scmp.eq.s32.totalorder %s27, 0
      %p167 = por %p165, %p166
      %p168 = scmp.ne.s32.totalorder %s156, %s157
      %p169 = scmp.eq.s32.totalorder %s28, 3
      %p170 = por %p168, %p169
      %p172 = scmp.ne.s32.totalorder %s157, %s171
      %p173 = scmp.eq.s32.totalorder %s28, 0
      %p174 = por %p172, %p173
      %s176 = sadd.s32 %s175, 1
      %p179 = scmp.eq.s32.totalorder %s22, 3
      %p180 = scmp.ne.s32.totalorder %s175, %s177
      %p181 = scmp.eq.s32.totalorder %s22, 0
      %p182 = por %p180, %p181
      %p183 = scmp.ne.s32.totalorder %s175, %s177
      %p184 = scmp.eq.s32.totalorder %s27, 3
      %p185 = por %p183, %p184
      %p186 = scmp.ne.s32.totalorder %s177, %s178
      %p187 = scmp.eq.s32.totalorder %s27, 0
      %p188 = por %p186, %p187
      %p189 = scmp.ne.s32.totalorder %s177, %s178
      %p190 = scmp.eq.s32.totalorder %s28, 3
      %p191 = por %p189, %p190
      %p193 = scmp.ne.s32.totalorder %s178, %s192
      %p194 = scmp.eq.s32.totalorder %s28, 0
      %p195 = por %p193, %p194
      %s197 = sadd.s32 %s196, 1
      %p200 = scmp.eq.s32.totalorder %s22, 3
      %p201 = scmp.ne.s32.totalorder %s196, %s198
      %p202 = scmp.eq.s32.totalorder %s22, 0
      %p203 = por %p201, %p202
      %p204 = scmp.ne.s32.totalorder %s196, %s198
      %p205 = scmp.eq.s32.totalorder %s27, 3
      %p206 = por %p204, %p205
      %p207 = scmp.ne.s32.totalorder %s198, %s199
      %p208 = scmp.eq.s32.totalorder %s27, 0
      %p209 = por %p207, %p208
      %p210 = scmp.ne.s32.totalorder %s198, %s199
      %p211 = scmp.eq.s32.totalorder %s28, 3
      %p212 = por %p210, %p211
      %p214 = scmp.ne.s32.totalorder %s199, %s213
      %p215 = scmp.eq.s32.totalorder %s28, 0
      %p216 = por %p214, %p215
      %s218 = sadd.s32 %s217, 1
      %p221 = scmp.eq.s32.totalorder %s22, 3
      %p222 = scmp.ne.s32.totalorder %s217, %s219
      %p223 = scmp.eq.s32.totalorder %s22, 0
      %p224 = por %p222, %p223
      %p225 = scmp.ne.s32.totalorder %s217, %s219
      %p226 = scmp.eq.s32.totalorder %s27, 3
      %p227 = por %p225, %p226
      %p228 = scmp.ne.s32.totalorder %s219, %s220
      %p229 = scmp.eq.s32.totalorder %s27, 0
      %p230 = por %p228, %p229
      %p231 = scmp.ne.s32.totalorder %s219, %s220
      %p232 = scmp.eq.s32.totalorder %s28, 3
      %p233 = por %p231, %p232
      %p235 = scmp.ne.s32.totalorder %s220, %s234
      %p236 = scmp.eq.s32.totalorder %s28, 0
      %p237 = por %p235, %p236
      %s238 = ssub.s32 %s29, %s41
      %s239 = ssub.s32 %s30, %s37
      %s240 = sor.u32 %s238, %s239
      %p241 = scmp.eq.s32.totalorder %s240, 0
      %s243 = sadd.s32 %s242, 1
      %s244 = scalar_select %p241, %s242, %s243
      %p247 = pneg %p241
      %p248 = scmp.eq.s32.totalorder %s22, 3
      %p249 = por %p247, %p248
      %p250 = scmp.ne.s32.totalorder %s242, %s245
      %p251 = scmp.eq.s32.totalorder %s22, 0
      %p252 = por %p250, %p251
      %p253 = scmp.ne.s32.totalorder %s242, %s245
      %p254 = scmp.eq.s32.totalorder %s27, 3
      %p255 = por %p253, %p254
      %p256 = scmp.ne.s32.totalorder %s245, %s246
      %p257 = scmp.eq.s32.totalorder %s27, 0
      %p258 = por %p256, %p257
      %p259 = scmp.ne.s32.totalorder %s245, %s246
      %p260 = scmp.eq.s32.totalorder %s28, 3
      %p261 = por %p259, %p260
      %p263 = scmp.ne.s32.totalorder %s246, %s262
      %p264 = scmp.eq.s32.totalorder %s28, 0
      %p265 = por %p263, %p264
      %s266 = ssub.s32 %s29, %s41
      %s267 = ssub.s32 %s30, %s37
      %s268 = sor.u32 %s266, %s267
      %p269 = scmp.eq.s32.totalorder %s268, 0
      %s271 = sadd.s32 %s270, 1
      %s272 = scalar_select %p269, %s270, %s271
      %p275 = pneg %p269
      %p276 = scmp.eq.s32.totalorder %s22, 3
      %p277 = por %p275, %p276
      %p278 = scmp.ne.s32.totalorder %s270, %s273
      %p279 = scmp.eq.s32.totalorder %s22, 0
      %p280 = por %p278, %p279
      %p281 = scmp.ne.s32.totalorder %s270, %s273
      %p282 = scmp.eq.s32.totalorder %s27, 3
      %p283 = por %p281, %p282
      %p284 = scmp.ne.s32.totalorder %s273, %s274
      %p285 = scmp.eq.s32.totalorder %s27, 0
      %p286 = por %p284, %p285
      %p287 = scmp.ne.s32.totalorder %s273, %s274
      %p288 = scmp.eq.s32.totalorder %s28, 3
      %p289 = por %p287, %p288
      %p291 = scmp.ne.s32.totalorder %s274, %s290
      %p292 = scmp.eq.s32.totalorder %s28, 0
      %p293 = por %p291, %p292
      %s294 = ssub.s32 %s29, %s41
      %s295 = ssub.s32 %s30, %s37
      %s296 = sor.u32 %s294, %s295
      %p297 = scmp.eq.s32.totalorder %s296, 0
      %s299 = sadd.s32 %s298, 1
      %s300 = scalar_select %p297, %s298, %s299
      %p303 = pneg %p297
      %p304 = scmp.eq.s32.totalorder %s22, 3
      %p305 = por %p303, %p304
      %p306 = scmp.ne.s32.totalorder %s298, %s301
      %p307 = scmp.eq.s32.totalorder %s22, 0
      %p308 = por %p306, %p307
      %p309 = scmp.ne.s32.totalorder %s298, %s301
      %p310 = scmp.eq.s32.totalorder %s27, 3
      %p311 = por %p309, %p310
      %p312 = scmp.ne.s32.totalorder %s301, %s302
      %p313 = scmp.eq.s32.totalorder %s27, 0
      %p314 = por %p312, %p313
      %p315 = scmp.ne.s32.totalorder %s301, %s302
      %p316 = scmp.eq.s32.totalorder %s28, 3
      %p317 = por %p315, %p316
      %p319 = scmp.ne.s32.totalorder %s302, %s318
      %p320 = scmp.eq.s32.totalorder %s28, 0
      %p321 = por %p319, %p320
      %p322 = scmp.le.s32.totalorder 1, %s22
      %p323 = scmp.lt.s32.totalorder %s22, 5
      %p324 = pnand %p322, %p323
      %p325 = pneg %p324
      // Predicated region
      $region9: #{tpu_custom_call.1} parent=5 // pred_check
        _
      $region10: #{tpu_custom_call.1} parent=5 // pred_check_branch
        %327 = sbr.rel (%p324) target = $region12
      $region11: #{tpu_custom_call.1} parent=5 // pred_region
        %s328 = ssub.s32 %s22, 1
        // Predicated region
        $region13: #{tpu_custom_call.1} parent=11 // pred_check
          %p329 = pneg %p83
        $region14: #{tpu_custom_call.1} parent=11 // pred_check_branch
          %331 = sbr.rel (%p329) target = $region16
        $region15: #{tpu_custom_call.1} parent=11 // pred_region
          %s333 = ssub.s32 4096, 4096
          %334 = vsyncadd [#allocation5], %s333
          %s335 = sshll.u32 [#allocation4], 4
          %s336 = int_to_ptr.vmem [resolvable:$true] %s335
          %341 = dma.hbm_to_vmem [thread:$0]  %s1, 4096, %s336, [#allocation5], 128, 128, 8
        $region16: #{tpu_custom_call.1} parent=11 // pred_fallthru
          _
        // Predicated region
        $region17: #{tpu_custom_call.1} parent=11 // pred_check
          %p342 = pneg %p104
        $region18: #{tpu_custom_call.1} parent=11 // pred_check_branch
          %344 = sbr.rel (%p342) target = $region20
        $region19: #{tpu_custom_call.1} parent=11 // pred_region
          _
        $region20: #{tpu_custom_call.1} parent=11 // pred_fallthru
          _
        // Predicated region
        $region21: #{tpu_custom_call.1} parent=11 // pred_check
          %p345 = pneg %p125
        $region22: #{tpu_custom_call.1} parent=11 // pred_check_branch
          %347 = sbr.rel (%p345) target = $region24
        $region23: #{tpu_custom_call.1} parent=11 // pred_region
          %s349 = ssub.s32 4096, 4096
          %350 = vsyncadd [#allocation5], %s349
          %s351 = sshll.u32 [#allocation6], 4
          %s352 = int_to_ptr.vmem [resolvable:$true] %s351
          %357 = dma.hbm_to_vmem [thread:$0]  %s3, 4096, %s352, [#allocation5], 128, 128, 8
        $region24: #{tpu_custom_call.1} parent=11 // pred_fallthru
          _
        // Predicated region
        $region25: #{tpu_custom_call.1} parent=11 // pred_check
          %p358 = pneg %p146
        $region26: #{tpu_custom_call.1} parent=11 // pred_check_branch
          %360 = sbr.rel (%p358) target = $region28
        $region27: #{tpu_custom_call.1} parent=11 // pred_region
          _
        $region28: #{tpu_custom_call.1} parent=11 // pred_fallthru
          _
        // Predicated region
        $region29: #{tpu_custom_call.1} parent=11 // pred_check
          %p361 = pneg %p167
        $region30: #{tpu_custom_call.1} parent=11 // pred_check_branch
          %363 = sbr.rel (%p361) target = $region32
        $region31: #{tpu_custom_call.1} parent=11 // pred_region
          _
        $region32: #{tpu_custom_call.1} parent=11 // pred_fallthru
          _
        // Predicated region
        $region33: #{tpu_custom_call.1} parent=11 // pred_check
          %p364 = pneg %p188
        $region34: #{tpu_custom_call.1} parent=11 // pred_check_branch
          %366 = sbr.rel (%p364) target = $region36
        $region35: #{tpu_custom_call.1} parent=11 // pred_region
          _
        $region36: #{tpu_custom_call.1} parent=11 // pred_fallthru
          _
        // Predicated region
        $region37: #{tpu_custom_call.1} parent=11 // pred_check
          %p367 = pneg %p209
        $region38: #{tpu_custom_call.1} parent=11 // pred_check_branch
          %369 = sbr.rel (%p367) target = $region40
        $region39: #{tpu_custom_call.1} parent=11 // pred_region
          _
        $region40: #{tpu_custom_call.1} parent=11 // pred_fallthru
          _
        // Predicated region
        $region41: #{tpu_custom_call.1} parent=11 // pred_check
          %p370 = pneg %p230
        $region42: #{tpu_custom_call.1} parent=11 // pred_check_branch
          %372 = sbr.rel (%p370) target = $region44
        $region43: #{tpu_custom_call.1} parent=11 // pred_region
          _
        $region44: #{tpu_custom_call.1} parent=11 // pred_fallthru
          _
      $region12: #{tpu_custom_call.1} parent=5 // pred_fallthru
        _
      %p373 = scmp.lt.s32.totalorder %s22, 4
      // Predicated region
      $region45: #{tpu_custom_call.1} parent=5 // pred_check
        %p374 = pneg %p373
      $region46: #{tpu_custom_call.1} parent=5 // pred_check_branch
        %376 = sbr.rel (%p374) target = $region48
      $region47: #{tpu_custom_call.1} parent=5 // pred_region
        // Predicated region
        $region49: #{tpu_custom_call.1} parent=47 // pred_check
          %p377 = pneg %p56
        $region50: #{tpu_custom_call.1} parent=47 // pred_check_branch
          %379 = sbr.rel (%p377) target = $region52
        $region51: #{tpu_custom_call.1} parent=47 // pred_region
          %s380 = sand.u32 %s46, 1
          %s381 = scalar_lea.sflag [#allocation3], %s380
          %s382 = sand.u32 %s46, 1
          %s383 = smul.addr %s382, 256
          %s384 = scalar_lea.vmem [#allocation2], %s383
          %s385 = smul.u32 16, %s30
          %s387 = ssub.s32 4096, 4096
          %388 = vsyncadd %s381, %s387
          %s389 = smul.addr %s385, 2
          %s390 = smul.addr %s29, 64
          %s391 = sadd.s32 %s389, %s390
          %s392 = smul.addr %s391, 128
          %s393 = scalar_lea.hbm %s0, %s392
          %s394 = sshll.u32 %s384, 4
          %s395 = int_to_ptr.vmem [resolvable:$true] %s394
          %400 = dma.hbm_to_vmem [thread:$0]  %s393, 4096, %s395, %s381, 256, 256, 16
        $region52: #{tpu_custom_call.1} parent=47 // pred_fallthru
          _
      $region48: #{tpu_custom_call.1} parent=5 // pred_fallthru
        _
      %p401 = scmp.le.s32.totalorder 1, %s22
      %p402 = scmp.lt.s32.totalorder %s22, 5
      %p403 = pnand %p401, %p402
      %p404 = pneg %p403
      // Predicated region
      $region53: #{tpu_custom_call.1} parent=5 // pred_check
        _
      $region54: #{tpu_custom_call.1} parent=5 // pred_check_branch
        %406 = sbr.rel (%p403) target = $region56
      $region55: #{tpu_custom_call.1} parent=5 // pred_region
        %s407 = ssub.s32 %s22, 1
        %s408 = sand.u32 %s49, 1
        %s409 = scalar_lea.sflag [#allocation3], %s408
        %s410 = sand.u32 %s49, 1
        %s411 = smul.addr %s410, 256
        %s412 = scalar_lea.vmem [#allocation2], %s411
        // Predicated region
        $region57: #{tpu_custom_call.1} parent=55 // pred_check
          %p413 = pneg %p62
        $region58: #{tpu_custom_call.1} parent=55 // pred_check_branch
          %415 = sbr.rel (%p413) target = $region60
        $region59: #{tpu_custom_call.1} parent=55 // pred_region
          %416 = dma.done %s409, 4096
        $region60: #{tpu_custom_call.1} parent=55 // pred_fallthru
          _
        // Predicated region
        $region61: #{tpu_custom_call.1} parent=55 // pred_check
          %p417 = pneg %p83
        $region62: #{tpu_custom_call.1} parent=55 // pred_check_branch
          %419 = sbr.rel (%p417) target = $region64
        $region63: #{tpu_custom_call.1} parent=55 // pred_region
          %420 = dma.done [#allocation5], 4096
        $region64: #{tpu_custom_call.1} parent=55 // pred_fallthru
          _
        // Predicated region
        $region65: #{tpu_custom_call.1} parent=55 // pred_check
          %p421 = pneg %p125
        $region66: #{tpu_custom_call.1} parent=55 // pred_check_branch
          %423 = sbr.rel (%p421) target = $region68
        $region67: #{tpu_custom_call.1} parent=55 // pred_region
          %424 = dma.done [#allocation5], 4096
        $region68: #{tpu_custom_call.1} parent=55 // pred_fallthru
          _
        %s425 = sand.u32 %s49, 1
        %s426 = scalar_lea.sflag [#allocation3], %s425
        %s427 = sand.u32 %s49, 1
        %s428 = smul.addr %s427, 256
        %s429 = scalar_lea.vmem [#allocation2], %s428
        %p430 = pneg %p62
        %p431 = pneg %p59
        %p432 = pneg %p83
        %p433 = pneg %p80
        %p434 = pneg %p104
        %p435 = pneg %p101
        %p436 = pneg %p125
        %p437 = pneg %p122
        %p438 = pneg %p146
        %p439 = pneg %p143
        %p440 = pneg %p167
        %p441 = pneg %p164
        %p442 = pneg %p188
        %p443 = pneg %p185
        %p444 = pneg %p209
        %p445 = pneg %p206
        %p446 = pneg %p230
        %p447 = pneg %p227
        %p448 = pneg %p258
        %p449 = pneg %p255
        %s450 = sand.u32 %s245, 1
        %s451 = sand.u32 %s245, 1
        %s452 = smul.addr %s451, 256
        %s453 = scalar_lea.vmem [#allocation7], %s452
        %p454 = pneg %p286
        %p455 = pneg %p283
        %s456 = sand.u32 %s273, 1
        %s457 = sand.u32 %s273, 1
        %s458 = smul.addr %s457, 128
        %s459 = scalar_lea.vmem [#allocation8], %s458
        %p460 = pneg %p314
        %p461 = pneg %p311
        %s462 = sand.u32 %s301, 1
        %s463 = sand.u32 %s301, 1
        %s464 = smul.addr %s463, 128
        %s465 = scalar_lea.vmem [#allocation9], %s464
        %s466 = smul.u32 16, %s32
        %s467 = smul.u32 16, %s32
        %s468 = smul.u32 16, %s32
        %s469 = smul.u32 16, %s32
        %v470 = vld [vmem:[%s412] sm:$0xff]
        %v471 = vld [vmem:[%s412 + $0x8] sm:$0xff]
        %v472 = vld [vmem:[%s412 + $0x10] sm:$0xff]
        %v473 = vld [vmem:[%s412 + $0x18] sm:$0xff]
        %v474 = vld [vmem:[%s412 + $0x20] sm:$0xff]
        %v475 = vld [vmem:[%s412 + $0x28] sm:$0xff]
        %v476 = vld [vmem:[%s412 + $0x30] sm:$0xff]
        %v477 = vld [vmem:[%s412 + $0x38] sm:$0xff]
        %v478 = vld [vmem:[%s412 + $0x40] sm:$0xff]
        %v479 = vld [vmem:[%s412 + $0x48] sm:$0xff]
        %v480 = vld [vmem:[%s412 + $0x50] sm:$0xff]
        %v481 = vld [vmem:[%s412 + $0x58] sm:$0xff]
        %v482 = vld [vmem:[%s412 + $0x60] sm:$0xff]
        %v483 = vld [vmem:[%s412 + $0x68] sm:$0xff]
        %v484 = vld [vmem:[%s412 + $0x70] sm:$0xff]
        %v485 = vld [vmem:[%s412 + $0x78] sm:$0xff]
        %v486 = vld [vmem:[%s412 + $0x80] sm:$0xff]
        %v487 = vld [vmem:[%s412 + $0x88] sm:$0xff]
        %v488 = vld [vmem:[%s412 + $0x90] sm:$0xff]
        %v489 = vld [vmem:[%s412 + $0x98] sm:$0xff]
        %v490 = vld [vmem:[%s412 + $0xa0] sm:$0xff]
        %v491 = vld [vmem:[%s412 + $0xa8] sm:$0xff]
        %v492 = vld [vmem:[%s412 + $0xb0] sm:$0xff]
        %v493 = vld [vmem:[%s412 + $0xb8] sm:$0xff]
        %v494 = vld [vmem:[%s412 + $0xc0] sm:$0xff]
        %v495 = vld [vmem:[%s412 + $0xc8] sm:$0xff]
        %v496 = vld [vmem:[%s412 + $0xd0] sm:$0xff]
        %v497 = vld [vmem:[%s412 + $0xd8] sm:$0xff]
        %v498 = vld [vmem:[%s412 + $0xe0] sm:$0xff]
        %v499 = vld [vmem:[%s412 + $0xe8] sm:$0xff]
        %v500 = vld [vmem:[%s412 + $0xf0] sm:$0xff]
        %v501 = vld [vmem:[%s412 + $0xf8] sm:$0xff]
        %v502 = vpack.c.bf16 %v472, %v470
        %v503 = vpack.c.bf16 %v473, %v471
        %v504 = vpack.c.bf16 %v476, %v474
        %v505 = vpack.c.bf16 %v477, %v475
        %v506 = vpack.c.bf16 %v480, %v478
        %v507 = vpack.c.bf16 %v481, %v479
        %v508 = vpack.c.bf16 %v484, %v482
        %v509 = vpack.c.bf16 %v485, %v483
        %v510 = vpack.c.bf16 %v488, %v486
        %v511 = vpack.c.bf16 %v489, %v487
        %v512 = vpack.c.bf16 %v492, %v490
        %v513 = vpack.c.bf16 %v493, %v491
        %v514 = vpack.c.bf16 %v496, %v494
        %v515 = vpack.c.bf16 %v497, %v495
        %v516 = vpack.c.bf16 %v500, %v498
        %v517 = vpack.c.bf16 %v501, %v499
        %v518 = vld [vmem:[#allocation4] sm:$0xff]
        %v519 = vld [vmem:[#allocation4 + $0x8] sm:$0xff]
        %v520 = vld [vmem:[#allocation4 + $0x10] sm:$0xff]
        %v521 = vld [vmem:[#allocation4 + $0x18] sm:$0xff]
        %v522 = vld [vmem:[#allocation4 + $0x20] sm:$0xff]
        %v523 = vld [vmem:[#allocation4 + $0x28] sm:$0xff]
        %v524 = vld [vmem:[#allocation4 + $0x30] sm:$0xff]
        %v525 = vld [vmem:[#allocation4 + $0x38] sm:$0xff]
        %v526 = vld [vmem:[#allocation4 + $0x40] sm:$0xff]
        %v527 = vld [vmem:[#allocation4 + $0x48] sm:$0xff]
        %v528 = vld [vmem:[#allocation4 + $0x50] sm:$0xff]
        %v529 = vld [vmem:[#allocation4 + $0x58] sm:$0xff]
        %v530 = vld [vmem:[#allocation4 + $0x60] sm:$0xff]
        %v531 = vld [vmem:[#allocation4 + $0x68] sm:$0xff]
        %v532 = vld [vmem:[#allocation4 + $0x70] sm:$0xff]
        %v533 = vld [vmem:[#allocation4 + $0x78] sm:$0xff]
        %v534 = vld [vmem:[#allocation4 + $0x80] sm:$0xff]
        %v535 = vld [vmem:[#allocation4 + $0x88] sm:$0xff]
        %v536 = vld [vmem:[#allocation4 + $0x90] sm:$0xff]
        %v537 = vld [vmem:[#allocation4 + $0x98] sm:$0xff]
        %v538 = vld [vmem:[#allocation4 + $0xa0] sm:$0xff]
        %v539 = vld [vmem:[#allocation4 + $0xa8] sm:$0xff]
        %v540 = vld [vmem:[#allocation4 + $0xb0] sm:$0xff]
        %v541 = vld [vmem:[#allocation4 + $0xb8] sm:$0xff]
        %v542 = vld [vmem:[#allocation4 + $0xc0] sm:$0xff]
        %v543 = vld [vmem:[#allocation4 + $0xc8] sm:$0xff]
        %v544 = vld [vmem:[#allocation4 + $0xd0] sm:$0xff]
        %v545 = vld [vmem:[#allocation4 + $0xd8] sm:$0xff]
        %v546 = vld [vmem:[#allocation4 + $0xe0] sm:$0xff]
        %v547 = vld [vmem:[#allocation4 + $0xe8] sm:$0xff]
        %v548 = vld [vmem:[#allocation4 + $0xf0] sm:$0xff]
        %v549 = vld [vmem:[#allocation4 + $0xf8] sm:$0xff]
        %v550 = vld [vmem:[%s2] sm:$0x3]
        %v552 = vlaneseq
        %v553 = vshrl.u32 %v552, 7
        %v554 = vsub.s32 0, %v553
        %v555 = vrot.slane %v550, %v554
        %v556 = vlaneseq
        %v557 = vshrl.u32 %v556, 7
        %v558 = vsub.s32 1, %v557
        %v559 = vrot.slane %v550, %v558
        %v594 = vunpack.c.l.b16 %v518
        %v595 = vunpack.c.h.b16 %v518
        %v596 = vunpack.c.l.b16 %v519
        %v597 = vunpack.c.h.b16 %v519
        %v598 = vunpack.c.l.b16 %v520
        %v599 = vunpack.c.h.b16 %v520
        %v600 = vunpack.c.l.b16 %v521
        %v601 = vunpack.c.h.b16 %v521
        %v602 = vunpack.c.l.b16 %v522
        %v603 = vunpack.c.h.b16 %v522
        %v604 = vunpack.c.l.b16 %v523
        %v605 = vunpack.c.h.b16 %v523
        %v606 = vunpack.c.l.b16 %v524
        %v607 = vunpack.c.h.b16 %v524
        %v608 = vunpack.c.l.b16 %v525
        %v609 = vunpack.c.h.b16 %v525
        %v610 = vunpack.c.l.b16 %v526
        %v611 = vunpack.c.h.b16 %v526
        %v612 = vunpack.c.l.b16 %v527
        %v613 = vunpack.c.h.b16 %v527
        %v614 = vunpack.c.l.b16 %v528
        %v615 = vunpack.c.h.b16 %v528
        %v616 = vunpack.c.l.b16 %v529
        %v617 = vunpack.c.h.b16 %v529
        %v618 = vunpack.c.l.b16 %v530
        %v619 = vunpack.c.h.b16 %v530
        %v620 = vunpack.c.l.b16 %v531
        %v621 = vunpack.c.h.b16 %v531
        %v622 = vunpack.c.l.b16 %v532
        %v623 = vunpack.c.h.b16 %v532
        %v624 = vunpack.c.l.b16 %v533
        %v625 = vunpack.c.h.b16 %v533
        %v626 = vunpack.c.l.b16 %v534
        %v627 = vunpack.c.h.b16 %v534
        %v628 = vunpack.c.l.b16 %v535
        %v629 = vunpack.c.h.b16 %v535
        %v630 = vunpack.c.l.b16 %v536
        %v631 = vunpack.c.h.b16 %v536
        %v632 = vunpack.c.l.b16 %v537
        %v633 = vunpack.c.h.b16 %v537
        %v634 = vunpack.c.l.b16 %v538
        %v635 = vunpack.c.h.b16 %v538
        %v636 = vunpack.c.l.b16 %v539
        %v637 = vunpack.c.h.b16 %v539
        %v638 = vunpack.c.l.b16 %v540
        %v639 = vunpack.c.h.b16 %v540
        %v640 = vunpack.c.l.b16 %v541
        %v641 = vunpack.c.h.b16 %v541
        %v642 = vunpack.c.l.b16 %v542
        %v643 = vunpack.c.h.b16 %v542
        %v644 = vunpack.c.l.b16 %v543
        %v645 = vunpack.c.h.b16 %v543
        %v646 = vunpack.c.l.b16 %v544
        %v647 = vunpack.c.h.b16 %v544
        %v648 = vunpack.c.l.b16 %v545
        %v649 = vunpack.c.h.b16 %v545
        %v650 = vunpack.c.l.b16 %v546
        %v651 = vunpack.c.h.b16 %v546
        %v652 = vunpack.c.l.b16 %v547
        %v653 = vunpack.c.h.b16 %v547
        %v654 = vunpack.c.l.b16 %v548
        %v655 = vunpack.c.h.b16 %v548
        %v656 = vunpack.c.l.b16 %v549
        %v657 = vunpack.c.h.b16 %v549
        %v658 = vpack.c.b16 %v596, %v594
        %v659 = vpack.c.b16 %v597, %v595
        %v660 = vpack.c.b16 %v600, %v598
        %v661 = vpack.c.b16 %v601, %v599
        %v662 = vpack.c.b16 %v604, %v602
        %v663 = vpack.c.b16 %v605, %v603
        %v664 = vpack.c.b16 %v608, %v606
        %v665 = vpack.c.b16 %v609, %v607
        %v666 = vpack.c.b16 %v612, %v610
        %v667 = vpack.c.b16 %v613, %v611
        %v668 = vpack.c.b16 %v616, %v614
        %v669 = vpack.c.b16 %v617, %v615
        %v670 = vpack.c.b16 %v620, %v618
        %v671 = vpack.c.b16 %v621, %v619
        %v672 = vpack.c.b16 %v624, %v622
        %v673 = vpack.c.b16 %v625, %v623
        %v674 = vpack.c.b16 %v628, %v626
        %v675 = vpack.c.b16 %v629, %v627
        %v676 = vpack.c.b16 %v632, %v630
        %v677 = vpack.c.b16 %v633, %v631
        %v678 = vpack.c.b16 %v636, %v634
        %v679 = vpack.c.b16 %v637, %v635
        %v680 = vpack.c.b16 %v640, %v638
        %v681 = vpack.c.b16 %v641, %v639
        %v682 = vpack.c.b16 %v644, %v642
        %v683 = vpack.c.b16 %v645, %v643
        %v684 = vpack.c.b16 %v648, %v646
        %v685 = vpack.c.b16 %v649, %v647
        %v686 = vpack.c.b16 %v652, %v650
        %v687 = vpack.c.b16 %v653, %v651
        %v688 = vpack.c.b16 %v656, %v654
        %v689 = vpack.c.b16 %v657, %v655
        %722 = vmatprep.subr.bf16.mxu0 %v659
        %723 = vmatpush1.bf16.msra.mxu0 %v658
        %724 = vmatprep.subr.bf16.mxu0 %v661
        %725 = vmatpush1.bf16.msra.mxu0 %v660
        %726 = vmatprep.subr.bf16.mxu0 %v663
        %727 = vmatpush1.bf16.msra.mxu0 %v662
        %728 = vmatprep.subr.bf16.mxu0 %v665
        %729 = vmatpush1.bf16.msra.mxu0 %v664
        %730 = vmatprep.subr.bf16.mxu0 %v667
        %731 = vmatpush1.bf16.msra.mxu0 %v666
        %732 = vmatprep.subr.bf16.mxu0 %v669
        %733 = vmatpush1.bf16.msra.mxu0 %v668
        %734 = vmatprep.subr.bf16.mxu0 %v671
        %735 = vmatpush1.bf16.msra.mxu0 %v670
        %736 = vmatprep.subr.bf16.mxu0 %v673
        %737 = vmatpush1.bf16.msra.mxu0 %v672
        %738 = vmatprep.subr.bf16.mxu0 %v675
        %739 = vmatpush1.bf16.msra.mxu0 %v674
        %740 = vmatprep.subr.bf16.mxu0 %v677
        %741 = vmatpush1.bf16.msra.mxu0 %v676
        %742 = vmatprep.subr.bf16.mxu0 %v679
        %743 = vmatpush1.bf16.msra.mxu0 %v678
        %744 = vmatprep.subr.bf16.mxu0 %v681
        %745 = vmatpush1.bf16.msra.mxu0 %v680
        %746 = vmatprep.subr.bf16.mxu0 %v683
        %747 = vmatpush1.bf16.msra.mxu0 %v682
        %748 = vmatprep.subr.bf16.mxu0 %v685
        %749 = vmatpush1.bf16.msra.mxu0 %v684
        %750 = vmatprep.subr.bf16.mxu0 %v687
        %751 = vmatpush1.bf16.msra.mxu0 %v686
        %752 = vmatprep.subr.bf16.mxu0 %v689
        %753 = vmatpush1.bf16.msra.mxu0 %v688
        %754 = vmatprep.mubr.bf16.mxu0 %v503
        %755 = vmatmul.mubr.bf16.gmra.mrb[0].mxu0 %v502
        %v756 = vpop.f32.mrb[0].mxu0
        %v757 = vadd.f32 %v555, %v756
        %v758 = vpop.f32.mrb[0].mxu0
        %v759 = vadd.f32 %v559, %v758
        %v760 = vpop.f32.mrb[0].mxu0
        %v761 = vadd.f32 %v555, %v760
        %v762 = vpop.f32.mrb[0].mxu0
        %v763 = vadd.f32 %v559, %v762
        %764 = vmatprep.mubr.bf16.mxu0 %v505
        %765 = vmatmul.mubr.bf16.gmra.mrb[0].mxu0 %v504
        %v766 = vpop.f32.mrb[0].mxu0
        %v767 = vadd.f32 %v555, %v766
        %v768 = vpop.f32.mrb[0].mxu0
        %v769 = vadd.f32 %v559, %v768
        %v770 = vpop.f32.mrb[0].mxu0
        %v771 = vadd.f32 %v555, %v770
        %v772 = vpop.f32.mrb[0].mxu0
        %v773 = vadd.f32 %v559, %v772
        %774 = vmatprep.mubr.bf16.mxu0 %v507
        %775 = vmatmul.mubr.bf16.gmra.mrb[0].mxu0 %v506
        %v776 = vpop.f32.mrb[0].mxu0
        %v777 = vadd.f32 %v555, %v776
        %v778 = vpop.f32.mrb[0].mxu0
        %v779 = vadd.f32 %v559, %v778
        %v780 = vpop.f32.mrb[0].mxu0
        %v781 = vadd.f32 %v555, %v780
        %v782 = vpop.f32.mrb[0].mxu0
        %v783 = vadd.f32 %v559, %v782
        %784 = vmatprep.mubr.bf16.mxu0 %v509
        %785 = vmatmul.mubr.bf16.gmra.mrb[0].mxu0 %v508
        %v786 = vpop.f32.mrb[0].mxu0
        %v787 = vadd.f32 %v555, %v786
        %v788 = vpop.f32.mrb[0].mxu0
        %v789 = vadd.f32 %v559, %v788
        %v790 = vpop.f32.mrb[0].mxu0
        %v791 = vadd.f32 %v555, %v790
        %v792 = vpop.f32.mrb[0].mxu0
        %v793 = vadd.f32 %v559, %v792
        %794 = vmatprep.mubr.bf16.mxu0 %v511
        %795 = vmatmul.mubr.bf16.gmra.mrb[0].mxu0 %v510
        %v796 = vpop.f32.mrb[0].mxu0
        %v797 = vadd.f32 %v555, %v796
        %v798 = vpop.f32.mrb[0].mxu0
        %v799 = vadd.f32 %v559, %v798
        %v800 = vpop.f32.mrb[0].mxu0
        %v801 = vadd.f32 %v555, %v800
        %v802 = vpop.f32.mrb[0].mxu0
        %v803 = vadd.f32 %v559, %v802
        %804 = vmatprep.mubr.bf16.mxu0 %v513
        %805 = vmatmul.mubr.bf16.gmra.mrb[0].mxu0 %v512
        %v806 = vpop.f32.mrb[0].mxu0
        %v807 = vadd.f32 %v555, %v806
        %v808 = vpop.f32.mrb[0].mxu0
        %v809 = vadd.f32 %v559, %v808
        %v810 = vpop.f32.mrb[0].mxu0
        %v811 = vadd.f32 %v555, %v810
        %v812 = vpop.f32.mrb[0].mxu0
        %v813 = vadd.f32 %v559, %v812
        %814 = vmatprep.mubr.bf16.mxu0 %v515
        %815 = vmatmul.mubr.bf16.gmra.mrb[0].mxu0 %v514
        %v816 = vpop.f32.mrb[0].mxu0
        %v817 = vadd.f32 %v555, %v816
        %v818 = vpop.f32.mrb[0].mxu0
        %v819 = vadd.f32 %v559, %v818
        %v820 = vpop.f32.mrb[0].mxu0
        %v821 = vadd.f32 %v555, %v820
        %v822 = vpop.f32.mrb[0].mxu0
        %v823 = vadd.f32 %v559, %v822
        %824 = vmatprep.mubr.bf16.mxu0 %v517
        %825 = vmatmul.mubr.bf16.gmra.mrb[0].mxu0 %v516
        %v826 = vpop.f32.mrb[0].mxu0
        %v827 = vadd.f32 %v555, %v826
        %v828 = vpop.f32.mrb[0].mxu0
        %v829 = vadd.f32 %v559, %v828
        %v830 = vpop.f32.mrb[0].mxu0
        %v831 = vadd.f32 %v555, %v830
        %v832 = vpop.f32.mrb[0].mxu0
        %v833 = vadd.f32 %v559, %v832
        %834 = vdwg.mxu0
        %v835 = vld [vmem:[#allocation6] sm:$0xff]
        %v836 = vld [vmem:[#allocation6 + $0x8] sm:$0xff]
        %v837 = vld [vmem:[#allocation6 + $0x10] sm:$0xff]
        %v838 = vld [vmem:[#allocation6 + $0x18] sm:$0xff]
        %v839 = vld [vmem:[#allocation6 + $0x20] sm:$0xff]
        %v840 = vld [vmem:[#allocation6 + $0x28] sm:$0xff]
        %v841 = vld [vmem:[#allocation6 + $0x30] sm:$0xff]
        %v842 = vld [vmem:[#allocation6 + $0x38] sm:$0xff]
        %v843 = vld [vmem:[#allocation6 + $0x40] sm:$0xff]
        %v844 = vld [vmem:[#allocation6 + $0x48] sm:$0xff]
        %v845 = vld [vmem:[#allocation6 + $0x50] sm:$0xff]
        %v846 = vld [vmem:[#allocation6 + $0x58] sm:$0xff]
        %v847 = vld [vmem:[#allocation6 + $0x60] sm:$0xff]
        %v848 = vld [vmem:[#allocation6 + $0x68] sm:$0xff]
        %v849 = vld [vmem:[#allocation6 + $0x70] sm:$0xff]
        %v850 = vld [vmem:[#allocation6 + $0x78] sm:$0xff]
        %v851 = vld [vmem:[#allocation6 + $0x80] sm:$0xff]
        %v852 = vld [vmem:[#allocation6 + $0x88] sm:$0xff]
        %v853 = vld [vmem:[#allocation6 + $0x90] sm:$0xff]
        %v854 = vld [vmem:[#allocation6 + $0x98] sm:$0xff]
        %v855 = vld [vmem:[#allocation6 + $0xa0] sm:$0xff]
        %v856 = vld [vmem:[#allocation6 + $0xa8] sm:$0xff]
        %v857 = vld [vmem:[#allocation6 + $0xb0] sm:$0xff]
        %v858 = vld [vmem:[#allocation6 + $0xb8] sm:$0xff]
        %v859 = vld [vmem:[#allocation6 + $0xc0] sm:$0xff]
        %v860 = vld [vmem:[#allocation6 + $0xc8] sm:$0xff]
        %v861 = vld [vmem:[#allocation6 + $0xd0] sm:$0xff]
        %v862 = vld [vmem:[#allocation6 + $0xd8] sm:$0xff]
        %v863 = vld [vmem:[#allocation6 + $0xe0] sm:$0xff]
        %v864 = vld [vmem:[#allocation6 + $0xe8] sm:$0xff]
        %v865 = vld [vmem:[#allocation6 + $0xf0] sm:$0xff]
        %v866 = vld [vmem:[#allocation6 + $0xf8] sm:$0xff]
        %v867 = vld [vmem:[%s4] sm:$0x3]
        %v869 = vlaneseq
        %v870 = vshrl.u32 %v869, 7
        %v871 = vsub.s32 0, %v870
        %v872 = vrot.slane %v867, %v871
        %v873 = vlaneseq
        %v874 = vshrl.u32 %v873, 7
        %v875 = vsub.s32 1, %v874
        %v876 = vrot.slane %v867, %v875
        %v911 = vunpack.c.l.b16 %v835
        %v912 = vunpack.c.h.b16 %v835
        %v913 = vunpack.c.l.b16 %v836
        %v914 = vunpack.c.h.b16 %v836
        %v915 = vunpack.c.l.b16 %v837
        %v916 = vunpack.c.h.b16 %v837
        %v917 = vunpack.c.l.b16 %v838
        %v918 = vunpack.c.h.b16 %v838
        %v919 = vunpack.c.l.b16 %v839
        %v920 = vunpack.c.h.b16 %v839
        %v921 = vunpack.c.l.b16 %v840
        %v922 = vunpack.c.h.b16 %v840
        %v923 = vunpack.c.l.b16 %v841
        %v924 = vunpack.c.h.b16 %v841
        %v925 = vunpack.c.l.b16 %v842
        %v926 = vunpack.c.h.b16 %v842
        %v927 = vunpack.c.l.b16 %v843
        %v928 = vunpack.c.h.b16 %v843
        %v929 = vunpack.c.l.b16 %v844
        %v930 = vunpack.c.h.b16 %v844
        %v931 = vunpack.c.l.b16 %v845
        %v932 = vunpack.c.h.b16 %v845
        %v933 = vunpack.c.l.b16 %v846
        %v934 = vunpack.c.h.b16 %v846
        %v935 = vunpack.c.l.b16 %v847
        %v936 = vunpack.c.h.b16 %v847
        %v937 = vunpack.c.l.b16 %v848
        %v938 = vunpack.c.h.b16 %v848
        %v939 = vunpack.c.l.b16 %v849
        %v940 = vunpack.c.h.b16 %v849
        %v941 = vunpack.c.l.b16 %v850
        %v942 = vunpack.c.h.b16 %v850
        %v943 = vunpack.c.l.b16 %v851
        %v944 = vunpack.c.h.b16 %v851
        %v945 = vunpack.c.l.b16 %v852
        %v946 = vunpack.c.h.b16 %v852
        %v947 = vunpack.c.l.b16 %v853
        %v948 = vunpack.c.h.b16 %v853
        %v949 = vunpack.c.l.b16 %v854
        %v950 = vunpack.c.h.b16 %v854
        %v951 = vunpack.c.l.b16 %v855
        %v952 = vunpack.c.h.b16 %v855
        %v953 = vunpack.c.l.b16 %v856
        %v954 = vunpack.c.h.b16 %v856
        %v955 = vunpack.c.l.b16 %v857
        %v956 = vunpack.c.h.b16 %v857
        %v957 = vunpack.c.l.b16 %v858
        %v958 = vunpack.c.h.b16 %v858
        %v959 = vunpack.c.l.b16 %v859
        %v960 = vunpack.c.h.b16 %v859
        %v961 = vunpack.c.l.b16 %v860
        %v962 = vunpack.c.h.b16 %v860
        %v963 = vunpack.c.l.b16 %v861
        %v964 = vunpack.c.h.b16 %v861
        %v965 = vunpack.c.l.b16 %v862
        %v966 = vunpack.c.h.b16 %v862
        %v967 = vunpack.c.l.b16 %v863
        %v968 = vunpack.c.h.b16 %v863
        %v969 = vunpack.c.l.b16 %v864
        %v970 = vunpack.c.h.b16 %v864
        %v971 = vunpack.c.l.b16 %v865
        %v972 = vunpack.c.h.b16 %v865
        %v973 = vunpack.c.l.b16 %v866
        %v974 = vunpack.c.h.b16 %v866
        %v975 = vpack.c.b16 %v913, %v911
        %v976 = vpack.c.b16 %v914, %v912
        %v977 = vpack.c.b16 %v917, %v915
        %v978 = vpack.c.b16 %v918, %v916
        %v979 = vpack.c.b16 %v921, %v919
        %v980 = vpack.c.b16 %v922, %v920
        %v981 = vpack.c.b16 %v925, %v923
        %v982 = vpack.c.b16 %v926, %v924
        %v983 = vpack.c.b16 %v929, %v927
        %v984 = vpack.c.b16 %v930, %v928
        %v985 = vpack.c.b16 %v933, %v931
        %v986 = vpack.c.b16 %v934, %v932
        %v987 = vpack.c.b16 %v937, %v935
        %v988 = vpack.c.b16 %v938, %v936
        %v989 = vpack.c.b16 %v941, %v939
        %v990 = vpack.c.b16 %v942, %v940
        %v991 = vpack.c.b16 %v945, %v943
        %v992 = vpack.c.b16 %v946, %v944
        %v993 = vpack.c.b16 %v949, %v947
        %v994 = vpack.c.b16 %v950, %v948
        %v995 = vpack.c.b16 %v953, %v951
        %v996 = vpack.c.b16 %v954, %v952
        %v997 = vpack.c.b16 %v957, %v955
        %v998 = vpack.c.b16 %v958, %v956
        %v999 = vpack.c.b16 %v961, %v959
        %v1000 = vpack.c.b16 %v962, %v960
        %v1001 = vpack.c.b16 %v965, %v963
        %v1002 = vpack.c.b16 %v966, %v964
        %v1003 = vpack.c.b16 %v969, %v967
        %v1004 = vpack.c.b16 %v970, %v968
        %v1005 = vpack.c.b16 %v973, %v971
        %v1006 = vpack.c.b16 %v974, %v972
        %1039 = vmatprep.subr.bf16.mxu0 %v976
        %1040 = vmatpush1.bf16.msra.mxu0 %v975
        %1041 = vmatprep.subr.bf16.mxu0 %v978
        %1042 = vmatpush1.bf16.msra.mxu0 %v977
        %1043 = vmatprep.subr.bf16.mxu0 %v980
        %1044 = vmatpush1.bf16.msra.mxu0 %v979
        %1045 = vmatprep.subr.bf16.mxu0 %v982
        %1046 = vmatpush1.bf16.msra.mxu0 %v981
        %1047 = vmatprep.subr.bf16.mxu0 %v984
        %1048 = vmatpush1.bf16.msra.mxu0 %v983
        %1049 = vmatprep.subr.bf16.mxu0 %v986
        %1050 = vmatpush1.bf16.msra.mxu0 %v985
        %1051 = vmatprep.subr.bf16.mxu0 %v988
        %1052 = vmatpush1.bf16.msra.mxu0 %v987
        %1053 = vmatprep.subr.bf16.mxu0 %v990
        %1054 = vmatpush1.bf16.msra.mxu0 %v989
        %1055 = vmatprep.subr.bf16.mxu0 %v992
        %1056 = vmatpush1.bf16.msra.mxu0 %v991
        %1057 = vmatprep.subr.bf16.mxu0 %v994
        %1058 = vmatpush1.bf16.msra.mxu0 %v993
        %1059 = vmatprep.subr.bf16.mxu0 %v996
        %1060 = vmatpush1.bf16.msra.mxu0 %v995
        %1061 = vmatprep.subr.bf16.mxu0 %v998
        %1062 = vmatpush1.bf16.msra.mxu0 %v997
        %1063 = vmatprep.subr.bf16.mxu0 %v1000
        %1064 = vmatpush1.bf16.msra.mxu0 %v999
        %1065 = vmatprep.subr.bf16.mxu0 %v1002
        %1066 = vmatpush1.bf16.msra.mxu0 %v1001
        %1067 = vmatprep.subr.bf16.mxu0 %v1004
        %1068 = vmatpush1.bf16.msra.mxu0 %v1003
        %1069 = vmatprep.subr.bf16.mxu0 %v1006
        %1070 = vmatpush1.bf16.msra.mxu0 %v1005
        %1071 = vmatprep.mubr.bf16.mxu0 %v503
        %1072 = vmatmul.mubr.bf16.gmra.mrb[0].mxu0 %v502
        %v1073 = vpop.f32.mrb[0].mxu0
        %v1074 = vadd.f32 %v872, %v1073
        %v1075 = vpop.f32.mrb[0].mxu0
        %v1076 = vadd.f32 %v876, %v1075
        %v1077 = vpop.f32.mrb[0].mxu0
        %v1078 = vadd.f32 %v872, %v1077
        %v1079 = vpop.f32.mrb[0].mxu0
        %v1080 = vadd.f32 %v876, %v1079
        %1081 = vmatprep.mubr.bf16.mxu0 %v505
        %1082 = vmatmul.mubr.bf16.gmra.mrb[0].mxu0 %v504
        %v1083 = vpop.f32.mrb[0].mxu0
        %v1084 = vadd.f32 %v872, %v1083
        %v1085 = vpop.f32.mrb[0].mxu0
        %v1086 = vadd.f32 %v876, %v1085
        %v1087 = vpop.f32.mrb[0].mxu0
        %v1088 = vadd.f32 %v872, %v1087
        %v1089 = vpop.f32.mrb[0].mxu0
        %v1090 = vadd.f32 %v876, %v1089
        %1091 = vmatprep.mubr.bf16.mxu0 %v507
        %1092 = vmatmul.mubr.bf16.gmra.mrb[0].mxu0 %v506
        %v1093 = vpop.f32.mrb[0].mxu0
        %v1094 = vadd.f32 %v872, %v1093
        %v1095 = vpop.f32.mrb[0].mxu0
        %v1096 = vadd.f32 %v876, %v1095
        %v1097 = vpop.f32.mrb[0].mxu0
        %v1098 = vadd.f32 %v872, %v1097
        %v1099 = vpop.f32.mrb[0].mxu0
        %v1100 = vadd.f32 %v876, %v1099
        %1101 = vmatprep.mubr.bf16.mxu0 %v509
        %1102 = vmatmul.mubr.bf16.gmra.mrb[0].mxu0 %v508
        %v1103 = vpop.f32.mrb[0].mxu0
        %v1104 = vadd.f32 %v872, %v1103
        %v1105 = vpop.f32.mrb[0].mxu0
        %v1106 = vadd.f32 %v876, %v1105
        %v1107 = vpop.f32.mrb[0].mxu0
        %v1108 = vadd.f32 %v872, %v1107
        %v1109 = vpop.f32.mrb[0].mxu0
        %v1110 = vadd.f32 %v876, %v1109
        %1111 = vmatprep.mubr.bf16.mxu0 %v511
        %1112 = vmatmul.mubr.bf16.gmra.mrb[0].mxu0 %v510
        %v1113 = vpop.f32.mrb[0].mxu0
        %v1114 = vadd.f32 %v872, %v1113
        %v1115 = vpop.f32.mrb[0].mxu0
        %v1116 = vadd.f32 %v876, %v1115
        %v1117 = vpop.f32.mrb[0].mxu0
        %v1118 = vadd.f32 %v872, %v1117
        %v1119 = vpop.f32.mrb[0].mxu0
        %v1120 = vadd.f32 %v876, %v1119
        %1121 = vmatprep.mubr.bf16.mxu0 %v513
        %1122 = vmatmul.mubr.bf16.gmra.mrb[0].mxu0 %v512
        %v1123 = vpop.f32.mrb[0].mxu0
        %v1124 = vadd.f32 %v872, %v1123
        %v1125 = vpop.f32.mrb[0].mxu0
        %v1126 = vadd.f32 %v876, %v1125
        %v1127 = vpop.f32.mrb[0].mxu0
        %v1128 = vadd.f32 %v872, %v1127
        %v1129 = vpop.f32.mrb[0].mxu0
        %v1130 = vadd.f32 %v876, %v1129
        %1131 = vmatprep.mubr.bf16.mxu0 %v515
        %1132 = vmatmul.mubr.bf16.gmra.mrb[0].mxu0 %v514
        %v1133 = vpop.f32.mrb[0].mxu0
        %v1134 = vadd.f32 %v872, %v1133
        %v1135 = vpop.f32.mrb[0].mxu0
        %v1136 = vadd.f32 %v876, %v1135
        %v1137 = vpop.f32.mrb[0].mxu0
        %v1138 = vadd.f32 %v872, %v1137
        %v1139 = vpop.f32.mrb[0].mxu0
        %v1140 = vadd.f32 %v876, %v1139
        %1141 = vmatprep.mubr.bf16.mxu0 %v517
        %1142 = vmatmul.mubr.bf16.gmra.mrb[0].mxu0 %v516
        %v1143 = vpop.f32.mrb[0].mxu0
        %v1144 = vadd.f32 %v872, %v1143
        %v1145 = vpop.f32.mrb[0].mxu0
        %v1146 = vadd.f32 %v876, %v1145
        %v1147 = vpop.f32.mrb[0].mxu0
        %v1148 = vadd.f32 %v872, %v1147
        %v1149 = vpop.f32.mrb[0].mxu0
        %v1150 = vadd.f32 %v876, %v1149
        %1151 = vdwg.mxu0
        %v1152 = vmul.f32 %v757, %v757
        %v1153 = vmul.f32 %v761, %v761
        %v1154 = vmul.f32 %v767, %v767
        %v1155 = vmul.f32 %v771, %v771
        %v1156 = vmul.f32 %v777, %v777
        %v1157 = vmul.f32 %v781, %v781
        %v1158 = vmul.f32 %v787, %v787
        %v1159 = vmul.f32 %v791, %v791
        %v1160 = vmul.f32 %v797, %v797
        %v1161 = vmul.f32 %v801, %v801
        %v1162 = vmul.f32 %v807, %v807
        %v1163 = vmul.f32 %v811, %v811
        %v1164 = vmul.f32 %v817, %v817
        %v1165 = vmul.f32 %v821, %v821
        %v1166 = vmul.f32 %v827, %v827
        %v1167 = vmul.f32 %v831, %v831
        %vm1168 = vcmask 523264
        %v1169 = vsel %vm1168, %v1152, 0.0
        %1170 = vadd.xlane.f32.xlu0 %v1169
        %v1171 = vpop.xlane.xlu0 %1170
        %v1172 = vsel %vm1168, %v1153, 0.0
        %1173 = vadd.xlane.f32.xlu0 %v1172
        %v1174 = vpop.xlane.xlu0 %1173
        %v1175 = vsel %vm1168, %v1154, 0.0
        %1176 = vadd.xlane.f32.xlu0 %v1175
        %v1177 = vpop.xlane.xlu0 %1176
        %v1178 = vsel %vm1168, %v1155, 0.0
        %1179 = vadd.xlane.f32.xlu0 %v1178
        %v1180 = vpop.xlane.xlu0 %1179
        %v1181 = vsel %vm1168, %v1156, 0.0
        %1182 = vadd.xlane.f32.xlu0 %v1181
        %v1183 = vpop.xlane.xlu0 %1182
        %v1184 = vsel %vm1168, %v1157, 0.0
        %1185 = vadd.xlane.f32.xlu0 %v1184
        %v1186 = vpop.xlane.xlu0 %1185
        %v1187 = vsel %vm1168, %v1158, 0.0
        %1188 = vadd.xlane.f32.xlu0 %v1187
        %v1189 = vpop.xlane.xlu0 %1188
        %v1190 = vsel %vm1168, %v1159, 0.0
        %1191 = vadd.xlane.f32.xlu0 %v1190
        %v1192 = vpop.xlane.xlu0 %1191
        %v1193 = vsel %vm1168, %v1160, 0.0
        %1194 = vadd.xlane.f32.xlu0 %v1193
        %v1195 = vpop.xlane.xlu0 %1194
        %v1196 = vsel %vm1168, %v1161, 0.0
        %1197 = vadd.xlane.f32.xlu0 %v1196
        %v1198 = vpop.xlane.xlu0 %1197
        %v1199 = vsel %vm1168, %v1162, 0.0
        %1200 = vadd.xlane.f32.xlu0 %v1199
        %v1201 = vpop.xlane.xlu0 %1200
        %v1202 = vsel %vm1168, %v1163, 0.0
        %1203 = vadd.xlane.f32.xlu0 %v1202
        %v1204 = vpop.xlane.xlu0 %1203
        %v1205 = vsel %vm1168, %v1164, 0.0
        %1206 = vadd.xlane.f32.xlu0 %v1205
        %v1207 = vpop.xlane.xlu0 %1206
        %v1208 = vsel %vm1168, %v1165, 0.0
        %1209 = vadd.xlane.f32.xlu0 %v1208
        %v1210 = vpop.xlane.xlu0 %1209
        %v1211 = vsel %vm1168, %v1166, 0.0
        %1212 = vadd.xlane.f32.xlu0 %v1211
        %v1213 = vpop.xlane.xlu0 %1212
        %v1214 = vsel %vm1168, %v1167, 0.0
        %1215 = vadd.xlane.f32.xlu0 %v1214
        %v1216 = vpop.xlane.xlu0 %1215
        %v1217 = vrcp.pop 64.0
        %v1218 = vmul.f32 %v1171, %v1217
        %v1219 = vmul.f32 %v1174, %v1217
        %v1220 = vmul.f32 %v1177, %v1217
        %v1221 = vmul.f32 %v1180, %v1217
        %v1222 = vmul.f32 %v1183, %v1217
        %v1223 = vmul.f32 %v1186, %v1217
        %v1224 = vmul.f32 %v1189, %v1217
        %v1225 = vmul.f32 %v1192, %v1217
        %v1226 = vmul.f32 %v1195, %v1217
        %v1227 = vmul.f32 %v1198, %v1217
        %v1228 = vmul.f32 %v1201, %v1217
        %v1229 = vmul.f32 %v1204, %v1217
        %v1230 = vmul.f32 %v1207, %v1217
        %v1231 = vmul.f32 %v1210, %v1217
        %v1232 = vmul.f32 %v1213, %v1217
        %v1233 = vmul.f32 %v1216, %v1217
        %v1234 = vadd.f32 %v1218, 1.1920929e-07
        %v1235 = vadd.f32 %v1219, 1.1920929e-07
        %v1236 = vadd.f32 %v1220, 1.1920929e-07
        %v1237 = vadd.f32 %v1221, 1.1920929e-07
        %v1238 = vadd.f32 %v1222, 1.1920929e-07
        %v1239 = vadd.f32 %v1223, 1.1920929e-07
        %v1240 = vadd.f32 %v1224, 1.1920929e-07
        %v1241 = vadd.f32 %v1225, 1.1920929e-07
        %v1242 = vadd.f32 %v1226, 1.1920929e-07
        %v1243 = vadd.f32 %v1227, 1.1920929e-07
        %v1244 = vadd.f32 %v1228, 1.1920929e-07
        %v1245 = vadd.f32 %v1229, 1.1920929e-07
        %v1246 = vadd.f32 %v1230, 1.1920929e-07
        %v1247 = vadd.f32 %v1231, 1.1920929e-07
        %v1248 = vadd.f32 %v1232, 1.1920929e-07
        %v1249 = vadd.f32 %v1233, 1.1920929e-07
        %v1250 = vrsqrt.pop %v1234
        %v1251 = vrsqrt.pop %v1235
        %v1252 = vrsqrt.pop %v1236
        %v1253 = vrsqrt.pop %v1237
        %v1254 = vrsqrt.pop %v1238
        %v1255 = vrsqrt.pop %v1239
        %v1256 = vrsqrt.pop %v1240
        %v1257 = vrsqrt.pop %v1241
        %v1258 = vrsqrt.pop %v1242
        %v1259 = vrsqrt.pop %v1243
        %v1260 = vrsqrt.pop %v1244
        %v1261 = vrsqrt.pop %v1245
        %v1262 = vrsqrt.pop %v1246
        %v1263 = vrsqrt.pop %v1247
        %v1264 = vrsqrt.pop %v1248
        %v1265 = vrsqrt.pop %v1249
        %v1266 = vmul.f32 %v757, %v1250
        %v1267 = vmul.f32 %v761, %v1251
        %v1268 = vmul.f32 %v767, %v1252
        %v1269 = vmul.f32 %v771, %v1253
        %v1270 = vmul.f32 %v777, %v1254
        %v1271 = vmul.f32 %v781, %v1255
        %v1272 = vmul.f32 %v787, %v1256
        %v1273 = vmul.f32 %v791, %v1257
        %v1274 = vmul.f32 %v797, %v1258
        %v1275 = vmul.f32 %v801, %v1259
        %v1276 = vmul.f32 %v807, %v1260
        %v1277 = vmul.f32 %v811, %v1261
        %v1278 = vmul.f32 %v817, %v1262
        %v1279 = vmul.f32 %v821, %v1263
        %v1280 = vmul.f32 %v827, %v1264
        %v1281 = vmul.f32 %v831, %v1265
        %v1282 = vld [vmem:[%s5] sm:$0x1]
        %v1283 = vld [vmem:[%s6] sm:$0x1]
        %v1284 = vlaneseq
        %v1285 = vshrl.u32 %v1284, 7
        %v1286 = vsub.s32 0, %v1285
        %v1287 = vrot.slane %v1282, %v1286
        %v1288 = vmul.f32 %v1266, %v1287
        %v1289 = vmul.f32 %v1267, %v1287
        %v1290 = vmul.f32 %v1268, %v1287
        %v1291 = vmul.f32 %v1269, %v1287
        %v1292 = vmul.f32 %v1270, %v1287
        %v1293 = vmul.f32 %v1271, %v1287
        %v1294 = vmul.f32 %v1272, %v1287
        %v1295 = vmul.f32 %v1273, %v1287
        %v1296 = vmul.f32 %v1274, %v1287
        %v1297 = vmul.f32 %v1275, %v1287
        %v1298 = vmul.f32 %v1276, %v1287
        %v1299 = vmul.f32 %v1277, %v1287
        %v1300 = vmul.f32 %v1278, %v1287
        %v1301 = vmul.f32 %v1279, %v1287
        %v1302 = vmul.f32 %v1280, %v1287
        %v1303 = vmul.f32 %v1281, %v1287
        %v1304 = vlaneseq
        %v1305 = vshrl.u32 %v1304, 7
        %v1306 = vsub.s32 0, %v1305
        %v1307 = vrot.slane %v1283, %v1306
        %1309 = vrot.lane.b32.xlu0 %v1307, 32
        %v1310 = vpop.permute.xlu0 %1309
        %v1312 = vmul.f32 %v1266, %v1310
        %v1313 = vmul.f32 %v1267, %v1310
        %v1314 = vmul.f32 %v1268, %v1310
        %v1315 = vmul.f32 %v1269, %v1310
        %v1316 = vmul.f32 %v1270, %v1310
        %v1317 = vmul.f32 %v1271, %v1310
        %v1318 = vmul.f32 %v1272, %v1310
        %v1319 = vmul.f32 %v1273, %v1310
        %v1320 = vmul.f32 %v1274, %v1310
        %v1321 = vmul.f32 %v1275, %v1310
        %v1322 = vmul.f32 %v1276, %v1310
        %v1323 = vmul.f32 %v1277, %v1310
        %v1324 = vmul.f32 %v1278, %v1310
        %v1325 = vmul.f32 %v1279, %v1310
        %v1326 = vmul.f32 %v1280, %v1310
        %v1327 = vmul.f32 %v1281, %v1310
        %1344 = vrot.lane.b32.xlu0 %v1312, 96
        %v1345 = vpop.permute.xlu0 %1344
        %1346 = vrot.lane.b32.xlu0 %v1313, 96
        %v1347 = vpop.permute.xlu0 %1346
        %1348 = vrot.lane.b32.xlu0 %v1314, 96
        %v1349 = vpop.permute.xlu0 %1348
        %1350 = vrot.lane.b32.xlu0 %v1315, 96
        %v1351 = vpop.permute.xlu0 %1350
        %1352 = vrot.lane.b32.xlu0 %v1316, 96
        %v1353 = vpop.permute.xlu0 %1352
        %1354 = vrot.lane.b32.xlu0 %v1317, 96
        %v1355 = vpop.permute.xlu0 %1354
        %1356 = vrot.lane.b32.xlu0 %v1318, 96
        %v1357 = vpop.permute.xlu0 %1356
        %1358 = vrot.lane.b32.xlu0 %v1319, 96
        %v1359 = vpop.permute.xlu0 %1358
        %1360 = vrot.lane.b32.xlu0 %v1320, 96
        %v1361 = vpop.permute.xlu0 %1360
        %1362 = vrot.lane.b32.xlu0 %v1321, 96
        %v1363 = vpop.permute.xlu0 %1362
        %1364 = vrot.lane.b32.xlu0 %v1322, 96
        %v1365 = vpop.permute.xlu0 %1364
        %1366 = vrot.lane.b32.xlu0 %v1323, 96
        %v1367 = vpop.permute.xlu0 %1366
        %1368 = vrot.lane.b32.xlu0 %v1324, 96
        %v1369 = vpop.permute.xlu0 %1368
        %1370 = vrot.lane.b32.xlu0 %v1325, 96
        %v1371 = vpop.permute.xlu0 %1370
        %1372 = vrot.lane.b32.xlu0 %v1326, 96
        %v1373 = vpop.permute.xlu0 %1372
        %1374 = vrot.lane.b32.xlu0 %v1327, 96
        %v1375 = vpop.permute.xlu0 %1374
        %v1392 = vadd.f32 %v1288, %v1345
        %v1393 = vadd.f32 %v1289, %v1347
        %v1394 = vadd.f32 %v1290, %v1349
        %v1395 = vadd.f32 %v1291, %v1351
        %v1396 = vadd.f32 %v1292, %v1353
        %v1397 = vadd.f32 %v1293, %v1355
        %v1398 = vadd.f32 %v1294, %v1357
        %v1399 = vadd.f32 %v1295, %v1359
        %v1400 = vadd.f32 %v1296, %v1361
        %v1401 = vadd.f32 %v1297, %v1363
        %v1402 = vadd.f32 %v1298, %v1365
        %v1403 = vadd.f32 %v1299, %v1367
        %v1404 = vadd.f32 %v1300, %v1369
        %v1405 = vadd.f32 %v1301, %v1371
        %v1406 = vadd.f32 %v1302, %v1373
        %v1407 = vadd.f32 %v1303, %v1375
        %v1408 = vsub.f32 0.0, %v1266
        %v1409 = vsub.f32 0.0, %v1267
        %v1410 = vsub.f32 0.0, %v1268
        %v1411 = vsub.f32 0.0, %v1269
        %v1412 = vsub.f32 0.0, %v1270
        %v1413 = vsub.f32 0.0, %v1271
        %v1414 = vsub.f32 0.0, %v1272
        %v1415 = vsub.f32 0.0, %v1273
        %v1416 = vsub.f32 0.0, %v1274
        %v1417 = vsub.f32 0.0, %v1275
        %v1418 = vsub.f32 0.0, %v1276
        %v1419 = vsub.f32 0.0, %v1277
        %v1420 = vsub.f32 0.0, %v1278
        %v1421 = vsub.f32 0.0, %v1279
        %v1422 = vsub.f32 0.0, %v1280
        %v1423 = vsub.f32 0.0, %v1281
        %v1424 = vmul.f32 %v1408, %v1307
        %v1425 = vmul.f32 %v1409, %v1307
        %v1426 = vmul.f32 %v1410, %v1307
        %v1427 = vmul.f32 %v1411, %v1307
        %v1428 = vmul.f32 %v1412, %v1307
        %v1429 = vmul.f32 %v1413, %v1307
        %v1430 = vmul.f32 %v1414, %v1307
        %v1431 = vmul.f32 %v1415, %v1307
        %v1432 = vmul.f32 %v1416, %v1307
        %v1433 = vmul.f32 %v1417, %v1307
        %v1434 = vmul.f32 %v1418, %v1307
        %v1435 = vmul.f32 %v1419, %v1307
        %v1436 = vmul.f32 %v1420, %v1307
        %v1437 = vmul.f32 %v1421, %v1307
        %v1438 = vmul.f32 %v1422, %v1307
        %v1439 = vmul.f32 %v1423, %v1307
        %1441 = vrot.lane.b32.xlu0 %v1287, 32
        %v1442 = vpop.permute.xlu0 %1441
        %v1444 = vmul.f32 %v1266, %v1442
        %v1445 = vmul.f32 %v1267, %v1442
        %v1446 = vmul.f32 %v1268, %v1442
        %v1447 = vmul.f32 %v1269, %v1442
        %v1448 = vmul.f32 %v1270, %v1442
        %v1449 = vmul.f32 %v1271, %v1442
        %v1450 = vmul.f32 %v1272, %v1442
        %v1451 = vmul.f32 %v1273, %v1442
        %v1452 = vmul.f32 %v1274, %v1442
        %v1453 = vmul.f32 %v1275, %v1442
        %v1454 = vmul.f32 %v1276, %v1442
        %v1455 = vmul.f32 %v1277, %v1442
        %v1456 = vmul.f32 %v1278, %v1442
        %v1457 = vmul.f32 %v1279, %v1442
        %v1458 = vmul.f32 %v1280, %v1442
        %v1459 = vmul.f32 %v1281, %v1442
        %1476 = vrot.lane.b32.xlu0 %v1444, 96
        %v1477 = vpop.permute.xlu0 %1476
        %1478 = vrot.lane.b32.xlu0 %v1445, 96
        %v1479 = vpop.permute.xlu0 %1478
        %1480 = vrot.lane.b32.xlu0 %v1446, 96
        %v1481 = vpop.permute.xlu0 %1480
        %1482 = vrot.lane.b32.xlu0 %v1447, 96
        %v1483 = vpop.permute.xlu0 %1482
        %1484 = vrot.lane.b32.xlu0 %v1448, 96
        %v1485 = vpop.permute.xlu0 %1484
        %1486 = vrot.lane.b32.xlu0 %v1449, 96
        %v1487 = vpop.permute.xlu0 %1486
        %1488 = vrot.lane.b32.xlu0 %v1450, 96
        %v1489 = vpop.permute.xlu0 %1488
        %1490 = vrot.lane.b32.xlu0 %v1451, 96
        %v1491 = vpop.permute.xlu0 %1490
        %1492 = vrot.lane.b32.xlu0 %v1452, 96
        %v1493 = vpop.permute.xlu0 %1492
        %1494 = vrot.lane.b32.xlu0 %v1453, 96
        %v1495 = vpop.permute.xlu0 %1494
        %1496 = vrot.lane.b32.xlu0 %v1454, 96
        %v1497 = vpop.permute.xlu0 %1496
        %1498 = vrot.lane.b32.xlu0 %v1455, 96
        %v1499 = vpop.permute.xlu0 %1498
        %1500 = vrot.lane.b32.xlu0 %v1456, 96
        %v1501 = vpop.permute.xlu0 %1500
        %1502 = vrot.lane.b32.xlu0 %v1457, 96
        %v1503 = vpop.permute.xlu0 %1502
        %1504 = vrot.lane.b32.xlu0 %v1458, 96
        %v1505 = vpop.permute.xlu0 %1504
        %1506 = vrot.lane.b32.xlu0 %v1459, 96
        %v1507 = vpop.permute.xlu0 %1506
        %v1524 = vadd.f32 %v1424, %v1477
        %v1525 = vadd.f32 %v1425, %v1479
        %v1526 = vadd.f32 %v1426, %v1481
        %v1527 = vadd.f32 %v1427, %v1483
        %v1528 = vadd.f32 %v1428, %v1485
        %v1529 = vadd.f32 %v1429, %v1487
        %v1530 = vadd.f32 %v1430, %v1489
        %v1531 = vadd.f32 %v1431, %v1491
        %v1532 = vadd.f32 %v1432, %v1493
        %v1533 = vadd.f32 %v1433, %v1495
        %v1534 = vadd.f32 %v1434, %v1497
        %v1535 = vadd.f32 %v1435, %v1499
        %v1536 = vadd.f32 %v1436, %v1501
        %v1537 = vadd.f32 %v1437, %v1503
        %v1538 = vadd.f32 %v1438, %v1505
        %v1539 = vadd.f32 %v1439, %v1507
        %1556 = vrot.lane.b32.xlu0 %v1524, 32
        %v1557 = vpop.permute.xlu0 %1556
        %1558 = vrot.lane.b32.xlu0 %v1525, 32
        %v1559 = vpop.permute.xlu0 %1558
        %1560 = vrot.lane.b32.xlu0 %v1526, 32
        %v1561 = vpop.permute.xlu0 %1560
        %1562 = vrot.lane.b32.xlu0 %v1527, 32
        %v1563 = vpop.permute.xlu0 %1562
        %1564 = vrot.lane.b32.xlu0 %v1528, 32
        %v1565 = vpop.permute.xlu0 %1564
        %1566 = vrot.lane.b32.xlu0 %v1529, 32
        %v1567 = vpop.permute.xlu0 %1566
        %1568 = vrot.lane.b32.xlu0 %v1530, 32
        %v1569 = vpop.permute.xlu0 %1568
        %1570 = vrot.lane.b32.xlu0 %v1531, 32
        %v1571 = vpop.permute.xlu0 %1570
        %1572 = vrot.lane.b32.xlu0 %v1532, 32
        %v1573 = vpop.permute.xlu0 %1572
        %1574 = vrot.lane.b32.xlu0 %v1533, 32
        %v1575 = vpop.permute.xlu0 %1574
        %1576 = vrot.lane.b32.xlu0 %v1534, 32
        %v1577 = vpop.permute.xlu0 %1576
        %1578 = vrot.lane.b32.xlu0 %v1535, 32
        %v1579 = vpop.permute.xlu0 %1578
        %1580 = vrot.lane.b32.xlu0 %v1536, 32
        %v1581 = vpop.permute.xlu0 %1580
        %1582 = vrot.lane.b32.xlu0 %v1537, 32
        %v1583 = vpop.permute.xlu0 %1582
        %1584 = vrot.lane.b32.xlu0 %v1538, 32
        %v1585 = vpop.permute.xlu0 %1584
        %1586 = vrot.lane.b32.xlu0 %v1539, 32
        %v1587 = vpop.permute.xlu0 %1586
        %vm1604 = vcmask 261120
        %v1605 = vsel %vm1604, %v1392, %v1557
        %v1606 = vsel %vm1604, %v1393, %v1559
        %v1607 = vsel %vm1604, %v1394, %v1561
        %v1608 = vsel %vm1604, %v1395, %v1563
        %v1609 = vsel %vm1604, %v1396, %v1565
        %v1610 = vsel %vm1604, %v1397, %v1567
        %v1611 = vsel %vm1604, %v1398, %v1569
        %v1612 = vsel %vm1604, %v1399, %v1571
        %v1613 = vsel %vm1604, %v1400, %v1573
        %v1614 = vsel %vm1604, %v1401, %v1575
        %v1615 = vsel %vm1604, %v1402, %v1577
        %v1616 = vsel %vm1604, %v1403, %v1579
        %v1617 = vsel %vm1604, %v1404, %v1581
        %v1618 = vsel %vm1604, %v1405, %v1583
        %v1619 = vsel %vm1604, %v1406, %v1585
        %v1620 = vsel %vm1604, %v1407, %v1587
        %v1621 = vpack.c.bf16 %v1606, %v1605
        %v1622 = vpack.c.bf16 %v1608, %v1607
        %v1623 = vpack.c.bf16 %v1610, %v1609
        %v1624 = vpack.c.bf16 %v1612, %v1611
        %v1625 = vpack.c.bf16 %v1614, %v1613
        %v1626 = vpack.c.bf16 %v1616, %v1615
        %v1627 = vpack.c.bf16 %v1618, %v1617
        %v1628 = vpack.c.bf16 %v1620, %v1619
        %v1637 = vunpack.c.l.b16 %v1621
        %v1638 = vunpack.c.h.b16 %v1621
        %v1639 = vunpack.c.l.b16 %v1622
        %v1640 = vunpack.c.h.b16 %v1622
        %v1641 = vunpack.c.l.b16 %v1623
        %v1642 = vunpack.c.h.b16 %v1623
        %v1643 = vunpack.c.l.b16 %v1624
        %v1644 = vunpack.c.h.b16 %v1624
        %v1645 = vunpack.c.l.b16 %v1625
        %v1646 = vunpack.c.h.b16 %v1625
        %v1647 = vunpack.c.l.b16 %v1626
        %v1648 = vunpack.c.h.b16 %v1626
        %v1649 = vunpack.c.l.b16 %v1627
        %v1650 = vunpack.c.h.b16 %v1627
        %v1651 = vunpack.c.l.b16 %v1628
        %v1652 = vunpack.c.h.b16 %v1628
        %v1653 = vpack.c.b16 %v1637, %v1637
        %v1654 = vpack.c.b16 %v1638, %v1638
        %v1655 = vpack.c.b16 %v1639, %v1639
        %v1656 = vpack.c.b16 %v1640, %v1640
        %v1657 = vpack.c.b16 %v1641, %v1641
        %v1658 = vpack.c.b16 %v1642, %v1642
        %v1659 = vpack.c.b16 %v1643, %v1643
        %v1660 = vpack.c.b16 %v1644, %v1644
        %v1661 = vpack.c.b16 %v1645, %v1645
        %v1662 = vpack.c.b16 %v1646, %v1646
        %v1663 = vpack.c.b16 %v1647, %v1647
        %v1664 = vpack.c.b16 %v1648, %v1648
        %v1665 = vpack.c.b16 %v1649, %v1649
        %v1666 = vpack.c.b16 %v1650, %v1650
        %v1667 = vpack.c.b16 %v1651, %v1651
        %v1668 = vpack.c.b16 %v1652, %v1652
        %vm1685 = vcmask 519168
        %1686 = vst.msk [vmem:[%s453] sm:$0xf] %vm1685, %v1653
        %1687 = vst.msk [vmem:[%s453 + $0x4] sm:$0xf] %vm1685, %v1654
        %1688 = vst.msk [vmem:[%s453 + $0x8] sm:$0xf] %vm1685, %v1655
        %1689 = vst.msk [vmem:[%s453 + $0xc] sm:$0xf] %vm1685, %v1656
        %1690 = vst.msk [vmem:[%s453 + $0x10] sm:$0xf] %vm1685, %v1657
        %1691 = vst.msk [vmem:[%s453 + $0x14] sm:$0xf] %vm1685, %v1658
        %1692 = vst.msk [vmem:[%s453 + $0x18] sm:$0xf] %vm1685, %v1659
        %1693 = vst.msk [vmem:[%s453 + $0x1c] sm:$0xf] %vm1685, %v1660
        %1694 = vst.msk [vmem:[%s453 + $0x20] sm:$0xf] %vm1685, %v1661
        %1695 = vst.msk [vmem:[%s453 + $0x24] sm:$0xf] %vm1685, %v1662
        %1696 = vst.msk [vmem:[%s453 + $0x28] sm:$0xf] %vm1685, %v1663
        %1697 = vst.msk [vmem:[%s453 + $0x2c] sm:$0xf] %vm1685, %v1664
        %1698 = vst.msk [vmem:[%s453 + $0x30] sm:$0xf] %vm1685, %v1665
        %1699 = vst.msk [vmem:[%s453 + $0x34] sm:$0xf] %vm1685, %v1666
        %1700 = vst.msk [vmem:[%s453 + $0x38] sm:$0xf] %vm1685, %v1667
        %1701 = vst.msk [vmem:[%s453 + $0x3c] sm:$0xf] %vm1685, %v1668
        %1718 = vrot.lane.b32.xlu0 %v1152, 64
        %v1719 = vpop.permute.xlu0 %1718
        %1720 = vrot.lane.b32.xlu0 %v1153, 64
        %v1721 = vpop.permute.xlu0 %1720
        %1722 = vrot.lane.b32.xlu0 %v1154, 64
        %v1723 = vpop.permute.xlu0 %1722
        %1724 = vrot.lane.b32.xlu0 %v1155, 64
        %v1725 = vpop.permute.xlu0 %1724
        %1726 = vrot.lane.b32.xlu0 %v1156, 64
        %v1727 = vpop.permute.xlu0 %1726
        %1728 = vrot.lane.b32.xlu0 %v1157, 64
        %v1729 = vpop.permute.xlu0 %1728
        %1730 = vrot.lane.b32.xlu0 %v1158, 64
        %v1731 = vpop.permute.xlu0 %1730
        %1732 = vrot.lane.b32.xlu0 %v1159, 64
        %v1733 = vpop.permute.xlu0 %1732
        %1734 = vrot.lane.b32.xlu0 %v1160, 64
        %v1735 = vpop.permute.xlu0 %1734
        %1736 = vrot.lane.b32.xlu0 %v1161, 64
        %v1737 = vpop.permute.xlu0 %1736
        %1738 = vrot.lane.b32.xlu0 %v1162, 64
        %v1739 = vpop.permute.xlu0 %1738
        %1740 = vrot.lane.b32.xlu0 %v1163, 64
        %v1741 = vpop.permute.xlu0 %1740
        %1742 = vrot.lane.b32.xlu0 %v1164, 64
        %v1743 = vpop.permute.xlu0 %1742
        %1744 = vrot.lane.b32.xlu0 %v1165, 64
        %v1745 = vpop.permute.xlu0 %1744
        %1746 = vrot.lane.b32.xlu0 %v1166, 64
        %v1747 = vpop.permute.xlu0 %1746
        %1748 = vrot.lane.b32.xlu0 %v1167, 64
        %v1749 = vpop.permute.xlu0 %1748
        %v1766 = vsel %vm1168, %v1719, 0.0
        %1767 = vadd.xlane.f32.xlu0 %v1766
        %v1768 = vpop.xlane.xlu0 %1767
        %v1769 = vsel %vm1168, %v1721, 0.0
        %1770 = vadd.xlane.f32.xlu0 %v1769
        %v1771 = vpop.xlane.xlu0 %1770
        %v1772 = vsel %vm1168, %v1723, 0.0
        %1773 = vadd.xlane.f32.xlu0 %v1772
        %v1774 = vpop.xlane.xlu0 %1773
        %v1775 = vsel %vm1168, %v1725, 0.0
        %1776 = vadd.xlane.f32.xlu0 %v1775
        %v1777 = vpop.xlane.xlu0 %1776
        %v1778 = vsel %vm1168, %v1727, 0.0
        %1779 = vadd.xlane.f32.xlu0 %v1778
        %v1780 = vpop.xlane.xlu0 %1779
        %v1781 = vsel %vm1168, %v1729, 0.0
        %1782 = vadd.xlane.f32.xlu0 %v1781
        %v1783 = vpop.xlane.xlu0 %1782
        %v1784 = vsel %vm1168, %v1731, 0.0
        %1785 = vadd.xlane.f32.xlu0 %v1784
        %v1786 = vpop.xlane.xlu0 %1785
        %v1787 = vsel %vm1168, %v1733, 0.0
        %1788 = vadd.xlane.f32.xlu0 %v1787
        %v1789 = vpop.xlane.xlu0 %1788
        %v1790 = vsel %vm1168, %v1735, 0.0
        %1791 = vadd.xlane.f32.xlu0 %v1790
        %v1792 = vpop.xlane.xlu0 %1791
        %v1793 = vsel %vm1168, %v1737, 0.0
        %1794 = vadd.xlane.f32.xlu0 %v1793
        %v1795 = vpop.xlane.xlu0 %1794
        %v1796 = vsel %vm1168, %v1739, 0.0
        %1797 = vadd.xlane.f32.xlu0 %v1796
        %v1798 = vpop.xlane.xlu0 %1797
        %v1799 = vsel %vm1168, %v1741, 0.0
        %1800 = vadd.xlane.f32.xlu0 %v1799
        %v1801 = vpop.xlane.xlu0 %1800
        %v1802 = vsel %vm1168, %v1743, 0.0
        %1803 = vadd.xlane.f32.xlu0 %v1802
        %v1804 = vpop.xlane.xlu0 %1803
        %v1805 = vsel %vm1168, %v1745, 0.0
        %1806 = vadd.xlane.f32.xlu0 %v1805
        %v1807 = vpop.xlane.xlu0 %1806
        %v1808 = vsel %vm1168, %v1747, 0.0
        %1809 = vadd.xlane.f32.xlu0 %v1808
        %v1810 = vpop.xlane.xlu0 %1809
        %v1811 = vsel %vm1168, %v1749, 0.0
        %1812 = vadd.xlane.f32.xlu0 %v1811
        %v1813 = vpop.xlane.xlu0 %1812
        %v1814 = vmul.f32 %v1768, %v1217
        %v1815 = vmul.f32 %v1771, %v1217
        %v1816 = vmul.f32 %v1774, %v1217
        %v1817 = vmul.f32 %v1777, %v1217
        %v1818 = vmul.f32 %v1780, %v1217
        %v1819 = vmul.f32 %v1783, %v1217
        %v1820 = vmul.f32 %v1786, %v1217
        %v1821 = vmul.f32 %v1789, %v1217
        %v1822 = vmul.f32 %v1792, %v1217
        %v1823 = vmul.f32 %v1795, %v1217
        %v1824 = vmul.f32 %v1798, %v1217
        %v1825 = vmul.f32 %v1801, %v1217
        %v1826 = vmul.f32 %v1804, %v1217
        %v1827 = vmul.f32 %v1807, %v1217
        %v1828 = vmul.f32 %v1810, %v1217
        %v1829 = vmul.f32 %v1813, %v1217
        %v1830 = vadd.f32 %v1814, 1.1920929e-07
        %v1831 = vadd.f32 %v1815, 1.1920929e-07
        %v1832 = vadd.f32 %v1816, 1.1920929e-07
        %v1833 = vadd.f32 %v1817, 1.1920929e-07
        %v1834 = vadd.f32 %v1818, 1.1920929e-07
        %v1835 = vadd.f32 %v1819, 1.1920929e-07
        %v1836 = vadd.f32 %v1820, 1.1920929e-07
        %v1837 = vadd.f32 %v1821, 1.1920929e-07
        %v1838 = vadd.f32 %v1822, 1.1920929e-07
        %v1839 = vadd.f32 %v1823, 1.1920929e-07
        %v1840 = vadd.f32 %v1824, 1.1920929e-07
        %v1841 = vadd.f32 %v1825, 1.1920929e-07
        %v1842 = vadd.f32 %v1826, 1.1920929e-07
        %v1843 = vadd.f32 %v1827, 1.1920929e-07
        %v1844 = vadd.f32 %v1828, 1.1920929e-07
        %v1845 = vadd.f32 %v1829, 1.1920929e-07
        %v1846 = vrsqrt.pop %v1830
        %v1847 = vrsqrt.pop %v1831
        %v1848 = vrsqrt.pop %v1832
        %v1849 = vrsqrt.pop %v1833
        %v1850 = vrsqrt.pop %v1834
        %v1851 = vrsqrt.pop %v1835
        %v1852 = vrsqrt.pop %v1836
        %v1853 = vrsqrt.pop %v1837
        %v1854 = vrsqrt.pop %v1838
        %v1855 = vrsqrt.pop %v1839
        %v1856 = vrsqrt.pop %v1840
        %v1857 = vrsqrt.pop %v1841
        %v1858 = vrsqrt.pop %v1842
        %v1859 = vrsqrt.pop %v1843
        %v1860 = vrsqrt.pop %v1844
        %v1861 = vrsqrt.pop %v1845
        %v1862 = vmul.f32 %v757, %v1846
        %v1863 = vmul.f32 %v761, %v1847
        %v1864 = vmul.f32 %v767, %v1848
        %v1865 = vmul.f32 %v771, %v1849
        %v1866 = vmul.f32 %v777, %v1850
        %v1867 = vmul.f32 %v781, %v1851
        %v1868 = vmul.f32 %v787, %v1852
        %v1869 = vmul.f32 %v791, %v1853
        %v1870 = vmul.f32 %v797, %v1854
        %v1871 = vmul.f32 %v801, %v1855
        %v1872 = vmul.f32 %v807, %v1856
        %v1873 = vmul.f32 %v811, %v1857
        %v1874 = vmul.f32 %v817, %v1858
        %v1875 = vmul.f32 %v821, %v1859
        %v1876 = vmul.f32 %v827, %v1860
        %v1877 = vmul.f32 %v831, %v1861
        %v1878 = vld [vmem:[%s5 + $0x1] sm:$0x1]
        %v1879 = vld [vmem:[%s6 + $0x1] sm:$0x1]
        %v1880 = vlaneseq
        %v1881 = vshrl.u32 %v1880, 7
        %v1882 = vsub.s32 0, %v1881
        %v1883 = vrot.slane %v1878, %v1882
        %1885 = vrot.lane.b32.xlu0 %v1883, 64
        %v1886 = vpop.permute.xlu0 %1885
        %v1888 = vmul.f32 %v1862, %v1886
        %v1889 = vmul.f32 %v1863, %v1886
        %v1890 = vmul.f32 %v1864, %v1886
        %v1891 = vmul.f32 %v1865, %v1886
        %v1892 = vmul.f32 %v1866, %v1886
        %v1893 = vmul.f32 %v1867, %v1886
        %v1894 = vmul.f32 %v1868, %v1886
        %v1895 = vmul.f32 %v1869, %v1886
        %v1896 = vmul.f32 %v1870, %v1886
        %v1897 = vmul.f32 %v1871, %v1886
        %v1898 = vmul.f32 %v1872, %v1886
        %v1899 = vmul.f32 %v1873, %v1886
        %v1900 = vmul.f32 %v1874, %v1886
        %v1901 = vmul.f32 %v1875, %v1886
        %v1902 = vmul.f32 %v1876, %v1886
        %v1903 = vmul.f32 %v1877, %v1886
        %v1904 = vlaneseq
        %v1905 = vshrl.u32 %v1904, 7
        %v1906 = vsub.s32 0, %v1905
        %v1907 = vrot.slane %v1879, %v1906
        %1909 = vrot.lane.b32.xlu0 %v1907, 96
        %v1910 = vpop.permute.xlu0 %1909
        %v1912 = vmul.f32 %v1862, %v1910
        %v1913 = vmul.f32 %v1863, %v1910
        %v1914 = vmul.f32 %v1864, %v1910
        %v1915 = vmul.f32 %v1865, %v1910
        %v1916 = vmul.f32 %v1866, %v1910
        %v1917 = vmul.f32 %v1867, %v1910
        %v1918 = vmul.f32 %v1868, %v1910
        %v1919 = vmul.f32 %v1869, %v1910
        %v1920 = vmul.f32 %v1870, %v1910
        %v1921 = vmul.f32 %v1871, %v1910
        %v1922 = vmul.f32 %v1872, %v1910
        %v1923 = vmul.f32 %v1873, %v1910
        %v1924 = vmul.f32 %v1874, %v1910
        %v1925 = vmul.f32 %v1875, %v1910
        %v1926 = vmul.f32 %v1876, %v1910
        %v1927 = vmul.f32 %v1877, %v1910
        %1944 = vrot.lane.b32.xlu0 %v1912, 96
        %v1945 = vpop.permute.xlu0 %1944
        %1946 = vrot.lane.b32.xlu0 %v1913, 96
        %v1947 = vpop.permute.xlu0 %1946
        %1948 = vrot.lane.b32.xlu0 %v1914, 96
        %v1949 = vpop.permute.xlu0 %1948
        %1950 = vrot.lane.b32.xlu0 %v1915, 96
        %v1951 = vpop.permute.xlu0 %1950
        %1952 = vrot.lane.b32.xlu0 %v1916, 96
        %v1953 = vpop.permute.xlu0 %1952
        %1954 = vrot.lane.b32.xlu0 %v1917, 96
        %v1955 = vpop.permute.xlu0 %1954
        %1956 = vrot.lane.b32.xlu0 %v1918, 96
        %v1957 = vpop.permute.xlu0 %1956
        %1958 = vrot.lane.b32.xlu0 %v1919, 96
        %v1959 = vpop.permute.xlu0 %1958
        %1960 = vrot.lane.b32.xlu0 %v1920, 96
        %v1961 = vpop.permute.xlu0 %1960
        %1962 = vrot.lane.b32.xlu0 %v1921, 96
        %v1963 = vpop.permute.xlu0 %1962
        %1964 = vrot.lane.b32.xlu0 %v1922, 96
        %v1965 = vpop.permute.xlu0 %1964
        %1966 = vrot.lane.b32.xlu0 %v1923, 96
        %v1967 = vpop.permute.xlu0 %1966
        %1968 = vrot.lane.b32.xlu0 %v1924, 96
        %v1969 = vpop.permute.xlu0 %1968
        %1970 = vrot.lane.b32.xlu0 %v1925, 96
        %v1971 = vpop.permute.xlu0 %1970
        %1972 = vrot.lane.b32.xlu0 %v1926, 96
        %v1973 = vpop.permute.xlu0 %1972
        %1974 = vrot.lane.b32.xlu0 %v1927, 96
        %v1975 = vpop.permute.xlu0 %1974
        %v1992 = vadd.f32 %v1888, %v1945
        %v1993 = vadd.f32 %v1889, %v1947
        %v1994 = vadd.f32 %v1890, %v1949
        %v1995 = vadd.f32 %v1891, %v1951
        %v1996 = vadd.f32 %v1892, %v1953
        %v1997 = vadd.f32 %v1893, %v1955
        %v1998 = vadd.f32 %v1894, %v1957
        %v1999 = vadd.f32 %v1895, %v1959
        %v2000 = vadd.f32 %v1896, %v1961
        %v2001 = vadd.f32 %v1897, %v1963
        %v2002 = vadd.f32 %v1898, %v1965
        %v2003 = vadd.f32 %v1899, %v1967
        %v2004 = vadd.f32 %v1900, %v1969
        %v2005 = vadd.f32 %v1901, %v1971
        %v2006 = vadd.f32 %v1902, %v1973
        %v2007 = vadd.f32 %v1903, %v1975
        %v2008 = vsub.f32 0.0, %v1862
        %v2009 = vsub.f32 0.0, %v1863
        %v2010 = vsub.f32 0.0, %v1864
        %v2011 = vsub.f32 0.0, %v1865
        %v2012 = vsub.f32 0.0, %v1866
        %v2013 = vsub.f32 0.0, %v1867
        %v2014 = vsub.f32 0.0, %v1868
        %v2015 = vsub.f32 0.0, %v1869
        %v2016 = vsub.f32 0.0, %v1870
        %v2017 = vsub.f32 0.0, %v1871
        %v2018 = vsub.f32 0.0, %v1872
        %v2019 = vsub.f32 0.0, %v1873
        %v2020 = vsub.f32 0.0, %v1874
        %v2021 = vsub.f32 0.0, %v1875
        %v2022 = vsub.f32 0.0, %v1876
        %v2023 = vsub.f32 0.0, %v1877
        %2024 = vrot.lane.b32.xlu0 %v1907, 64
        %v2025 = vpop.permute.xlu0 %2024
        %v2027 = vmul.f32 %v2008, %v2025
        %v2028 = vmul.f32 %v2009, %v2025
        %v2029 = vmul.f32 %v2010, %v2025
        %v2030 = vmul.f32 %v2011, %v2025
        %v2031 = vmul.f32 %v2012, %v2025
        %v2032 = vmul.f32 %v2013, %v2025
        %v2033 = vmul.f32 %v2014, %v2025
        %v2034 = vmul.f32 %v2015, %v2025
        %v2035 = vmul.f32 %v2016, %v2025
        %v2036 = vmul.f32 %v2017, %v2025
        %v2037 = vmul.f32 %v2018, %v2025
        %v2038 = vmul.f32 %v2019, %v2025
        %v2039 = vmul.f32 %v2020, %v2025
        %v2040 = vmul.f32 %v2021, %v2025
        %v2041 = vmul.f32 %v2022, %v2025
        %v2042 = vmul.f32 %v2023, %v2025
        %2043 = vrot.lane.b32.xlu0 %v1883, 96
        %v2044 = vpop.permute.xlu0 %2043
        %v2046 = vmul.f32 %v1862, %v2044
        %v2047 = vmul.f32 %v1863, %v2044
        %v2048 = vmul.f32 %v1864, %v2044
        %v2049 = vmul.f32 %v1865, %v2044
        %v2050 = vmul.f32 %v1866, %v2044
        %v2051 = vmul.f32 %v1867, %v2044
        %v2052 = vmul.f32 %v1868, %v2044
        %v2053 = vmul.f32 %v1869, %v2044
        %v2054 = vmul.f32 %v1870, %v2044
        %v2055 = vmul.f32 %v1871, %v2044
        %v2056 = vmul.f32 %v1872, %v2044
        %v2057 = vmul.f32 %v1873, %v2044
        %v2058 = vmul.f32 %v1874, %v2044
        %v2059 = vmul.f32 %v1875, %v2044
        %v2060 = vmul.f32 %v1876, %v2044
        %v2061 = vmul.f32 %v1877, %v2044
        %2078 = vrot.lane.b32.xlu0 %v2046, 96
        %v2079 = vpop.permute.xlu0 %2078
        %2080 = vrot.lane.b32.xlu0 %v2047, 96
        %v2081 = vpop.permute.xlu0 %2080
        %2082 = vrot.lane.b32.xlu0 %v2048, 96
        %v2083 = vpop.permute.xlu0 %2082
        %2084 = vrot.lane.b32.xlu0 %v2049, 96
        %v2085 = vpop.permute.xlu0 %2084
        %2086 = vrot.lane.b32.xlu0 %v2050, 96
        %v2087 = vpop.permute.xlu0 %2086
        %2088 = vrot.lane.b32.xlu0 %v2051, 96
        %v2089 = vpop.permute.xlu0 %2088
        %2090 = vrot.lane.b32.xlu0 %v2052, 96
        %v2091 = vpop.permute.xlu0 %2090
        %2092 = vrot.lane.b32.xlu0 %v2053, 96
        %v2093 = vpop.permute.xlu0 %2092
        %2094 = vrot.lane.b32.xlu0 %v2054, 96
        %v2095 = vpop.permute.xlu0 %2094
        %2096 = vrot.lane.b32.xlu0 %v2055, 96
        %v2097 = vpop.permute.xlu0 %2096
        %2098 = vrot.lane.b32.xlu0 %v2056, 96
        %v2099 = vpop.permute.xlu0 %2098
        %2100 = vrot.lane.b32.xlu0 %v2057, 96
        %v2101 = vpop.permute.xlu0 %2100
        %2102 = vrot.lane.b32.xlu0 %v2058, 96
        %v2103 = vpop.permute.xlu0 %2102
        %2104 = vrot.lane.b32.xlu0 %v2059, 96
        %v2105 = vpop.permute.xlu0 %2104
        %2106 = vrot.lane.b32.xlu0 %v2060, 96
        %v2107 = vpop.permute.xlu0 %2106
        %2108 = vrot.lane.b32.xlu0 %v2061, 96
        %v2109 = vpop.permute.xlu0 %2108
        %v2126 = vadd.f32 %v2027, %v2079
        %v2127 = vadd.f32 %v2028, %v2081
        %v2128 = vadd.f32 %v2029, %v2083
        %v2129 = vadd.f32 %v2030, %v2085
        %v2130 = vadd.f32 %v2031, %v2087
        %v2131 = vadd.f32 %v2032, %v2089
        %v2132 = vadd.f32 %v2033, %v2091
        %v2133 = vadd.f32 %v2034, %v2093
        %v2134 = vadd.f32 %v2035, %v2095
        %v2135 = vadd.f32 %v2036, %v2097
        %v2136 = vadd.f32 %v2037, %v2099
        %v2137 = vadd.f32 %v2038, %v2101
        %v2138 = vadd.f32 %v2039, %v2103
        %v2139 = vadd.f32 %v2040, %v2105
        %v2140 = vadd.f32 %v2041, %v2107
        %v2141 = vadd.f32 %v2042, %v2109
        %2158 = vrot.lane.b32.xlu0 %v1992, 64
        %v2159 = vpop.permute.xlu0 %2158
        %2160 = vrot.lane.b32.xlu0 %v1993, 64
        %v2161 = vpop.permute.xlu0 %2160
        %2162 = vrot.lane.b32.xlu0 %v1994, 64
        %v2163 = vpop.permute.xlu0 %2162
        %2164 = vrot.lane.b32.xlu0 %v1995, 64
        %v2165 = vpop.permute.xlu0 %2164
        %2166 = vrot.lane.b32.xlu0 %v1996, 64
        %v2167 = vpop.permute.xlu0 %2166
        %2168 = vrot.lane.b32.xlu0 %v1997, 64
        %v2169 = vpop.permute.xlu0 %2168
        %2170 = vrot.lane.b32.xlu0 %v1998, 64
        %v2171 = vpop.permute.xlu0 %2170
        %2172 = vrot.lane.b32.xlu0 %v1999, 64
        %v2173 = vpop.permute.xlu0 %2172
        %2174 = vrot.lane.b32.xlu0 %v2000, 64
        %v2175 = vpop.permute.xlu0 %2174
        %2176 = vrot.lane.b32.xlu0 %v2001, 64
        %v2177 = vpop.permute.xlu0 %2176
        %2178 = vrot.lane.b32.xlu0 %v2002, 64
        %v2179 = vpop.permute.xlu0 %2178
        %2180 = vrot.lane.b32.xlu0 %v2003, 64
        %v2181 = vpop.permute.xlu0 %2180
        %2182 = vrot.lane.b32.xlu0 %v2004, 64
        %v2183 = vpop.permute.xlu0 %2182
        %2184 = vrot.lane.b32.xlu0 %v2005, 64
        %v2185 = vpop.permute.xlu0 %2184
        %2186 = vrot.lane.b32.xlu0 %v2006, 64
        %v2187 = vpop.permute.xlu0 %2186
        %2188 = vrot.lane.b32.xlu0 %v2007, 64
        %v2189 = vpop.permute.xlu0 %2188
        %2222 = vrot.lane.b32.xlu0 %v2126, 96
        %v2223 = vpop.permute.xlu0 %2222
        %2224 = vrot.lane.b32.xlu0 %v2127, 96
        %v2225 = vpop.permute.xlu0 %2224
        %2226 = vrot.lane.b32.xlu0 %v2128, 96
        %v2227 = vpop.permute.xlu0 %2226
        %2228 = vrot.lane.b32.xlu0 %v2129, 96
        %v2229 = vpop.permute.xlu0 %2228
        %2230 = vrot.lane.b32.xlu0 %v2130, 96
        %v2231 = vpop.permute.xlu0 %2230
        %2232 = vrot.lane.b32.xlu0 %v2131, 96
        %v2233 = vpop.permute.xlu0 %2232
        %2234 = vrot.lane.b32.xlu0 %v2132, 96
        %v2235 = vpop.permute.xlu0 %2234
        %2236 = vrot.lane.b32.xlu0 %v2133, 96
        %v2237 = vpop.permute.xlu0 %2236
        %2238 = vrot.lane.b32.xlu0 %v2134, 96
        %v2239 = vpop.permute.xlu0 %2238
        %2240 = vrot.lane.b32.xlu0 %v2135, 96
        %v2241 = vpop.permute.xlu0 %2240
        %2242 = vrot.lane.b32.xlu0 %v2136, 96
        %v2243 = vpop.permute.xlu0 %2242
        %2244 = vrot.lane.b32.xlu0 %v2137, 96
        %v2245 = vpop.permute.xlu0 %2244
        %2246 = vrot.lane.b32.xlu0 %v2138, 96
        %v2247 = vpop.permute.xlu0 %2246
        %2248 = vrot.lane.b32.xlu0 %v2139, 96
        %v2249 = vpop.permute.xlu0 %2248
        %2250 = vrot.lane.b32.xlu0 %v2140, 96
        %v2251 = vpop.permute.xlu0 %2250
        %2252 = vrot.lane.b32.xlu0 %v2141, 96
        %v2253 = vpop.permute.xlu0 %2252
        %v2270 = vsel %vm1604, %v2159, %v2223
        %v2271 = vsel %vm1604, %v2161, %v2225
        %v2272 = vsel %vm1604, %v2163, %v2227
        %v2273 = vsel %vm1604, %v2165, %v2229
        %v2274 = vsel %vm1604, %v2167, %v2231
        %v2275 = vsel %vm1604, %v2169, %v2233
        %v2276 = vsel %vm1604, %v2171, %v2235
        %v2277 = vsel %vm1604, %v2173, %v2237
        %v2278 = vsel %vm1604, %v2175, %v2239
        %v2279 = vsel %vm1604, %v2177, %v2241
        %v2280 = vsel %vm1604, %v2179, %v2243
        %v2281 = vsel %vm1604, %v2181, %v2245
        %v2282 = vsel %vm1604, %v2183, %v2247
        %v2283 = vsel %vm1604, %v2185, %v2249
        %v2284 = vsel %vm1604, %v2187, %v2251
        %v2285 = vsel %vm1604, %v2189, %v2253
        %v2286 = vpack.c.bf16 %v2271, %v2270
        %v2287 = vpack.c.bf16 %v2273, %v2272
        %v2288 = vpack.c.bf16 %v2275, %v2274
        %v2289 = vpack.c.bf16 %v2277, %v2276
        %v2290 = vpack.c.bf16 %v2279, %v2278
        %v2291 = vpack.c.bf16 %v2281, %v2280
        %v2292 = vpack.c.bf16 %v2283, %v2282
        %v2293 = vpack.c.bf16 %v2285, %v2284
        %v2302 = vunpack.c.l.b16 %v2286
        %v2303 = vunpack.c.h.b16 %v2286
        %v2304 = vunpack.c.l.b16 %v2287
        %v2305 = vunpack.c.h.b16 %v2287
        %v2306 = vunpack.c.l.b16 %v2288
        %v2307 = vunpack.c.h.b16 %v2288
        %v2308 = vunpack.c.l.b16 %v2289
        %v2309 = vunpack.c.h.b16 %v2289
        %v2310 = vunpack.c.l.b16 %v2290
        %v2311 = vunpack.c.h.b16 %v2290
        %v2312 = vunpack.c.l.b16 %v2291
        %v2313 = vunpack.c.h.b16 %v2291
        %v2314 = vunpack.c.l.b16 %v2292
        %v2315 = vunpack.c.h.b16 %v2292
        %v2316 = vunpack.c.l.b16 %v2293
        %v2317 = vunpack.c.h.b16 %v2293
        %v2318 = vpack.c.b16 %v2302, %v2302
        %v2319 = vpack.c.b16 %v2303, %v2303
        %v2320 = vpack.c.b16 %v2304, %v2304
        %v2321 = vpack.c.b16 %v2305, %v2305
        %v2322 = vpack.c.b16 %v2306, %v2306
        %v2323 = vpack.c.b16 %v2307, %v2307
        %v2324 = vpack.c.b16 %v2308, %v2308
        %v2325 = vpack.c.b16 %v2309, %v2309
        %v2326 = vpack.c.b16 %v2310, %v2310
        %v2327 = vpack.c.b16 %v2311, %v2311
        %v2328 = vpack.c.b16 %v2312, %v2312
        %v2329 = vpack.c.b16 %v2313, %v2313
        %v2330 = vpack.c.b16 %v2314, %v2314
        %v2331 = vpack.c.b16 %v2315, %v2315
        %v2332 = vpack.c.b16 %v2316, %v2316
        %v2333 = vpack.c.b16 %v2317, %v2317
        %s2350 = scalar_lea.vmem %s453, 64 [#allocation7]
        %2351 = vst.msk [vmem:[%s2350] sm:$0xf] %vm1685, %v2318
        %2352 = vst.msk [vmem:[%s2350 + $0x4] sm:$0xf] %vm1685, %v2319
        %2353 = vst.msk [vmem:[%s2350 + $0x8] sm:$0xf] %vm1685, %v2320
        %2354 = vst.msk [vmem:[%s2350 + $0xc] sm:$0xf] %vm1685, %v2321
        %2355 = vst.msk [vmem:[%s2350 + $0x10] sm:$0xf] %vm1685, %v2322
        %2356 = vst.msk [vmem:[%s2350 + $0x14] sm:$0xf] %vm1685, %v2323
        %2357 = vst.msk [vmem:[%s2350 + $0x18] sm:$0xf] %vm1685, %v2324
        %2358 = vst.msk [vmem:[%s2350 + $0x1c] sm:$0xf] %vm1685, %v2325
        %2359 = vst.msk [vmem:[%s2350 + $0x20] sm:$0xf] %vm1685, %v2326
        %2360 = vst.msk [vmem:[%s2350 + $0x24] sm:$0xf] %vm1685, %v2327
        %2361 = vst.msk [vmem:[%s2350 + $0x28] sm:$0xf] %vm1685, %v2328
        %2362 = vst.msk [vmem:[%s2350 + $0x2c] sm:$0xf] %vm1685, %v2329
        %2363 = vst.msk [vmem:[%s2350 + $0x30] sm:$0xf] %vm1685, %v2330
        %2364 = vst.msk [vmem:[%s2350 + $0x34] sm:$0xf] %vm1685, %v2331
        %2365 = vst.msk [vmem:[%s2350 + $0x38] sm:$0xf] %vm1685, %v2332
        %2366 = vst.msk [vmem:[%s2350 + $0x3c] sm:$0xf] %vm1685, %v2333
        %v2367 = vmul.f32 %v759, %v759
        %v2368 = vmul.f32 %v763, %v763
        %v2369 = vmul.f32 %v769, %v769
        %v2370 = vmul.f32 %v773, %v773
        %v2371 = vmul.f32 %v779, %v779
        %v2372 = vmul.f32 %v783, %v783
        %v2373 = vmul.f32 %v789, %v789
        %v2374 = vmul.f32 %v793, %v793
        %v2375 = vmul.f32 %v799, %v799
        %v2376 = vmul.f32 %v803, %v803
        %v2377 = vmul.f32 %v809, %v809
        %v2378 = vmul.f32 %v813, %v813
        %v2379 = vmul.f32 %v819, %v819
        %v2380 = vmul.f32 %v823, %v823
        %v2381 = vmul.f32 %v829, %v829
        %v2382 = vmul.f32 %v833, %v833
        %v2383 = vsel %vm1168, %v2367, 0.0
        %2384 = vadd.xlane.f32.xlu0 %v2383
        %v2385 = vpop.xlane.xlu0 %2384
        %v2386 = vsel %vm1168, %v2368, 0.0
        %2387 = vadd.xlane.f32.xlu0 %v2386
        %v2388 = vpop.xlane.xlu0 %2387
        %v2389 = vsel %vm1168, %v2369, 0.0
        %2390 = vadd.xlane.f32.xlu0 %v2389
        %v2391 = vpop.xlane.xlu0 %2390
        %v2392 = vsel %vm1168, %v2370, 0.0
        %2393 = vadd.xlane.f32.xlu0 %v2392
        %v2394 = vpop.xlane.xlu0 %2393
        %v2395 = vsel %vm1168, %v2371, 0.0
        %2396 = vadd.xlane.f32.xlu0 %v2395
        %v2397 = vpop.xlane.xlu0 %2396
        %v2398 = vsel %vm1168, %v2372, 0.0
        %2399 = vadd.xlane.f32.xlu0 %v2398
        %v2400 = vpop.xlane.xlu0 %2399
        %v2401 = vsel %vm1168, %v2373, 0.0
        %2402 = vadd.xlane.f32.xlu0 %v2401
        %v2403 = vpop.xlane.xlu0 %2402
        %v2404 = vsel %vm1168, %v2374, 0.0
        %2405 = vadd.xlane.f32.xlu0 %v2404
        %v2406 = vpop.xlane.xlu0 %2405
        %v2407 = vsel %vm1168, %v2375, 0.0
        %2408 = vadd.xlane.f32.xlu0 %v2407
        %v2409 = vpop.xlane.xlu0 %2408
        %v2410 = vsel %vm1168, %v2376, 0.0
        %2411 = vadd.xlane.f32.xlu0 %v2410
        %v2412 = vpop.xlane.xlu0 %2411
        %v2413 = vsel %vm1168, %v2377, 0.0
        %2414 = vadd.xlane.f32.xlu0 %v2413
        %v2415 = vpop.xlane.xlu0 %2414
        %v2416 = vsel %vm1168, %v2378, 0.0
        %2417 = vadd.xlane.f32.xlu0 %v2416
        %v2418 = vpop.xlane.xlu0 %2417
        %v2419 = vsel %vm1168, %v2379, 0.0
        %2420 = vadd.xlane.f32.xlu0 %v2419
        %v2421 = vpop.xlane.xlu0 %2420
        %v2422 = vsel %vm1168, %v2380, 0.0
        %2423 = vadd.xlane.f32.xlu0 %v2422
        %v2424 = vpop.xlane.xlu0 %2423
        %v2425 = vsel %vm1168, %v2381, 0.0
        %2426 = vadd.xlane.f32.xlu0 %v2425
        %v2427 = vpop.xlane.xlu0 %2426
        %v2428 = vsel %vm1168, %v2382, 0.0
        %2429 = vadd.xlane.f32.xlu0 %v2428
        %v2430 = vpop.xlane.xlu0 %2429
        %v2431 = vmul.f32 %v2385, %v1217
        %v2432 = vmul.f32 %v2388, %v1217
        %v2433 = vmul.f32 %v2391, %v1217
        %v2434 = vmul.f32 %v2394, %v1217
        %v2435 = vmul.f32 %v2397, %v1217
        %v2436 = vmul.f32 %v2400, %v1217
        %v2437 = vmul.f32 %v2403, %v1217
        %v2438 = vmul.f32 %v2406, %v1217
        %v2439 = vmul.f32 %v2409, %v1217
        %v2440 = vmul.f32 %v2412, %v1217
        %v2441 = vmul.f32 %v2415, %v1217
        %v2442 = vmul.f32 %v2418, %v1217
        %v2443 = vmul.f32 %v2421, %v1217
        %v2444 = vmul.f32 %v2424, %v1217
        %v2445 = vmul.f32 %v2427, %v1217
        %v2446 = vmul.f32 %v2430, %v1217
        %v2447 = vadd.f32 %v2431, 1.1920929e-07
        %v2448 = vadd.f32 %v2432, 1.1920929e-07
        %v2449 = vadd.f32 %v2433, 1.1920929e-07
        %v2450 = vadd.f32 %v2434, 1.1920929e-07
        %v2451 = vadd.f32 %v2435, 1.1920929e-07
        %v2452 = vadd.f32 %v2436, 1.1920929e-07
        %v2453 = vadd.f32 %v2437, 1.1920929e-07
        %v2454 = vadd.f32 %v2438, 1.1920929e-07
        %v2455 = vadd.f32 %v2439, 1.1920929e-07
        %v2456 = vadd.f32 %v2440, 1.1920929e-07
        %v2457 = vadd.f32 %v2441, 1.1920929e-07
        %v2458 = vadd.f32 %v2442, 1.1920929e-07
        %v2459 = vadd.f32 %v2443, 1.1920929e-07
        %v2460 = vadd.f32 %v2444, 1.1920929e-07
        %v2461 = vadd.f32 %v2445, 1.1920929e-07
        %v2462 = vadd.f32 %v2446, 1.1920929e-07
        %v2463 = vrsqrt.pop %v2447
        %v2464 = vrsqrt.pop %v2448
        %v2465 = vrsqrt.pop %v2449
        %v2466 = vrsqrt.pop %v2450
        %v2467 = vrsqrt.pop %v2451
        %v2468 = vrsqrt.pop %v2452
        %v2469 = vrsqrt.pop %v2453
        %v2470 = vrsqrt.pop %v2454
        %v2471 = vrsqrt.pop %v2455
        %v2472 = vrsqrt.pop %v2456
        %v2473 = vrsqrt.pop %v2457
        %v2474 = vrsqrt.pop %v2458
        %v2475 = vrsqrt.pop %v2459
        %v2476 = vrsqrt.pop %v2460
        %v2477 = vrsqrt.pop %v2461
        %v2478 = vrsqrt.pop %v2462
        %v2479 = vmul.f32 %v759, %v2463
        %v2480 = vmul.f32 %v763, %v2464
        %v2481 = vmul.f32 %v769, %v2465
        %v2482 = vmul.f32 %v773, %v2466
        %v2483 = vmul.f32 %v779, %v2467
        %v2484 = vmul.f32 %v783, %v2468
        %v2485 = vmul.f32 %v789, %v2469
        %v2486 = vmul.f32 %v793, %v2470
        %v2487 = vmul.f32 %v799, %v2471
        %v2488 = vmul.f32 %v803, %v2472
        %v2489 = vmul.f32 %v809, %v2473
        %v2490 = vmul.f32 %v813, %v2474
        %v2491 = vmul.f32 %v819, %v2475
        %v2492 = vmul.f32 %v823, %v2476
        %v2493 = vmul.f32 %v829, %v2477
        %v2494 = vmul.f32 %v833, %v2478
        %v2495 = vld [vmem:[%s5 + $0x2] sm:$0x1]
        %v2496 = vld [vmem:[%s6 + $0x2] sm:$0x1]
        %v2497 = vlaneseq
        %v2498 = vshrl.u32 %v2497, 7
        %v2499 = vsub.s32 0, %v2498
        %v2500 = vrot.slane %v2495, %v2499
        %v2501 = vmul.f32 %v2479, %v2500
        %v2502 = vmul.f32 %v2480, %v2500
        %v2503 = vmul.f32 %v2481, %v2500
        %v2504 = vmul.f32 %v2482, %v2500
        %v2505 = vmul.f32 %v2483, %v2500
        %v2506 = vmul.f32 %v2484, %v2500
        %v2507 = vmul.f32 %v2485, %v2500
        %v2508 = vmul.f32 %v2486, %v2500
        %v2509 = vmul.f32 %v2487, %v2500
        %v2510 = vmul.f32 %v2488, %v2500
        %v2511 = vmul.f32 %v2489, %v2500
        %v2512 = vmul.f32 %v2490, %v2500
        %v2513 = vmul.f32 %v2491, %v2500
        %v2514 = vmul.f32 %v2492, %v2500
        %v2515 = vmul.f32 %v2493, %v2500
        %v2516 = vmul.f32 %v2494, %v2500
        %v2517 = vlaneseq
        %v2518 = vshrl.u32 %v2517, 7
        %v2519 = vsub.s32 0, %v2518
        %v2520 = vrot.slane %v2496, %v2519
        %2522 = vrot.lane.b32.xlu0 %v2520, 32
        %v2523 = vpop.permute.xlu0 %2522
        %v2525 = vmul.f32 %v2479, %v2523
        %v2526 = vmul.f32 %v2480, %v2523
        %v2527 = vmul.f32 %v2481, %v2523
        %v2528 = vmul.f32 %v2482, %v2523
        %v2529 = vmul.f32 %v2483, %v2523
        %v2530 = vmul.f32 %v2484, %v2523
        %v2531 = vmul.f32 %v2485, %v2523
        %v2532 = vmul.f32 %v2486, %v2523
        %v2533 = vmul.f32 %v2487, %v2523
        %v2534 = vmul.f32 %v2488, %v2523
        %v2535 = vmul.f32 %v2489, %v2523
        %v2536 = vmul.f32 %v2490, %v2523
        %v2537 = vmul.f32 %v2491, %v2523
        %v2538 = vmul.f32 %v2492, %v2523
        %v2539 = vmul.f32 %v2493, %v2523
        %v2540 = vmul.f32 %v2494, %v2523
        %2557 = vrot.lane.b32.xlu0 %v2525, 96
        %v2558 = vpop.permute.xlu0 %2557
        %2559 = vrot.lane.b32.xlu0 %v2526, 96
        %v2560 = vpop.permute.xlu0 %2559
        %2561 = vrot.lane.b32.xlu0 %v2527, 96
        %v2562 = vpop.permute.xlu0 %2561
        %2563 = vrot.lane.b32.xlu0 %v2528, 96
        %v2564 = vpop.permute.xlu0 %2563
        %2565 = vrot.lane.b32.xlu0 %v2529, 96
        %v2566 = vpop.permute.xlu0 %2565
        %2567 = vrot.lane.b32.xlu0 %v2530, 96
        %v2568 = vpop.permute.xlu0 %2567
        %2569 = vrot.lane.b32.xlu0 %v2531, 96
        %v2570 = vpop.permute.xlu0 %2569
        %2571 = vrot.lane.b32.xlu0 %v2532, 96
        %v2572 = vpop.permute.xlu0 %2571
        %2573 = vrot.lane.b32.xlu0 %v2533, 96
        %v2574 = vpop.permute.xlu0 %2573
        %2575 = vrot.lane.b32.xlu0 %v2534, 96
        %v2576 = vpop.permute.xlu0 %2575
        %2577 = vrot.lane.b32.xlu0 %v2535, 96
        %v2578 = vpop.permute.xlu0 %2577
        %2579 = vrot.lane.b32.xlu0 %v2536, 96
        %v2580 = vpop.permute.xlu0 %2579
        %2581 = vrot.lane.b32.xlu0 %v2537, 96
        %v2582 = vpop.permute.xlu0 %2581
        %2583 = vrot.lane.b32.xlu0 %v2538, 96
        %v2584 = vpop.permute.xlu0 %2583
        %2585 = vrot.lane.b32.xlu0 %v2539, 96
        %v2586 = vpop.permute.xlu0 %2585
        %2587 = vrot.lane.b32.xlu0 %v2540, 96
        %v2588 = vpop.permute.xlu0 %2587
        %v2605 = vadd.f32 %v2501, %v2558
        %v2606 = vadd.f32 %v2502, %v2560
        %v2607 = vadd.f32 %v2503, %v2562
        %v2608 = vadd.f32 %v2504, %v2564
        %v2609 = vadd.f32 %v2505, %v2566
        %v2610 = vadd.f32 %v2506, %v2568
        %v2611 = vadd.f32 %v2507, %v2570
        %v2612 = vadd.f32 %v2508, %v2572
        %v2613 = vadd.f32 %v2509, %v2574
        %v2614 = vadd.f32 %v2510, %v2576
        %v2615 = vadd.f32 %v2511, %v2578
        %v2616 = vadd.f32 %v2512, %v2580
        %v2617 = vadd.f32 %v2513, %v2582
        %v2618 = vadd.f32 %v2514, %v2584
        %v2619 = vadd.f32 %v2515, %v2586
        %v2620 = vadd.f32 %v2516, %v2588
        %v2621 = vsub.f32 0.0, %v2479
        %v2622 = vsub.f32 0.0, %v2480
        %v2623 = vsub.f32 0.0, %v2481
        %v2624 = vsub.f32 0.0, %v2482
        %v2625 = vsub.f32 0.0, %v2483
        %v2626 = vsub.f32 0.0, %v2484
        %v2627 = vsub.f32 0.0, %v2485
        %v2628 = vsub.f32 0.0, %v2486
        %v2629 = vsub.f32 0.0, %v2487
        %v2630 = vsub.f32 0.0, %v2488
        %v2631 = vsub.f32 0.0, %v2489
        %v2632 = vsub.f32 0.0, %v2490
        %v2633 = vsub.f32 0.0, %v2491
        %v2634 = vsub.f32 0.0, %v2492
        %v2635 = vsub.f32 0.0, %v2493
        %v2636 = vsub.f32 0.0, %v2494
        %v2637 = vmul.f32 %v2621, %v2520
        %v2638 = vmul.f32 %v2622, %v2520
        %v2639 = vmul.f32 %v2623, %v2520
        %v2640 = vmul.f32 %v2624, %v2520
        %v2641 = vmul.f32 %v2625, %v2520
        %v2642 = vmul.f32 %v2626, %v2520
        %v2643 = vmul.f32 %v2627, %v2520
        %v2644 = vmul.f32 %v2628, %v2520
        %v2645 = vmul.f32 %v2629, %v2520
        %v2646 = vmul.f32 %v2630, %v2520
        %v2647 = vmul.f32 %v2631, %v2520
        %v2648 = vmul.f32 %v2632, %v2520
        %v2649 = vmul.f32 %v2633, %v2520
        %v2650 = vmul.f32 %v2634, %v2520
        %v2651 = vmul.f32 %v2635, %v2520
        %v2652 = vmul.f32 %v2636, %v2520
        %2654 = vrot.lane.b32.xlu0 %v2500, 32
        %v2655 = vpop.permute.xlu0 %2654
        %v2657 = vmul.f32 %v2479, %v2655
        %v2658 = vmul.f32 %v2480, %v2655
        %v2659 = vmul.f32 %v2481, %v2655
        %v2660 = vmul.f32 %v2482, %v2655
        %v2661 = vmul.f32 %v2483, %v2655
        %v2662 = vmul.f32 %v2484, %v2655
        %v2663 = vmul.f32 %v2485, %v2655
        %v2664 = vmul.f32 %v2486, %v2655
        %v2665 = vmul.f32 %v2487, %v2655
        %v2666 = vmul.f32 %v2488, %v2655
        %v2667 = vmul.f32 %v2489, %v2655
        %v2668 = vmul.f32 %v2490, %v2655
        %v2669 = vmul.f32 %v2491, %v2655
        %v2670 = vmul.f32 %v2492, %v2655
        %v2671 = vmul.f32 %v2493, %v2655
        %v2672 = vmul.f32 %v2494, %v2655
        %2689 = vrot.lane.b32.xlu0 %v2657, 96
        %v2690 = vpop.permute.xlu0 %2689
        %2691 = vrot.lane.b32.xlu0 %v2658, 96
        %v2692 = vpop.permute.xlu0 %2691
        %2693 = vrot.lane.b32.xlu0 %v2659, 96
        %v2694 = vpop.permute.xlu0 %2693
        %2695 = vrot.lane.b32.xlu0 %v2660, 96
        %v2696 = vpop.permute.xlu0 %2695
        %2697 = vrot.lane.b32.xlu0 %v2661, 96
        %v2698 = vpop.permute.xlu0 %2697
        %2699 = vrot.lane.b32.xlu0 %v2662, 96
        %v2700 = vpop.permute.xlu0 %2699
        %2701 = vrot.lane.b32.xlu0 %v2663, 96
        %v2702 = vpop.permute.xlu0 %2701
        %2703 = vrot.lane.b32.xlu0 %v2664, 96
        %v2704 = vpop.permute.xlu0 %2703
        %2705 = vrot.lane.b32.xlu0 %v2665, 96
        %v2706 = vpop.permute.xlu0 %2705
        %2707 = vrot.lane.b32.xlu0 %v2666, 96
        %v2708 = vpop.permute.xlu0 %2707
        %2709 = vrot.lane.b32.xlu0 %v2667, 96
        %v2710 = vpop.permute.xlu0 %2709
        %2711 = vrot.lane.b32.xlu0 %v2668, 96
        %v2712 = vpop.permute.xlu0 %2711
        %2713 = vrot.lane.b32.xlu0 %v2669, 96
        %v2714 = vpop.permute.xlu0 %2713
        %2715 = vrot.lane.b32.xlu0 %v2670, 96
        %v2716 = vpop.permute.xlu0 %2715
        %2717 = vrot.lane.b32.xlu0 %v2671, 96
        %v2718 = vpop.permute.xlu0 %2717
        %2719 = vrot.lane.b32.xlu0 %v2672, 96
        %v2720 = vpop.permute.xlu0 %2719
        %v2737 = vadd.f32 %v2637, %v2690
        %v2738 = vadd.f32 %v2638, %v2692
        %v2739 = vadd.f32 %v2639, %v2694
        %v2740 = vadd.f32 %v2640, %v2696
        %v2741 = vadd.f32 %v2641, %v2698
        %v2742 = vadd.f32 %v2642, %v2700
        %v2743 = vadd.f32 %v2643, %v2702
        %v2744 = vadd.f32 %v2644, %v2704
        %v2745 = vadd.f32 %v2645, %v2706
        %v2746 = vadd.f32 %v2646, %v2708
        %v2747 = vadd.f32 %v2647, %v2710
        %v2748 = vadd.f32 %v2648, %v2712
        %v2749 = vadd.f32 %v2649, %v2714
        %v2750 = vadd.f32 %v2650, %v2716
        %v2751 = vadd.f32 %v2651, %v2718
        %v2752 = vadd.f32 %v2652, %v2720
        %2769 = vrot.lane.b32.xlu0 %v2737, 32
        %v2770 = vpop.permute.xlu0 %2769
        %2771 = vrot.lane.b32.xlu0 %v2738, 32
        %v2772 = vpop.permute.xlu0 %2771
        %2773 = vrot.lane.b32.xlu0 %v2739, 32
        %v2774 = vpop.permute.xlu0 %2773
        %2775 = vrot.lane.b32.xlu0 %v2740, 32
        %v2776 = vpop.permute.xlu0 %2775
        %2777 = vrot.lane.b32.xlu0 %v2741, 32
        %v2778 = vpop.permute.xlu0 %2777
        %2779 = vrot.lane.b32.xlu0 %v2742, 32
        %v2780 = vpop.permute.xlu0 %2779
        %2781 = vrot.lane.b32.xlu0 %v2743, 32
        %v2782 = vpop.permute.xlu0 %2781
        %2783 = vrot.lane.b32.xlu0 %v2744, 32
        %v2784 = vpop.permute.xlu0 %2783
        %2785 = vrot.lane.b32.xlu0 %v2745, 32
        %v2786 = vpop.permute.xlu0 %2785
        %2787 = vrot.lane.b32.xlu0 %v2746, 32
        %v2788 = vpop.permute.xlu0 %2787
        %2789 = vrot.lane.b32.xlu0 %v2747, 32
        %v2790 = vpop.permute.xlu0 %2789
        %2791 = vrot.lane.b32.xlu0 %v2748, 32
        %v2792 = vpop.permute.xlu0 %2791
        %2793 = vrot.lane.b32.xlu0 %v2749, 32
        %v2794 = vpop.permute.xlu0 %2793
        %2795 = vrot.lane.b32.xlu0 %v2750, 32
        %v2796 = vpop.permute.xlu0 %2795
        %2797 = vrot.lane.b32.xlu0 %v2751, 32
        %v2798 = vpop.permute.xlu0 %2797
        %2799 = vrot.lane.b32.xlu0 %v2752, 32
        %v2800 = vpop.permute.xlu0 %2799
        %v2817 = vsel %vm1604, %v2605, %v2770
        %v2818 = vsel %vm1604, %v2606, %v2772
        %v2819 = vsel %vm1604, %v2607, %v2774
        %v2820 = vsel %vm1604, %v2608, %v2776
        %v2821 = vsel %vm1604, %v2609, %v2778
        %v2822 = vsel %vm1604, %v2610, %v2780
        %v2823 = vsel %vm1604, %v2611, %v2782
        %v2824 = vsel %vm1604, %v2612, %v2784
        %v2825 = vsel %vm1604, %v2613, %v2786
        %v2826 = vsel %vm1604, %v2614, %v2788
        %v2827 = vsel %vm1604, %v2615, %v2790
        %v2828 = vsel %vm1604, %v2616, %v2792
        %v2829 = vsel %vm1604, %v2617, %v2794
        %v2830 = vsel %vm1604, %v2618, %v2796
        %v2831 = vsel %vm1604, %v2619, %v2798
        %v2832 = vsel %vm1604, %v2620, %v2800
        %v2833 = vpack.c.bf16 %v2818, %v2817
        %v2834 = vpack.c.bf16 %v2820, %v2819
        %v2835 = vpack.c.bf16 %v2822, %v2821
        %v2836 = vpack.c.bf16 %v2824, %v2823
        %v2837 = vpack.c.bf16 %v2826, %v2825
        %v2838 = vpack.c.bf16 %v2828, %v2827
        %v2839 = vpack.c.bf16 %v2830, %v2829
        %v2840 = vpack.c.bf16 %v2832, %v2831
        %v2849 = vunpack.c.l.b16 %v2833
        %v2850 = vunpack.c.h.b16 %v2833
        %v2851 = vunpack.c.l.b16 %v2834
        %v2852 = vunpack.c.h.b16 %v2834
        %v2853 = vunpack.c.l.b16 %v2835
        %v2854 = vunpack.c.h.b16 %v2835
        %v2855 = vunpack.c.l.b16 %v2836
        %v2856 = vunpack.c.h.b16 %v2836
        %v2857 = vunpack.c.l.b16 %v2837
        %v2858 = vunpack.c.h.b16 %v2837
        %v2859 = vunpack.c.l.b16 %v2838
        %v2860 = vunpack.c.h.b16 %v2838
        %v2861 = vunpack.c.l.b16 %v2839
        %v2862 = vunpack.c.h.b16 %v2839
        %v2863 = vunpack.c.l.b16 %v2840
        %v2864 = vunpack.c.h.b16 %v2840
        %v2865 = vpack.c.b16 %v2849, %v2849
        %v2866 = vpack.c.b16 %v2850, %v2850
        %v2867 = vpack.c.b16 %v2851, %v2851
        %v2868 = vpack.c.b16 %v2852, %v2852
        %v2869 = vpack.c.b16 %v2853, %v2853
        %v2870 = vpack.c.b16 %v2854, %v2854
        %v2871 = vpack.c.b16 %v2855, %v2855
        %v2872 = vpack.c.b16 %v2856, %v2856
        %v2873 = vpack.c.b16 %v2857, %v2857
        %v2874 = vpack.c.b16 %v2858, %v2858
        %v2875 = vpack.c.b16 %v2859, %v2859
        %v2876 = vpack.c.b16 %v2860, %v2860
        %v2877 = vpack.c.b16 %v2861, %v2861
        %v2878 = vpack.c.b16 %v2862, %v2862
        %v2879 = vpack.c.b16 %v2863, %v2863
        %v2880 = vpack.c.b16 %v2864, %v2864
        %s2897 = scalar_lea.vmem %s453, 128 [#allocation7]
        %2898 = vst.msk [vmem:[%s2897] sm:$0xf] %vm1685, %v2865
        %2899 = vst.msk [vmem:[%s2897 + $0x4] sm:$0xf] %vm1685, %v2866
        %2900 = vst.msk [vmem:[%s2897 + $0x8] sm:$0xf] %vm1685, %v2867
        %2901 = vst.msk [vmem:[%s2897 + $0xc] sm:$0xf] %vm1685, %v2868
        %2902 = vst.msk [vmem:[%s2897 + $0x10] sm:$0xf] %vm1685, %v2869
        %2903 = vst.msk [vmem:[%s2897 + $0x14] sm:$0xf] %vm1685, %v2870
        %2904 = vst.msk [vmem:[%s2897 + $0x18] sm:$0xf] %vm1685, %v2871
        %2905 = vst.msk [vmem:[%s2897 + $0x1c] sm:$0xf] %vm1685, %v2872
        %2906 = vst.msk [vmem:[%s2897 + $0x20] sm:$0xf] %vm1685, %v2873
        %2907 = vst.msk [vmem:[%s2897 + $0x24] sm:$0xf] %vm1685, %v2874
        %2908 = vst.msk [vmem:[%s2897 + $0x28] sm:$0xf] %vm1685, %v2875
        %2909 = vst.msk [vmem:[%s2897 + $0x2c] sm:$0xf] %vm1685, %v2876
        %2910 = vst.msk [vmem:[%s2897 + $0x30] sm:$0xf] %vm1685, %v2877
        %2911 = vst.msk [vmem:[%s2897 + $0x34] sm:$0xf] %vm1685, %v2878
        %2912 = vst.msk [vmem:[%s2897 + $0x38] sm:$0xf] %vm1685, %v2879
        %2913 = vst.msk [vmem:[%s2897 + $0x3c] sm:$0xf] %vm1685, %v2880
        %2930 = vrot.lane.b32.xlu0 %v2367, 64
        %v2931 = vpop.permute.xlu0 %2930
        %2932 = vrot.lane.b32.xlu0 %v2368, 64
        %v2933 = vpop.permute.xlu0 %2932
        %2934 = vrot.lane.b32.xlu0 %v2369, 64
        %v2935 = vpop.permute.xlu0 %2934
        %2936 = vrot.lane.b32.xlu0 %v2370, 64
        %v2937 = vpop.permute.xlu0 %2936
        %2938 = vrot.lane.b32.xlu0 %v2371, 64
        %v2939 = vpop.permute.xlu0 %2938
        %2940 = vrot.lane.b32.xlu0 %v2372, 64
        %v2941 = vpop.permute.xlu0 %2940
        %2942 = vrot.lane.b32.xlu0 %v2373, 64
        %v2943 = vpop.permute.xlu0 %2942
        %2944 = vrot.lane.b32.xlu0 %v2374, 64
        %v2945 = vpop.permute.xlu0 %2944
        %2946 = vrot.lane.b32.xlu0 %v2375, 64
        %v2947 = vpop.permute.xlu0 %2946
        %2948 = vrot.lane.b32.xlu0 %v2376, 64
        %v2949 = vpop.permute.xlu0 %2948
        %2950 = vrot.lane.b32.xlu0 %v2377, 64
        %v2951 = vpop.permute.xlu0 %2950
        %2952 = vrot.lane.b32.xlu0 %v2378, 64
        %v2953 = vpop.permute.xlu0 %2952
        %2954 = vrot.lane.b32.xlu0 %v2379, 64
        %v2955 = vpop.permute.xlu0 %2954
        %2956 = vrot.lane.b32.xlu0 %v2380, 64
        %v2957 = vpop.permute.xlu0 %2956
        %2958 = vrot.lane.b32.xlu0 %v2381, 64
        %v2959 = vpop.permute.xlu0 %2958
        %2960 = vrot.lane.b32.xlu0 %v2382, 64
        %v2961 = vpop.permute.xlu0 %2960
        %v2978 = vsel %vm1168, %v2931, 0.0
        %2979 = vadd.xlane.f32.xlu0 %v2978
        %v2980 = vpop.xlane.xlu0 %2979
        %v2981 = vsel %vm1168, %v2933, 0.0
        %2982 = vadd.xlane.f32.xlu0 %v2981
        %v2983 = vpop.xlane.xlu0 %2982
        %v2984 = vsel %vm1168, %v2935, 0.0
        %2985 = vadd.xlane.f32.xlu0 %v2984
        %v2986 = vpop.xlane.xlu0 %2985
        %v2987 = vsel %vm1168, %v2937, 0.0
        %2988 = vadd.xlane.f32.xlu0 %v2987
        %v2989 = vpop.xlane.xlu0 %2988
        %v2990 = vsel %vm1168, %v2939, 0.0
        %2991 = vadd.xlane.f32.xlu0 %v2990
        %v2992 = vpop.xlane.xlu0 %2991
        %v2993 = vsel %vm1168, %v2941, 0.0
        %2994 = vadd.xlane.f32.xlu0 %v2993
        %v2995 = vpop.xlane.xlu0 %2994
        %v2996 = vsel %vm1168, %v2943, 0.0
        %2997 = vadd.xlane.f32.xlu0 %v2996
        %v2998 = vpop.xlane.xlu0 %2997
        %v2999 = vsel %vm1168, %v2945, 0.0
        %3000 = vadd.xlane.f32.xlu0 %v2999
        %v3001 = vpop.xlane.xlu0 %3000
        %v3002 = vsel %vm1168, %v2947, 0.0
        %3003 = vadd.xlane.f32.xlu0 %v3002
        %v3004 = vpop.xlane.xlu0 %3003
        %v3005 = vsel %vm1168, %v2949, 0.0
        %3006 = vadd.xlane.f32.xlu0 %v3005
        %v3007 = vpop.xlane.xlu0 %3006
        %v3008 = vsel %vm1168, %v2951, 0.0
        %3009 = vadd.xlane.f32.xlu0 %v3008
        %v3010 = vpop.xlane.xlu0 %3009
        %v3011 = vsel %vm1168, %v2953, 0.0
        %3012 = vadd.xlane.f32.xlu0 %v3011
        %v3013 = vpop.xlane.xlu0 %3012
        %v3014 = vsel %vm1168, %v2955, 0.0
        %3015 = vadd.xlane.f32.xlu0 %v3014
        %v3016 = vpop.xlane.xlu0 %3015
        %v3017 = vsel %vm1168, %v2957, 0.0
        %3018 = vadd.xlane.f32.xlu0 %v3017
        %v3019 = vpop.xlane.xlu0 %3018
        %v3020 = vsel %vm1168, %v2959, 0.0
        %3021 = vadd.xlane.f32.xlu0 %v3020
        %v3022 = vpop.xlane.xlu0 %3021
        %v3023 = vsel %vm1168, %v2961, 0.0
        %3024 = vadd.xlane.f32.xlu0 %v3023
        %v3025 = vpop.xlane.xlu0 %3024
        %v3026 = vmul.f32 %v2980, %v1217
        %v3027 = vmul.f32 %v2983, %v1217
        %v3028 = vmul.f32 %v2986, %v1217
        %v3029 = vmul.f32 %v2989, %v1217
        %v3030 = vmul.f32 %v2992, %v1217
        %v3031 = vmul.f32 %v2995, %v1217
        %v3032 = vmul.f32 %v2998, %v1217
        %v3033 = vmul.f32 %v3001, %v1217
        %v3034 = vmul.f32 %v3004, %v1217
        %v3035 = vmul.f32 %v3007, %v1217
        %v3036 = vmul.f32 %v3010, %v1217
        %v3037 = vmul.f32 %v3013, %v1217
        %v3038 = vmul.f32 %v3016, %v1217
        %v3039 = vmul.f32 %v3019, %v1217
        %v3040 = vmul.f32 %v3022, %v1217
        %v3041 = vmul.f32 %v3025, %v1217
        %v3042 = vadd.f32 %v3026, 1.1920929e-07
        %v3043 = vadd.f32 %v3027, 1.1920929e-07
        %v3044 = vadd.f32 %v3028, 1.1920929e-07
        %v3045 = vadd.f32 %v3029, 1.1920929e-07
        %v3046 = vadd.f32 %v3030, 1.1920929e-07
        %v3047 = vadd.f32 %v3031, 1.1920929e-07
        %v3048 = vadd.f32 %v3032, 1.1920929e-07
        %v3049 = vadd.f32 %v3033, 1.1920929e-07
        %v3050 = vadd.f32 %v3034, 1.1920929e-07
        %v3051 = vadd.f32 %v3035, 1.1920929e-07
        %v3052 = vadd.f32 %v3036, 1.1920929e-07
        %v3053 = vadd.f32 %v3037, 1.1920929e-07
        %v3054 = vadd.f32 %v3038, 1.1920929e-07
        %v3055 = vadd.f32 %v3039, 1.1920929e-07
        %v3056 = vadd.f32 %v3040, 1.1920929e-07
        %v3057 = vadd.f32 %v3041, 1.1920929e-07
        %v3058 = vrsqrt.pop %v3042
        %v3059 = vrsqrt.pop %v3043
        %v3060 = vrsqrt.pop %v3044
        %v3061 = vrsqrt.pop %v3045
        %v3062 = vrsqrt.pop %v3046
        %v3063 = vrsqrt.pop %v3047
        %v3064 = vrsqrt.pop %v3048
        %v3065 = vrsqrt.pop %v3049
        %v3066 = vrsqrt.pop %v3050
        %v3067 = vrsqrt.pop %v3051
        %v3068 = vrsqrt.pop %v3052
        %v3069 = vrsqrt.pop %v3053
        %v3070 = vrsqrt.pop %v3054
        %v3071 = vrsqrt.pop %v3055
        %v3072 = vrsqrt.pop %v3056
        %v3073 = vrsqrt.pop %v3057
        %v3074 = vmul.f32 %v759, %v3058
        %v3075 = vmul.f32 %v763, %v3059
        %v3076 = vmul.f32 %v769, %v3060
        %v3077 = vmul.f32 %v773, %v3061
        %v3078 = vmul.f32 %v779, %v3062
        %v3079 = vmul.f32 %v783, %v3063
        %v3080 = vmul.f32 %v789, %v3064
        %v3081 = vmul.f32 %v793, %v3065
        %v3082 = vmul.f32 %v799, %v3066
        %v3083 = vmul.f32 %v803, %v3067
        %v3084 = vmul.f32 %v809, %v3068
        %v3085 = vmul.f32 %v813, %v3069
        %v3086 = vmul.f32 %v819, %v3070
        %v3087 = vmul.f32 %v823, %v3071
        %v3088 = vmul.f32 %v829, %v3072
        %v3089 = vmul.f32 %v833, %v3073
        %v3090 = vld [vmem:[%s5 + $0x3] sm:$0x1]
        %v3091 = vld [vmem:[%s6 + $0x3] sm:$0x1]
        %v3092 = vlaneseq
        %v3093 = vshrl.u32 %v3092, 7
        %v3094 = vsub.s32 0, %v3093
        %v3095 = vrot.slane %v3090, %v3094
        %3097 = vrot.lane.b32.xlu0 %v3095, 64
        %v3098 = vpop.permute.xlu0 %3097
        %v3100 = vmul.f32 %v3074, %v3098
        %v3101 = vmul.f32 %v3075, %v3098
        %v3102 = vmul.f32 %v3076, %v3098
        %v3103 = vmul.f32 %v3077, %v3098
        %v3104 = vmul.f32 %v3078, %v3098
        %v3105 = vmul.f32 %v3079, %v3098
        %v3106 = vmul.f32 %v3080, %v3098
        %v3107 = vmul.f32 %v3081, %v3098
        %v3108 = vmul.f32 %v3082, %v3098
        %v3109 = vmul.f32 %v3083, %v3098
        %v3110 = vmul.f32 %v3084, %v3098
        %v3111 = vmul.f32 %v3085, %v3098
        %v3112 = vmul.f32 %v3086, %v3098
        %v3113 = vmul.f32 %v3087, %v3098
        %v3114 = vmul.f32 %v3088, %v3098
        %v3115 = vmul.f32 %v3089, %v3098
        %v3116 = vlaneseq
        %v3117 = vshrl.u32 %v3116, 7
        %v3118 = vsub.s32 0, %v3117
        %v3119 = vrot.slane %v3091, %v3118
        %3121 = vrot.lane.b32.xlu0 %v3119, 96
        %v3122 = vpop.permute.xlu0 %3121
        %v3124 = vmul.f32 %v3074, %v3122
        %v3125 = vmul.f32 %v3075, %v3122
        %v3126 = vmul.f32 %v3076, %v3122
        %v3127 = vmul.f32 %v3077, %v3122
        %v3128 = vmul.f32 %v3078, %v3122
        %v3129 = vmul.f32 %v3079, %v3122
        %v3130 = vmul.f32 %v3080, %v3122
        %v3131 = vmul.f32 %v3081, %v3122
        %v3132 = vmul.f32 %v3082, %v3122
        %v3133 = vmul.f32 %v3083, %v3122
        %v3134 = vmul.f32 %v3084, %v3122
        %v3135 = vmul.f32 %v3085, %v3122
        %v3136 = vmul.f32 %v3086, %v3122
        %v3137 = vmul.f32 %v3087, %v3122
        %v3138 = vmul.f32 %v3088, %v3122
        %v3139 = vmul.f32 %v3089, %v3122
        %3156 = vrot.lane.b32.xlu0 %v3124, 96
        %v3157 = vpop.permute.xlu0 %3156
        %3158 = vrot.lane.b32.xlu0 %v3125, 96
        %v3159 = vpop.permute.xlu0 %3158
        %3160 = vrot.lane.b32.xlu0 %v3126, 96
        %v3161 = vpop.permute.xlu0 %3160
        %3162 = vrot.lane.b32.xlu0 %v3127, 96
        %v3163 = vpop.permute.xlu0 %3162
        %3164 = vrot.lane.b32.xlu0 %v3128, 96
        %v3165 = vpop.permute.xlu0 %3164
        %3166 = vrot.lane.b32.xlu0 %v3129, 96
        %v3167 = vpop.permute.xlu0 %3166
        %3168 = vrot.lane.b32.xlu0 %v3130, 96
        %v3169 = vpop.permute.xlu0 %3168
        %3170 = vrot.lane.b32.xlu0 %v3131, 96
        %v3171 = vpop.permute.xlu0 %3170
        %3172 = vrot.lane.b32.xlu0 %v3132, 96
        %v3173 = vpop.permute.xlu0 %3172
        %3174 = vrot.lane.b32.xlu0 %v3133, 96
        %v3175 = vpop.permute.xlu0 %3174
        %3176 = vrot.lane.b32.xlu0 %v3134, 96
        %v3177 = vpop.permute.xlu0 %3176
        %3178 = vrot.lane.b32.xlu0 %v3135, 96
        %v3179 = vpop.permute.xlu0 %3178
        %3180 = vrot.lane.b32.xlu0 %v3136, 96
        %v3181 = vpop.permute.xlu0 %3180
        %3182 = vrot.lane.b32.xlu0 %v3137, 96
        %v3183 = vpop.permute.xlu0 %3182
        %3184 = vrot.lane.b32.xlu0 %v3138, 96
        %v3185 = vpop.permute.xlu0 %3184
        %3186 = vrot.lane.b32.xlu0 %v3139, 96
        %v3187 = vpop.permute.xlu0 %3186
        %v3204 = vadd.f32 %v3100, %v3157
        %v3205 = vadd.f32 %v3101, %v3159
        %v3206 = vadd.f32 %v3102, %v3161
        %v3207 = vadd.f32 %v3103, %v3163
        %v3208 = vadd.f32 %v3104, %v3165
        %v3209 = vadd.f32 %v3105, %v3167
        %v3210 = vadd.f32 %v3106, %v3169
        %v3211 = vadd.f32 %v3107, %v3171
        %v3212 = vadd.f32 %v3108, %v3173
        %v3213 = vadd.f32 %v3109, %v3175
        %v3214 = vadd.f32 %v3110, %v3177
        %v3215 = vadd.f32 %v3111, %v3179
        %v3216 = vadd.f32 %v3112, %v3181
        %v3217 = vadd.f32 %v3113, %v3183
        %v3218 = vadd.f32 %v3114, %v3185
        %v3219 = vadd.f32 %v3115, %v3187
        %v3220 = vsub.f32 0.0, %v3074
        %v3221 = vsub.f32 0.0, %v3075
        %v3222 = vsub.f32 0.0, %v3076
        %v3223 = vsub.f32 0.0, %v3077
        %v3224 = vsub.f32 0.0, %v3078
        %v3225 = vsub.f32 0.0, %v3079
        %v3226 = vsub.f32 0.0, %v3080
        %v3227 = vsub.f32 0.0, %v3081
        %v3228 = vsub.f32 0.0, %v3082
        %v3229 = vsub.f32 0.0, %v3083
        %v3230 = vsub.f32 0.0, %v3084
        %v3231 = vsub.f32 0.0, %v3085
        %v3232 = vsub.f32 0.0, %v3086
        %v3233 = vsub.f32 0.0, %v3087
        %v3234 = vsub.f32 0.0, %v3088
        %v3235 = vsub.f32 0.0, %v3089
        %3236 = vrot.lane.b32.xlu0 %v3119, 64
        %v3237 = vpop.permute.xlu0 %3236
        %v3239 = vmul.f32 %v3220, %v3237
        %v3240 = vmul.f32 %v3221, %v3237
        %v3241 = vmul.f32 %v3222, %v3237
        %v3242 = vmul.f32 %v3223, %v3237
        %v3243 = vmul.f32 %v3224, %v3237
        %v3244 = vmul.f32 %v3225, %v3237
        %v3245 = vmul.f32 %v3226, %v3237
        %v3246 = vmul.f32 %v3227, %v3237
        %v3247 = vmul.f32 %v3228, %v3237
        %v3248 = vmul.f32 %v3229, %v3237
        %v3249 = vmul.f32 %v3230, %v3237
        %v3250 = vmul.f32 %v3231, %v3237
        %v3251 = vmul.f32 %v3232, %v3237
        %v3252 = vmul.f32 %v3233, %v3237
        %v3253 = vmul.f32 %v3234, %v3237
        %v3254 = vmul.f32 %v3235, %v3237
        %3255 = vrot.lane.b32.xlu0 %v3095, 96
        %v3256 = vpop.permute.xlu0 %3255
        %v3258 = vmul.f32 %v3074, %v3256
        %v3259 = vmul.f32 %v3075, %v3256
        %v3260 = vmul.f32 %v3076, %v3256
        %v3261 = vmul.f32 %v3077, %v3256
        %v3262 = vmul.f32 %v3078, %v3256
        %v3263 = vmul.f32 %v3079, %v3256
        %v3264 = vmul.f32 %v3080, %v3256
        %v3265 = vmul.f32 %v3081, %v3256
        %v3266 = vmul.f32 %v3082, %v3256
        %v3267 = vmul.f32 %v3083, %v3256
        %v3268 = vmul.f32 %v3084, %v3256
        %v3269 = vmul.f32 %v3085, %v3256
        %v3270 = vmul.f32 %v3086, %v3256
        %v3271 = vmul.f32 %v3087, %v3256
        %v3272 = vmul.f32 %v3088, %v3256
        %v3273 = vmul.f32 %v3089, %v3256
        %3290 = vrot.lane.b32.xlu0 %v3258, 96
        %v3291 = vpop.permute.xlu0 %3290
        %3292 = vrot.lane.b32.xlu0 %v3259, 96
        %v3293 = vpop.permute.xlu0 %3292
        %3294 = vrot.lane.b32.xlu0 %v3260, 96
        %v3295 = vpop.permute.xlu0 %3294
        %3296 = vrot.lane.b32.xlu0 %v3261, 96
        %v3297 = vpop.permute.xlu0 %3296
        %3298 = vrot.lane.b32.xlu0 %v3262, 96
        %v3299 = vpop.permute.xlu0 %3298
        %3300 = vrot.lane.b32.xlu0 %v3263, 96
        %v3301 = vpop.permute.xlu0 %3300
        %3302 = vrot.lane.b32.xlu0 %v3264, 96
        %v3303 = vpop.permute.xlu0 %3302
        %3304 = vrot.lane.b32.xlu0 %v3265, 96
        %v3305 = vpop.permute.xlu0 %3304
        %3306 = vrot.lane.b32.xlu0 %v3266, 96
        %v3307 = vpop.permute.xlu0 %3306
        %3308 = vrot.lane.b32.xlu0 %v3267, 96
        %v3309 = vpop.permute.xlu0 %3308
        %3310 = vrot.lane.b32.xlu0 %v3268, 96
        %v3311 = vpop.permute.xlu0 %3310
        %3312 = vrot.lane.b32.xlu0 %v3269, 96
        %v3313 = vpop.permute.xlu0 %3312
        %3314 = vrot.lane.b32.xlu0 %v3270, 96
        %v3315 = vpop.permute.xlu0 %3314
        %3316 = vrot.lane.b32.xlu0 %v3271, 96
        %v3317 = vpop.permute.xlu0 %3316
        %3318 = vrot.lane.b32.xlu0 %v3272, 96
        %v3319 = vpop.permute.xlu0 %3318
        %3320 = vrot.lane.b32.xlu0 %v3273, 96
        %v3321 = vpop.permute.xlu0 %3320
        %v3338 = vadd.f32 %v3239, %v3291
        %v3339 = vadd.f32 %v3240, %v3293
        %v3340 = vadd.f32 %v3241, %v3295
        %v3341 = vadd.f32 %v3242, %v3297
        %v3342 = vadd.f32 %v3243, %v3299
        %v3343 = vadd.f32 %v3244, %v3301
        %v3344 = vadd.f32 %v3245, %v3303
        %v3345 = vadd.f32 %v3246, %v3305
        %v3346 = vadd.f32 %v3247, %v3307
        %v3347 = vadd.f32 %v3248, %v3309
        %v3348 = vadd.f32 %v3249, %v3311
        %v3349 = vadd.f32 %v3250, %v3313
        %v3350 = vadd.f32 %v3251, %v3315
        %v3351 = vadd.f32 %v3252, %v3317
        %v3352 = vadd.f32 %v3253, %v3319
        %v3353 = vadd.f32 %v3254, %v3321
        %3370 = vrot.lane.b32.xlu0 %v3204, 64
        %v3371 = vpop.permute.xlu0 %3370
        %3372 = vrot.lane.b32.xlu0 %v3205, 64
        %v3373 = vpop.permute.xlu0 %3372
        %3374 = vrot.lane.b32.xlu0 %v3206, 64
        %v3375 = vpop.permute.xlu0 %3374
        %3376 = vrot.lane.b32.xlu0 %v3207, 64
        %v3377 = vpop.permute.xlu0 %3376
        %3378 = vrot.lane.b32.xlu0 %v3208, 64
        %v3379 = vpop.permute.xlu0 %3378
        %3380 = vrot.lane.b32.xlu0 %v3209, 64
        %v3381 = vpop.permute.xlu0 %3380
        %3382 = vrot.lane.b32.xlu0 %v3210, 64
        %v3383 = vpop.permute.xlu0 %3382
        %3384 = vrot.lane.b32.xlu0 %v3211, 64
        %v3385 = vpop.permute.xlu0 %3384
        %3386 = vrot.lane.b32.xlu0 %v3212, 64
        %v3387 = vpop.permute.xlu0 %3386
        %3388 = vrot.lane.b32.xlu0 %v3213, 64
        %v3389 = vpop.permute.xlu0 %3388
        %3390 = vrot.lane.b32.xlu0 %v3214, 64
        %v3391 = vpop.permute.xlu0 %3390
        %3392 = vrot.lane.b32.xlu0 %v3215, 64
        %v3393 = vpop.permute.xlu0 %3392
        %3394 = vrot.lane.b32.xlu0 %v3216, 64
        %v3395 = vpop.permute.xlu0 %3394
        %3396 = vrot.lane.b32.xlu0 %v3217, 64
        %v3397 = vpop.permute.xlu0 %3396
        %3398 = vrot.lane.b32.xlu0 %v3218, 64
        %v3399 = vpop.permute.xlu0 %3398
        %3400 = vrot.lane.b32.xlu0 %v3219, 64
        %v3401 = vpop.permute.xlu0 %3400
        %3434 = vrot.lane.b32.xlu0 %v3338, 96
        %v3435 = vpop.permute.xlu0 %3434
        %3436 = vrot.lane.b32.xlu0 %v3339, 96
        %v3437 = vpop.permute.xlu0 %3436
        %3438 = vrot.lane.b32.xlu0 %v3340, 96
        %v3439 = vpop.permute.xlu0 %3438
        %3440 = vrot.lane.b32.xlu0 %v3341, 96
        %v3441 = vpop.permute.xlu0 %3440
        %3442 = vrot.lane.b32.xlu0 %v3342, 96
        %v3443 = vpop.permute.xlu0 %3442
        %3444 = vrot.lane.b32.xlu0 %v3343, 96
        %v3445 = vpop.permute.xlu0 %3444
        %3446 = vrot.lane.b32.xlu0 %v3344, 96
        %v3447 = vpop.permute.xlu0 %3446
        %3448 = vrot.lane.b32.xlu0 %v3345, 96
        %v3449 = vpop.permute.xlu0 %3448
        %3450 = vrot.lane.b32.xlu0 %v3346, 96
        %v3451 = vpop.permute.xlu0 %3450
        %3452 = vrot.lane.b32.xlu0 %v3347, 96
        %v3453 = vpop.permute.xlu0 %3452
        %3454 = vrot.lane.b32.xlu0 %v3348, 96
        %v3455 = vpop.permute.xlu0 %3454
        %3456 = vrot.lane.b32.xlu0 %v3349, 96
        %v3457 = vpop.permute.xlu0 %3456
        %3458 = vrot.lane.b32.xlu0 %v3350, 96
        %v3459 = vpop.permute.xlu0 %3458
        %3460 = vrot.lane.b32.xlu0 %v3351, 96
        %v3461 = vpop.permute.xlu0 %3460
        %3462 = vrot.lane.b32.xlu0 %v3352, 96
        %v3463 = vpop.permute.xlu0 %3462
        %3464 = vrot.lane.b32.xlu0 %v3353, 96
        %v3465 = vpop.permute.xlu0 %3464
        %v3482 = vsel %vm1604, %v3371, %v3435
        %v3483 = vsel %vm1604, %v3373, %v3437
        %v3484 = vsel %vm1604, %v3375, %v3439
        %v3485 = vsel %vm1604, %v3377, %v3441
        %v3486 = vsel %vm1604, %v3379, %v3443
        %v3487 = vsel %vm1604, %v3381, %v3445
        %v3488 = vsel %vm1604, %v3383, %v3447
        %v3489 = vsel %vm1604, %v3385, %v3449
        %v3490 = vsel %vm1604, %v3387, %v3451
        %v3491 = vsel %vm1604, %v3389, %v3453
        %v3492 = vsel %vm1604, %v3391, %v3455
        %v3493 = vsel %vm1604, %v3393, %v3457
        %v3494 = vsel %vm1604, %v3395, %v3459
        %v3495 = vsel %vm1604, %v3397, %v3461
        %v3496 = vsel %vm1604, %v3399, %v3463
        %v3497 = vsel %vm1604, %v3401, %v3465
        %v3498 = vpack.c.bf16 %v3483, %v3482
        %v3499 = vpack.c.bf16 %v3485, %v3484
        %v3500 = vpack.c.bf16 %v3487, %v3486
        %v3501 = vpack.c.bf16 %v3489, %v3488
        %v3502 = vpack.c.bf16 %v3491, %v3490
        %v3503 = vpack.c.bf16 %v3493, %v3492
        %v3504 = vpack.c.bf16 %v3495, %v3494
        %v3505 = vpack.c.bf16 %v3497, %v3496
        %v3514 = vunpack.c.l.b16 %v3498
        %v3515 = vunpack.c.h.b16 %v3498
        %v3516 = vunpack.c.l.b16 %v3499
        %v3517 = vunpack.c.h.b16 %v3499
        %v3518 = vunpack.c.l.b16 %v3500
        %v3519 = vunpack.c.h.b16 %v3500
        %v3520 = vunpack.c.l.b16 %v3501
        %v3521 = vunpack.c.h.b16 %v3501
        %v3522 = vunpack.c.l.b16 %v3502
        %v3523 = vunpack.c.h.b16 %v3502
        %v3524 = vunpack.c.l.b16 %v3503
        %v3525 = vunpack.c.h.b16 %v3503
        %v3526 = vunpack.c.l.b16 %v3504
        %v3527 = vunpack.c.h.b16 %v3504
        %v3528 = vunpack.c.l.b16 %v3505
        %v3529 = vunpack.c.h.b16 %v3505
        %v3530 = vpack.c.b16 %v3514, %v3514
        %v3531 = vpack.c.b16 %v3515, %v3515
        %v3532 = vpack.c.b16 %v3516, %v3516
        %v3533 = vpack.c.b16 %v3517, %v3517
        %v3534 = vpack.c.b16 %v3518, %v3518
        %v3535 = vpack.c.b16 %v3519, %v3519
        %v3536 = vpack.c.b16 %v3520, %v3520
        %v3537 = vpack.c.b16 %v3521, %v3521
        %v3538 = vpack.c.b16 %v3522, %v3522
        %v3539 = vpack.c.b16 %v3523, %v3523
        %v3540 = vpack.c.b16 %v3524, %v3524
        %v3541 = vpack.c.b16 %v3525, %v3525
        %v3542 = vpack.c.b16 %v3526, %v3526
        %v3543 = vpack.c.b16 %v3527, %v3527
        %v3544 = vpack.c.b16 %v3528, %v3528
        %v3545 = vpack.c.b16 %v3529, %v3529
        %s3562 = scalar_lea.vmem %s453, 192 [#allocation7]
        %3563 = vst.msk [vmem:[%s3562] sm:$0xf] %vm1685, %v3530
        %3564 = vst.msk [vmem:[%s3562 + $0x4] sm:$0xf] %vm1685, %v3531
        %3565 = vst.msk [vmem:[%s3562 + $0x8] sm:$0xf] %vm1685, %v3532
        %3566 = vst.msk [vmem:[%s3562 + $0xc] sm:$0xf] %vm1685, %v3533
        %3567 = vst.msk [vmem:[%s3562 + $0x10] sm:$0xf] %vm1685, %v3534
        %3568 = vst.msk [vmem:[%s3562 + $0x14] sm:$0xf] %vm1685, %v3535
        %3569 = vst.msk [vmem:[%s3562 + $0x18] sm:$0xf] %vm1685, %v3536
        %3570 = vst.msk [vmem:[%s3562 + $0x1c] sm:$0xf] %vm1685, %v3537
        %3571 = vst.msk [vmem:[%s3562 + $0x20] sm:$0xf] %vm1685, %v3538
        %3572 = vst.msk [vmem:[%s3562 + $0x24] sm:$0xf] %vm1685, %v3539
        %3573 = vst.msk [vmem:[%s3562 + $0x28] sm:$0xf] %vm1685, %v3540
        %3574 = vst.msk [vmem:[%s3562 + $0x2c] sm:$0xf] %vm1685, %v3541
        %3575 = vst.msk [vmem:[%s3562 + $0x30] sm:$0xf] %vm1685, %v3542
        %3576 = vst.msk [vmem:[%s3562 + $0x34] sm:$0xf] %vm1685, %v3543
        %3577 = vst.msk [vmem:[%s3562 + $0x38] sm:$0xf] %vm1685, %v3544
        %3578 = vst.msk [vmem:[%s3562 + $0x3c] sm:$0xf] %vm1685, %v3545
        %v3579 = vmul.f32 %v1074, %v1074
        %v3580 = vmul.f32 %v1078, %v1078
        %v3581 = vmul.f32 %v1084, %v1084
        %v3582 = vmul.f32 %v1088, %v1088
        %v3583 = vmul.f32 %v1094, %v1094
        %v3584 = vmul.f32 %v1098, %v1098
        %v3585 = vmul.f32 %v1104, %v1104
        %v3586 = vmul.f32 %v1108, %v1108
        %v3587 = vmul.f32 %v1114, %v1114
        %v3588 = vmul.f32 %v1118, %v1118
        %v3589 = vmul.f32 %v1124, %v1124
        %v3590 = vmul.f32 %v1128, %v1128
        %v3591 = vmul.f32 %v1134, %v1134
        %v3592 = vmul.f32 %v1138, %v1138
        %v3593 = vmul.f32 %v1144, %v1144
        %v3594 = vmul.f32 %v1148, %v1148
        %v3595 = vsel %vm1168, %v3579, 0.0
        %3596 = vadd.xlane.f32.xlu0 %v3595
        %v3597 = vpop.xlane.xlu0 %3596
        %v3598 = vsel %vm1168, %v3580, 0.0
        %3599 = vadd.xlane.f32.xlu0 %v3598
        %v3600 = vpop.xlane.xlu0 %3599
        %v3601 = vsel %vm1168, %v3581, 0.0
        %3602 = vadd.xlane.f32.xlu0 %v3601
        %v3603 = vpop.xlane.xlu0 %3602
        %v3604 = vsel %vm1168, %v3582, 0.0
        %3605 = vadd.xlane.f32.xlu0 %v3604
        %v3606 = vpop.xlane.xlu0 %3605
        %v3607 = vsel %vm1168, %v3583, 0.0
        %3608 = vadd.xlane.f32.xlu0 %v3607
        %v3609 = vpop.xlane.xlu0 %3608
        %v3610 = vsel %vm1168, %v3584, 0.0
        %3611 = vadd.xlane.f32.xlu0 %v3610
        %v3612 = vpop.xlane.xlu0 %3611
        %v3613 = vsel %vm1168, %v3585, 0.0
        %3614 = vadd.xlane.f32.xlu0 %v3613
        %v3615 = vpop.xlane.xlu0 %3614
        %v3616 = vsel %vm1168, %v3586, 0.0
        %3617 = vadd.xlane.f32.xlu0 %v3616
        %v3618 = vpop.xlane.xlu0 %3617
        %v3619 = vsel %vm1168, %v3587, 0.0
        %3620 = vadd.xlane.f32.xlu0 %v3619
        %v3621 = vpop.xlane.xlu0 %3620
        %v3622 = vsel %vm1168, %v3588, 0.0
        %3623 = vadd.xlane.f32.xlu0 %v3622
        %v3624 = vpop.xlane.xlu0 %3623
        %v3625 = vsel %vm1168, %v3589, 0.0
        %3626 = vadd.xlane.f32.xlu0 %v3625
        %v3627 = vpop.xlane.xlu0 %3626
        %v3628 = vsel %vm1168, %v3590, 0.0
        %3629 = vadd.xlane.f32.xlu0 %v3628
        %v3630 = vpop.xlane.xlu0 %3629
        %v3631 = vsel %vm1168, %v3591, 0.0
        %3632 = vadd.xlane.f32.xlu0 %v3631
        %v3633 = vpop.xlane.xlu0 %3632
        %v3634 = vsel %vm1168, %v3592, 0.0
        %3635 = vadd.xlane.f32.xlu0 %v3634
        %v3636 = vpop.xlane.xlu0 %3635
        %v3637 = vsel %vm1168, %v3593, 0.0
        %3638 = vadd.xlane.f32.xlu0 %v3637
        %v3639 = vpop.xlane.xlu0 %3638
        %v3640 = vsel %vm1168, %v3594, 0.0
        %3641 = vadd.xlane.f32.xlu0 %v3640
        %v3642 = vpop.xlane.xlu0 %3641
        %v3643 = vmul.f32 %v3597, %v1217
        %v3644 = vmul.f32 %v3600, %v1217
        %v3645 = vmul.f32 %v3603, %v1217
        %v3646 = vmul.f32 %v3606, %v1217
        %v3647 = vmul.f32 %v3609, %v1217
        %v3648 = vmul.f32 %v3612, %v1217
        %v3649 = vmul.f32 %v3615, %v1217
        %v3650 = vmul.f32 %v3618, %v1217
        %v3651 = vmul.f32 %v3621, %v1217
        %v3652 = vmul.f32 %v3624, %v1217
        %v3653 = vmul.f32 %v3627, %v1217
        %v3654 = vmul.f32 %v3630, %v1217
        %v3655 = vmul.f32 %v3633, %v1217
        %v3656 = vmul.f32 %v3636, %v1217
        %v3657 = vmul.f32 %v3639, %v1217
        %v3658 = vmul.f32 %v3642, %v1217
        %v3659 = vadd.f32 %v3643, 1.1920929e-07
        %v3660 = vadd.f32 %v3644, 1.1920929e-07
        %v3661 = vadd.f32 %v3645, 1.1920929e-07
        %v3662 = vadd.f32 %v3646, 1.1920929e-07
        %v3663 = vadd.f32 %v3647, 1.1920929e-07
        %v3664 = vadd.f32 %v3648, 1.1920929e-07
        %v3665 = vadd.f32 %v3649, 1.1920929e-07
        %v3666 = vadd.f32 %v3650, 1.1920929e-07
        %v3667 = vadd.f32 %v3651, 1.1920929e-07
        %v3668 = vadd.f32 %v3652, 1.1920929e-07
        %v3669 = vadd.f32 %v3653, 1.1920929e-07
        %v3670 = vadd.f32 %v3654, 1.1920929e-07
        %v3671 = vadd.f32 %v3655, 1.1920929e-07
        %v3672 = vadd.f32 %v3656, 1.1920929e-07
        %v3673 = vadd.f32 %v3657, 1.1920929e-07
        %v3674 = vadd.f32 %v3658, 1.1920929e-07
        %v3675 = vrsqrt.pop %v3659
        %v3676 = vrsqrt.pop %v3660
        %v3677 = vrsqrt.pop %v3661
        %v3678 = vrsqrt.pop %v3662
        %v3679 = vrsqrt.pop %v3663
        %v3680 = vrsqrt.pop %v3664
        %v3681 = vrsqrt.pop %v3665
        %v3682 = vrsqrt.pop %v3666
        %v3683 = vrsqrt.pop %v3667
        %v3684 = vrsqrt.pop %v3668
        %v3685 = vrsqrt.pop %v3669
        %v3686 = vrsqrt.pop %v3670
        %v3687 = vrsqrt.pop %v3671
        %v3688 = vrsqrt.pop %v3672
        %v3689 = vrsqrt.pop %v3673
        %v3690 = vrsqrt.pop %v3674
        %v3691 = vmul.f32 %v1074, %v3675
        %v3692 = vmul.f32 %v1078, %v3676
        %v3693 = vmul.f32 %v1084, %v3677
        %v3694 = vmul.f32 %v1088, %v3678
        %v3695 = vmul.f32 %v1094, %v3679
        %v3696 = vmul.f32 %v1098, %v3680
        %v3697 = vmul.f32 %v1104, %v3681
        %v3698 = vmul.f32 %v1108, %v3682
        %v3699 = vmul.f32 %v1114, %v3683
        %v3700 = vmul.f32 %v1118, %v3684
        %v3701 = vmul.f32 %v1124, %v3685
        %v3702 = vmul.f32 %v1128, %v3686
        %v3703 = vmul.f32 %v1134, %v3687
        %v3704 = vmul.f32 %v1138, %v3688
        %v3705 = vmul.f32 %v1144, %v3689
        %v3706 = vmul.f32 %v1148, %v3690
        %v3707 = vld [vmem:[%s7] sm:$0x1]
        %v3708 = vld [vmem:[%s8] sm:$0x1]
        %v3709 = vlaneseq
        %v3710 = vshrl.u32 %v3709, 7
        %v3711 = vsub.s32 0, %v3710
        %v3712 = vrot.slane %v3707, %v3711
        %v3713 = vmul.f32 %v3691, %v3712
        %v3714 = vmul.f32 %v3692, %v3712
        %v3715 = vmul.f32 %v3693, %v3712
        %v3716 = vmul.f32 %v3694, %v3712
        %v3717 = vmul.f32 %v3695, %v3712
        %v3718 = vmul.f32 %v3696, %v3712
        %v3719 = vmul.f32 %v3697, %v3712
        %v3720 = vmul.f32 %v3698, %v3712
        %v3721 = vmul.f32 %v3699, %v3712
        %v3722 = vmul.f32 %v3700, %v3712
        %v3723 = vmul.f32 %v3701, %v3712
        %v3724 = vmul.f32 %v3702, %v3712
        %v3725 = vmul.f32 %v3703, %v3712
        %v3726 = vmul.f32 %v3704, %v3712
        %v3727 = vmul.f32 %v3705, %v3712
        %v3728 = vmul.f32 %v3706, %v3712
        %v3729 = vlaneseq
        %v3730 = vshrl.u32 %v3729, 7
        %v3731 = vsub.s32 0, %v3730
        %v3732 = vrot.slane %v3708, %v3731
        %3734 = vrot.lane.b32.xlu0 %v3732, 32
        %v3735 = vpop.permute.xlu0 %3734
        %v3737 = vmul.f32 %v3691, %v3735
        %v3738 = vmul.f32 %v3692, %v3735
        %v3739 = vmul.f32 %v3693, %v3735
        %v3740 = vmul.f32 %v3694, %v3735
        %v3741 = vmul.f32 %v3695, %v3735
        %v3742 = vmul.f32 %v3696, %v3735
        %v3743 = vmul.f32 %v3697, %v3735
        %v3744 = vmul.f32 %v3698, %v3735
        %v3745 = vmul.f32 %v3699, %v3735
        %v3746 = vmul.f32 %v3700, %v3735
        %v3747 = vmul.f32 %v3701, %v3735
        %v3748 = vmul.f32 %v3702, %v3735
        %v3749 = vmul.f32 %v3703, %v3735
        %v3750 = vmul.f32 %v3704, %v3735
        %v3751 = vmul.f32 %v3705, %v3735
        %v3752 = vmul.f32 %v3706, %v3735
        %3769 = vrot.lane.b32.xlu0 %v3737, 96
        %v3770 = vpop.permute.xlu0 %3769
        %3771 = vrot.lane.b32.xlu0 %v3738, 96
        %v3772 = vpop.permute.xlu0 %3771
        %3773 = vrot.lane.b32.xlu0 %v3739, 96
        %v3774 = vpop.permute.xlu0 %3773
        %3775 = vrot.lane.b32.xlu0 %v3740, 96
        %v3776 = vpop.permute.xlu0 %3775
        %3777 = vrot.lane.b32.xlu0 %v3741, 96
        %v3778 = vpop.permute.xlu0 %3777
        %3779 = vrot.lane.b32.xlu0 %v3742, 96
        %v3780 = vpop.permute.xlu0 %3779
        %3781 = vrot.lane.b32.xlu0 %v3743, 96
        %v3782 = vpop.permute.xlu0 %3781
        %3783 = vrot.lane.b32.xlu0 %v3744, 96
        %v3784 = vpop.permute.xlu0 %3783
        %3785 = vrot.lane.b32.xlu0 %v3745, 96
        %v3786 = vpop.permute.xlu0 %3785
        %3787 = vrot.lane.b32.xlu0 %v3746, 96
        %v3788 = vpop.permute.xlu0 %3787
        %3789 = vrot.lane.b32.xlu0 %v3747, 96
        %v3790 = vpop.permute.xlu0 %3789
        %3791 = vrot.lane.b32.xlu0 %v3748, 96
        %v3792 = vpop.permute.xlu0 %3791
        %3793 = vrot.lane.b32.xlu0 %v3749, 96
        %v3794 = vpop.permute.xlu0 %3793
        %3795 = vrot.lane.b32.xlu0 %v3750, 96
        %v3796 = vpop.permute.xlu0 %3795
        %3797 = vrot.lane.b32.xlu0 %v3751, 96
        %v3798 = vpop.permute.xlu0 %3797
        %3799 = vrot.lane.b32.xlu0 %v3752, 96
        %v3800 = vpop.permute.xlu0 %3799
        %v3817 = vadd.f32 %v3713, %v3770
        %v3818 = vadd.f32 %v3714, %v3772
        %v3819 = vadd.f32 %v3715, %v3774
        %v3820 = vadd.f32 %v3716, %v3776
        %v3821 = vadd.f32 %v3717, %v3778
        %v3822 = vadd.f32 %v3718, %v3780
        %v3823 = vadd.f32 %v3719, %v3782
        %v3824 = vadd.f32 %v3720, %v3784
        %v3825 = vadd.f32 %v3721, %v3786
        %v3826 = vadd.f32 %v3722, %v3788
        %v3827 = vadd.f32 %v3723, %v3790
        %v3828 = vadd.f32 %v3724, %v3792
        %v3829 = vadd.f32 %v3725, %v3794
        %v3830 = vadd.f32 %v3726, %v3796
        %v3831 = vadd.f32 %v3727, %v3798
        %v3832 = vadd.f32 %v3728, %v3800
        %v3833 = vsub.f32 0.0, %v3691
        %v3834 = vsub.f32 0.0, %v3692
        %v3835 = vsub.f32 0.0, %v3693
        %v3836 = vsub.f32 0.0, %v3694
        %v3837 = vsub.f32 0.0, %v3695
        %v3838 = vsub.f32 0.0, %v3696
        %v3839 = vsub.f32 0.0, %v3697
        %v3840 = vsub.f32 0.0, %v3698
        %v3841 = vsub.f32 0.0, %v3699
        %v3842 = vsub.f32 0.0, %v3700
        %v3843 = vsub.f32 0.0, %v3701
        %v3844 = vsub.f32 0.0, %v3702
        %v3845 = vsub.f32 0.0, %v3703
        %v3846 = vsub.f32 0.0, %v3704
        %v3847 = vsub.f32 0.0, %v3705
        %v3848 = vsub.f32 0.0, %v3706
        %v3849 = vmul.f32 %v3833, %v3732
        %v3850 = vmul.f32 %v3834, %v3732
        %v3851 = vmul.f32 %v3835, %v3732
        %v3852 = vmul.f32 %v3836, %v3732
        %v3853 = vmul.f32 %v3837, %v3732
        %v3854 = vmul.f32 %v3838, %v3732
        %v3855 = vmul.f32 %v3839, %v3732
        %v3856 = vmul.f32 %v3840, %v3732
        %v3857 = vmul.f32 %v3841, %v3732
        %v3858 = vmul.f32 %v3842, %v3732
        %v3859 = vmul.f32 %v3843, %v3732
        %v3860 = vmul.f32 %v3844, %v3732
        %v3861 = vmul.f32 %v3845, %v3732
        %v3862 = vmul.f32 %v3846, %v3732
        %v3863 = vmul.f32 %v3847, %v3732
        %v3864 = vmul.f32 %v3848, %v3732
        %3866 = vrot.lane.b32.xlu0 %v3712, 32
        %v3867 = vpop.permute.xlu0 %3866
        %v3869 = vmul.f32 %v3691, %v3867
        %v3870 = vmul.f32 %v3692, %v3867
        %v3871 = vmul.f32 %v3693, %v3867
        %v3872 = vmul.f32 %v3694, %v3867
        %v3873 = vmul.f32 %v3695, %v3867
        %v3874 = vmul.f32 %v3696, %v3867
        %v3875 = vmul.f32 %v3697, %v3867
        %v3876 = vmul.f32 %v3698, %v3867
        %v3877 = vmul.f32 %v3699, %v3867
        %v3878 = vmul.f32 %v3700, %v3867
        %v3879 = vmul.f32 %v3701, %v3867
        %v3880 = vmul.f32 %v3702, %v3867
        %v3881 = vmul.f32 %v3703, %v3867
        %v3882 = vmul.f32 %v3704, %v3867
        %v3883 = vmul.f32 %v3705, %v3867
        %v3884 = vmul.f32 %v3706, %v3867
        %3901 = vrot.lane.b32.xlu0 %v3869, 96
        %v3902 = vpop.permute.xlu0 %3901
        %3903 = vrot.lane.b32.xlu0 %v3870, 96
        %v3904 = vpop.permute.xlu0 %3903
        %3905 = vrot.lane.b32.xlu0 %v3871, 96
        %v3906 = vpop.permute.xlu0 %3905
        %3907 = vrot.lane.b32.xlu0 %v3872, 96
        %v3908 = vpop.permute.xlu0 %3907
        %3909 = vrot.lane.b32.xlu0 %v3873, 96
        %v3910 = vpop.permute.xlu0 %3909
        %3911 = vrot.lane.b32.xlu0 %v3874, 96
        %v3912 = vpop.permute.xlu0 %3911
        %3913 = vrot.lane.b32.xlu0 %v3875, 96
        %v3914 = vpop.permute.xlu0 %3913
        %3915 = vrot.lane.b32.xlu0 %v3876, 96
        %v3916 = vpop.permute.xlu0 %3915
        %3917 = vrot.lane.b32.xlu0 %v3877, 96
        %v3918 = vpop.permute.xlu0 %3917
        %3919 = vrot.lane.b32.xlu0 %v3878, 96
        %v3920 = vpop.permute.xlu0 %3919
        %3921 = vrot.lane.b32.xlu0 %v3879, 96
        %v3922 = vpop.permute.xlu0 %3921
        %3923 = vrot.lane.b32.xlu0 %v3880, 96
        %v3924 = vpop.permute.xlu0 %3923
        %3925 = vrot.lane.b32.xlu0 %v3881, 96
        %v3926 = vpop.permute.xlu0 %3925
        %3927 = vrot.lane.b32.xlu0 %v3882, 96
        %v3928 = vpop.permute.xlu0 %3927
        %3929 = vrot.lane.b32.xlu0 %v3883, 96
        %v3930 = vpop.permute.xlu0 %3929
        %3931 = vrot.lane.b32.xlu0 %v3884, 96
        %v3932 = vpop.permute.xlu0 %3931
        %v3949 = vadd.f32 %v3849, %v3902
        %v3950 = vadd.f32 %v3850, %v3904
        %v3951 = vadd.f32 %v3851, %v3906
        %v3952 = vadd.f32 %v3852, %v3908
        %v3953 = vadd.f32 %v3853, %v3910
        %v3954 = vadd.f32 %v3854, %v3912
        %v3955 = vadd.f32 %v3855, %v3914
        %v3956 = vadd.f32 %v3856, %v3916
        %v3957 = vadd.f32 %v3857, %v3918
        %v3958 = vadd.f32 %v3858, %v3920
        %v3959 = vadd.f32 %v3859, %v3922
        %v3960 = vadd.f32 %v3860, %v3924
        %v3961 = vadd.f32 %v3861, %v3926
        %v3962 = vadd.f32 %v3862, %v3928
        %v3963 = vadd.f32 %v3863, %v3930
        %v3964 = vadd.f32 %v3864, %v3932
        %3981 = vrot.lane.b32.xlu0 %v3949, 32
        %v3982 = vpop.permute.xlu0 %3981
        %3983 = vrot.lane.b32.xlu0 %v3950, 32
        %v3984 = vpop.permute.xlu0 %3983
        %3985 = vrot.lane.b32.xlu0 %v3951, 32
        %v3986 = vpop.permute.xlu0 %3985
        %3987 = vrot.lane.b32.xlu0 %v3952, 32
        %v3988 = vpop.permute.xlu0 %3987
        %3989 = vrot.lane.b32.xlu0 %v3953, 32
        %v3990 = vpop.permute.xlu0 %3989
        %3991 = vrot.lane.b32.xlu0 %v3954, 32
        %v3992 = vpop.permute.xlu0 %3991
        %3993 = vrot.lane.b32.xlu0 %v3955, 32
        %v3994 = vpop.permute.xlu0 %3993
        %3995 = vrot.lane.b32.xlu0 %v3956, 32
        %v3996 = vpop.permute.xlu0 %3995
        %3997 = vrot.lane.b32.xlu0 %v3957, 32
        %v3998 = vpop.permute.xlu0 %3997
        %3999 = vrot.lane.b32.xlu0 %v3958, 32
        %v4000 = vpop.permute.xlu0 %3999
        %4001 = vrot.lane.b32.xlu0 %v3959, 32
        %v4002 = vpop.permute.xlu0 %4001
        %4003 = vrot.lane.b32.xlu0 %v3960, 32
        %v4004 = vpop.permute.xlu0 %4003
        %4005 = vrot.lane.b32.xlu0 %v3961, 32
        %v4006 = vpop.permute.xlu0 %4005
        %4007 = vrot.lane.b32.xlu0 %v3962, 32
        %v4008 = vpop.permute.xlu0 %4007
        %4009 = vrot.lane.b32.xlu0 %v3963, 32
        %v4010 = vpop.permute.xlu0 %4009
        %4011 = vrot.lane.b32.xlu0 %v3964, 32
        %v4012 = vpop.permute.xlu0 %4011
        %v4029 = vsel %vm1604, %v3817, %v3982
        %v4030 = vsel %vm1604, %v3818, %v3984
        %v4031 = vsel %vm1604, %v3819, %v3986
        %v4032 = vsel %vm1604, %v3820, %v3988
        %v4033 = vsel %vm1604, %v3821, %v3990
        %v4034 = vsel %vm1604, %v3822, %v3992
        %v4035 = vsel %vm1604, %v3823, %v3994
        %v4036 = vsel %vm1604, %v3824, %v3996
        %v4037 = vsel %vm1604, %v3825, %v3998
        %v4038 = vsel %vm1604, %v3826, %v4000
        %v4039 = vsel %vm1604, %v3827, %v4002
        %v4040 = vsel %vm1604, %v3828, %v4004
        %v4041 = vsel %vm1604, %v3829, %v4006
        %v4042 = vsel %vm1604, %v3830, %v4008
        %v4043 = vsel %vm1604, %v3831, %v4010
        %v4044 = vsel %vm1604, %v3832, %v4012
        %v4045 = vpack.c.bf16 %v4030, %v4029
        %v4046 = vpack.c.bf16 %v4032, %v4031
        %v4047 = vpack.c.bf16 %v4034, %v4033
        %v4048 = vpack.c.bf16 %v4036, %v4035
        %v4049 = vpack.c.bf16 %v4038, %v4037
        %v4050 = vpack.c.bf16 %v4040, %v4039
        %v4051 = vpack.c.bf16 %v4042, %v4041
        %v4052 = vpack.c.bf16 %v4044, %v4043
        %v4061 = vunpack.c.l.b16 %v4045
        %v4062 = vunpack.c.h.b16 %v4045
        %v4063 = vunpack.c.l.b16 %v4046
        %v4064 = vunpack.c.h.b16 %v4046
        %v4065 = vunpack.c.l.b16 %v4047
        %v4066 = vunpack.c.h.b16 %v4047
        %v4067 = vunpack.c.l.b16 %v4048
        %v4068 = vunpack.c.h.b16 %v4048
        %v4069 = vunpack.c.l.b16 %v4049
        %v4070 = vunpack.c.h.b16 %v4049
        %v4071 = vunpack.c.l.b16 %v4050
        %v4072 = vunpack.c.h.b16 %v4050
        %v4073 = vunpack.c.l.b16 %v4051
        %v4074 = vunpack.c.h.b16 %v4051
        %v4075 = vunpack.c.l.b16 %v4052
        %v4076 = vunpack.c.h.b16 %v4052
        %v4077 = vpack.c.b16 %v4061, %v4061
        %v4078 = vpack.c.b16 %v4062, %v4062
        %v4079 = vpack.c.b16 %v4063, %v4063
        %v4080 = vpack.c.b16 %v4064, %v4064
        %v4081 = vpack.c.b16 %v4065, %v4065
        %v4082 = vpack.c.b16 %v4066, %v4066
        %v4083 = vpack.c.b16 %v4067, %v4067
        %v4084 = vpack.c.b16 %v4068, %v4068
        %v4085 = vpack.c.b16 %v4069, %v4069
        %v4086 = vpack.c.b16 %v4070, %v4070
        %v4087 = vpack.c.b16 %v4071, %v4071
        %v4088 = vpack.c.b16 %v4072, %v4072
        %v4089 = vpack.c.b16 %v4073, %v4073
        %v4090 = vpack.c.b16 %v4074, %v4074
        %v4091 = vpack.c.b16 %v4075, %v4075
        %v4092 = vpack.c.b16 %v4076, %v4076
        %4109 = vst.msk [vmem:[%s459] sm:$0xf] %vm1685, %v4077
        %4110 = vst.msk [vmem:[%s459 + $0x4] sm:$0xf] %vm1685, %v4078
        %4111 = vst.msk [vmem:[%s459 + $0x8] sm:$0xf] %vm1685, %v4079
        %4112 = vst.msk [vmem:[%s459 + $0xc] sm:$0xf] %vm1685, %v4080
        %4113 = vst.msk [vmem:[%s459 + $0x10] sm:$0xf] %vm1685, %v4081
        %4114 = vst.msk [vmem:[%s459 + $0x14] sm:$0xf] %vm1685, %v4082
        %4115 = vst.msk [vmem:[%s459 + $0x18] sm:$0xf] %vm1685, %v4083
        %4116 = vst.msk [vmem:[%s459 + $0x1c] sm:$0xf] %vm1685, %v4084
        %4117 = vst.msk [vmem:[%s459 + $0x20] sm:$0xf] %vm1685, %v4085
        %4118 = vst.msk [vmem:[%s459 + $0x24] sm:$0xf] %vm1685, %v4086
        %4119 = vst.msk [vmem:[%s459 + $0x28] sm:$0xf] %vm1685, %v4087
        %4120 = vst.msk [vmem:[%s459 + $0x2c] sm:$0xf] %vm1685, %v4088
        %4121 = vst.msk [vmem:[%s459 + $0x30] sm:$0xf] %vm1685, %v4089
        %4122 = vst.msk [vmem:[%s459 + $0x34] sm:$0xf] %vm1685, %v4090
        %4123 = vst.msk [vmem:[%s459 + $0x38] sm:$0xf] %vm1685, %v4091
        %4124 = vst.msk [vmem:[%s459 + $0x3c] sm:$0xf] %vm1685, %v4092
        %v4125 = vpack.c.bf16 %v1080, %v1076
        %v4126 = vpack.c.bf16 %v1090, %v1086
        %v4127 = vpack.c.bf16 %v1100, %v1096
        %v4128 = vpack.c.bf16 %v1110, %v1106
        %v4129 = vpack.c.bf16 %v1120, %v1116
        %v4130 = vpack.c.bf16 %v1130, %v1126
        %v4131 = vpack.c.bf16 %v1140, %v1136
        %v4132 = vpack.c.bf16 %v1150, %v1146
        %v4141 = vunpack.c.l.b16 %v4125
        %v4142 = vunpack.c.h.b16 %v4125
        %v4143 = vunpack.c.l.b16 %v4126
        %v4144 = vunpack.c.h.b16 %v4126
        %v4145 = vunpack.c.l.b16 %v4127
        %v4146 = vunpack.c.h.b16 %v4127
        %v4147 = vunpack.c.l.b16 %v4128
        %v4148 = vunpack.c.h.b16 %v4128
        %v4149 = vunpack.c.l.b16 %v4129
        %v4150 = vunpack.c.h.b16 %v4129
        %v4151 = vunpack.c.l.b16 %v4130
        %v4152 = vunpack.c.h.b16 %v4130
        %v4153 = vunpack.c.l.b16 %v4131
        %v4154 = vunpack.c.h.b16 %v4131
        %v4155 = vunpack.c.l.b16 %v4132
        %v4156 = vunpack.c.h.b16 %v4132
        %v4157 = vpack.c.b16 %v4141, %v4141
        %v4158 = vpack.c.b16 %v4142, %v4142
        %v4159 = vpack.c.b16 %v4143, %v4143
        %v4160 = vpack.c.b16 %v4144, %v4144
        %v4161 = vpack.c.b16 %v4145, %v4145
        %v4162 = vpack.c.b16 %v4146, %v4146
        %v4163 = vpack.c.b16 %v4147, %v4147
        %v4164 = vpack.c.b16 %v4148, %v4148
        %v4165 = vpack.c.b16 %v4149, %v4149
        %v4166 = vpack.c.b16 %v4150, %v4150
        %v4167 = vpack.c.b16 %v4151, %v4151
        %v4168 = vpack.c.b16 %v4152, %v4152
        %v4169 = vpack.c.b16 %v4153, %v4153
        %v4170 = vpack.c.b16 %v4154, %v4154
        %v4171 = vpack.c.b16 %v4155, %v4155
        %v4172 = vpack.c.b16 %v4156, %v4156
        %4189 = vst.msk [vmem:[%s465] sm:$0xf] %vm1685, %v4157
        %4190 = vst.msk [vmem:[%s465 + $0x4] sm:$0xf] %vm1685, %v4158
        %4191 = vst.msk [vmem:[%s465 + $0x8] sm:$0xf] %vm1685, %v4159
        %4192 = vst.msk [vmem:[%s465 + $0xc] sm:$0xf] %vm1685, %v4160
        %4193 = vst.msk [vmem:[%s465 + $0x10] sm:$0xf] %vm1685, %v4161
        %4194 = vst.msk [vmem:[%s465 + $0x14] sm:$0xf] %vm1685, %v4162
        %4195 = vst.msk [vmem:[%s465 + $0x18] sm:$0xf] %vm1685, %v4163
        %4196 = vst.msk [vmem:[%s465 + $0x1c] sm:$0xf] %vm1685, %v4164
        %4197 = vst.msk [vmem:[%s465 + $0x20] sm:$0xf] %vm1685, %v4165
        %4198 = vst.msk [vmem:[%s465 + $0x24] sm:$0xf] %vm1685, %v4166
        %4199 = vst.msk [vmem:[%s465 + $0x28] sm:$0xf] %vm1685, %v4167
        %4200 = vst.msk [vmem:[%s465 + $0x2c] sm:$0xf] %vm1685, %v4168
        %4201 = vst.msk [vmem:[%s465 + $0x30] sm:$0xf] %vm1685, %v4169
        %4202 = vst.msk [vmem:[%s465 + $0x34] sm:$0xf] %vm1685, %v4170
        %4203 = vst.msk [vmem:[%s465 + $0x38] sm:$0xf] %vm1685, %v4171
        %4204 = vst.msk [vmem:[%s465 + $0x3c] sm:$0xf] %vm1685, %v4172
        %4221 = vrot.lane.b32.xlu0 %v3579, 64
        %v4222 = vpop.permute.xlu0 %4221
        %4223 = vrot.lane.b32.xlu0 %v3580, 64
        %v4224 = vpop.permute.xlu0 %4223
        %4225 = vrot.lane.b32.xlu0 %v3581, 64
        %v4226 = vpop.permute.xlu0 %4225
        %4227 = vrot.lane.b32.xlu0 %v3582, 64
        %v4228 = vpop.permute.xlu0 %4227
        %4229 = vrot.lane.b32.xlu0 %v3583, 64
        %v4230 = vpop.permute.xlu0 %4229
        %4231 = vrot.lane.b32.xlu0 %v3584, 64
        %v4232 = vpop.permute.xlu0 %4231
        %4233 = vrot.lane.b32.xlu0 %v3585, 64
        %v4234 = vpop.permute.xlu0 %4233
        %4235 = vrot.lane.b32.xlu0 %v3586, 64
        %v4236 = vpop.permute.xlu0 %4235
        %4237 = vrot.lane.b32.xlu0 %v3587, 64
        %v4238 = vpop.permute.xlu0 %4237
        %4239 = vrot.lane.b32.xlu0 %v3588, 64
        %v4240 = vpop.permute.xlu0 %4239
        %4241 = vrot.lane.b32.xlu0 %v3589, 64
        %v4242 = vpop.permute.xlu0 %4241
        %4243 = vrot.lane.b32.xlu0 %v3590, 64
        %v4244 = vpop.permute.xlu0 %4243
        %4245 = vrot.lane.b32.xlu0 %v3591, 64
        %v4246 = vpop.permute.xlu0 %4245
        %4247 = vrot.lane.b32.xlu0 %v3592, 64
        %v4248 = vpop.permute.xlu0 %4247
        %4249 = vrot.lane.b32.xlu0 %v3593, 64
        %v4250 = vpop.permute.xlu0 %4249
        %4251 = vrot.lane.b32.xlu0 %v3594, 64
        %v4252 = vpop.permute.xlu0 %4251
        %v4269 = vsel %vm1168, %v4222, 0.0
        %4270 = vadd.xlane.f32.xlu0 %v4269
        %v4271 = vpop.xlane.xlu0 %4270
        %v4272 = vsel %vm1168, %v4224, 0.0
        %4273 = vadd.xlane.f32.xlu0 %v4272
        %v4274 = vpop.xlane.xlu0 %4273
        %v4275 = vsel %vm1168, %v4226, 0.0
        %4276 = vadd.xlane.f32.xlu0 %v4275
        %v4277 = vpop.xlane.xlu0 %4276
        %v4278 = vsel %vm1168, %v4228, 0.0
        %4279 = vadd.xlane.f32.xlu0 %v4278
        %v4280 = vpop.xlane.xlu0 %4279
        %v4281 = vsel %vm1168, %v4230, 0.0
        %4282 = vadd.xlane.f32.xlu0 %v4281
        %v4283 = vpop.xlane.xlu0 %4282
        %v4284 = vsel %vm1168, %v4232, 0.0
        %4285 = vadd.xlane.f32.xlu0 %v4284
        %v4286 = vpop.xlane.xlu0 %4285
        %v4287 = vsel %vm1168, %v4234, 0.0
        %4288 = vadd.xlane.f32.xlu0 %v4287
        %v4289 = vpop.xlane.xlu0 %4288
        %v4290 = vsel %vm1168, %v4236, 0.0
        %4291 = vadd.xlane.f32.xlu0 %v4290
        %v4292 = vpop.xlane.xlu0 %4291
        %v4293 = vsel %vm1168, %v4238, 0.0
        %4294 = vadd.xlane.f32.xlu0 %v4293
        %v4295 = vpop.xlane.xlu0 %4294
        %v4296 = vsel %vm1168, %v4240, 0.0
        %4297 = vadd.xlane.f32.xlu0 %v4296
        %v4298 = vpop.xlane.xlu0 %4297
        %v4299 = vsel %vm1168, %v4242, 0.0
        %4300 = vadd.xlane.f32.xlu0 %v4299
        %v4301 = vpop.xlane.xlu0 %4300
        %v4302 = vsel %vm1168, %v4244, 0.0
        %4303 = vadd.xlane.f32.xlu0 %v4302
        %v4304 = vpop.xlane.xlu0 %4303
        %v4305 = vsel %vm1168, %v4246, 0.0
        %4306 = vadd.xlane.f32.xlu0 %v4305
        %v4307 = vpop.xlane.xlu0 %4306
        %v4308 = vsel %vm1168, %v4248, 0.0
        %4309 = vadd.xlane.f32.xlu0 %v4308
        %v4310 = vpop.xlane.xlu0 %4309
        %v4311 = vsel %vm1168, %v4250, 0.0
        %4312 = vadd.xlane.f32.xlu0 %v4311
        %v4313 = vpop.xlane.xlu0 %4312
        %v4314 = vsel %vm1168, %v4252, 0.0
        %4315 = vadd.xlane.f32.xlu0 %v4314
        %v4316 = vpop.xlane.xlu0 %4315
        %v4317 = vmul.f32 %v4271, %v1217
        %v4318 = vmul.f32 %v4274, %v1217
        %v4319 = vmul.f32 %v4277, %v1217
        %v4320 = vmul.f32 %v4280, %v1217
        %v4321 = vmul.f32 %v4283, %v1217
        %v4322 = vmul.f32 %v4286, %v1217
        %v4323 = vmul.f32 %v4289, %v1217
        %v4324 = vmul.f32 %v4292, %v1217
        %v4325 = vmul.f32 %v4295, %v1217
        %v4326 = vmul.f32 %v4298, %v1217
        %v4327 = vmul.f32 %v4301, %v1217
        %v4328 = vmul.f32 %v4304, %v1217
        %v4329 = vmul.f32 %v4307, %v1217
        %v4330 = vmul.f32 %v4310, %v1217
        %v4331 = vmul.f32 %v4313, %v1217
        %v4332 = vmul.f32 %v4316, %v1217
        %v4333 = vadd.f32 %v4317, 1.1920929e-07
        %v4334 = vadd.f32 %v4318, 1.1920929e-07
        %v4335 = vadd.f32 %v4319, 1.1920929e-07
        %v4336 = vadd.f32 %v4320, 1.1920929e-07
        %v4337 = vadd.f32 %v4321, 1.1920929e-07
        %v4338 = vadd.f32 %v4322, 1.1920929e-07
        %v4339 = vadd.f32 %v4323, 1.1920929e-07
        %v4340 = vadd.f32 %v4324, 1.1920929e-07
        %v4341 = vadd.f32 %v4325, 1.1920929e-07
        %v4342 = vadd.f32 %v4326, 1.1920929e-07
        %v4343 = vadd.f32 %v4327, 1.1920929e-07
        %v4344 = vadd.f32 %v4328, 1.1920929e-07
        %v4345 = vadd.f32 %v4329, 1.1920929e-07
        %v4346 = vadd.f32 %v4330, 1.1920929e-07
        %v4347 = vadd.f32 %v4331, 1.1920929e-07
        %v4348 = vadd.f32 %v4332, 1.1920929e-07
        %v4349 = vrsqrt.pop %v4333
        %v4350 = vrsqrt.pop %v4334
        %v4351 = vrsqrt.pop %v4335
        %v4352 = vrsqrt.pop %v4336
        %v4353 = vrsqrt.pop %v4337
        %v4354 = vrsqrt.pop %v4338
        %v4355 = vrsqrt.pop %v4339
        %v4356 = vrsqrt.pop %v4340
        %v4357 = vrsqrt.pop %v4341
        %v4358 = vrsqrt.pop %v4342
        %v4359 = vrsqrt.pop %v4343
        %v4360 = vrsqrt.pop %v4344
        %v4361 = vrsqrt.pop %v4345
        %v4362 = vrsqrt.pop %v4346
        %v4363 = vrsqrt.pop %v4347
        %v4364 = vrsqrt.pop %v4348
        %v4365 = vmul.f32 %v1074, %v4349
        %v4366 = vmul.f32 %v1078, %v4350
        %v4367 = vmul.f32 %v1084, %v4351
        %v4368 = vmul.f32 %v1088, %v4352
        %v4369 = vmul.f32 %v1094, %v4353
        %v4370 = vmul.f32 %v1098, %v4354
        %v4371 = vmul.f32 %v1104, %v4355
        %v4372 = vmul.f32 %v1108, %v4356
        %v4373 = vmul.f32 %v1114, %v4357
        %v4374 = vmul.f32 %v1118, %v4358
        %v4375 = vmul.f32 %v1124, %v4359
        %v4376 = vmul.f32 %v1128, %v4360
        %v4377 = vmul.f32 %v1134, %v4361
        %v4378 = vmul.f32 %v1138, %v4362
        %v4379 = vmul.f32 %v1144, %v4363
        %v4380 = vmul.f32 %v1148, %v4364
        %v4381 = vld [vmem:[%s7 + $0x1] sm:$0x1]
        %v4382 = vld [vmem:[%s8 + $0x1] sm:$0x1]
        %v4383 = vlaneseq
        %v4384 = vshrl.u32 %v4383, 7
        %v4385 = vsub.s32 0, %v4384
        %v4386 = vrot.slane %v4381, %v4385
        %4388 = vrot.lane.b32.xlu0 %v4386, 64
        %v4389 = vpop.permute.xlu0 %4388
        %v4391 = vmul.f32 %v4365, %v4389
        %v4392 = vmul.f32 %v4366, %v4389
        %v4393 = vmul.f32 %v4367, %v4389
        %v4394 = vmul.f32 %v4368, %v4389
        %v4395 = vmul.f32 %v4369, %v4389
        %v4396 = vmul.f32 %v4370, %v4389
        %v4397 = vmul.f32 %v4371, %v4389
        %v4398 = vmul.f32 %v4372, %v4389
        %v4399 = vmul.f32 %v4373, %v4389
        %v4400 = vmul.f32 %v4374, %v4389
        %v4401 = vmul.f32 %v4375, %v4389
        %v4402 = vmul.f32 %v4376, %v4389
        %v4403 = vmul.f32 %v4377, %v4389
        %v4404 = vmul.f32 %v4378, %v4389
        %v4405 = vmul.f32 %v4379, %v4389
        %v4406 = vmul.f32 %v4380, %v4389
        %v4407 = vlaneseq
        %v4408 = vshrl.u32 %v4407, 7
        %v4409 = vsub.s32 0, %v4408
        %v4410 = vrot.slane %v4382, %v4409
        %4412 = vrot.lane.b32.xlu0 %v4410, 96
        %v4413 = vpop.permute.xlu0 %4412
        %v4415 = vmul.f32 %v4365, %v4413
        %v4416 = vmul.f32 %v4366, %v4413
        %v4417 = vmul.f32 %v4367, %v4413
        %v4418 = vmul.f32 %v4368, %v4413
        %v4419 = vmul.f32 %v4369, %v4413
        %v4420 = vmul.f32 %v4370, %v4413
        %v4421 = vmul.f32 %v4371, %v4413
        %v4422 = vmul.f32 %v4372, %v4413
        %v4423 = vmul.f32 %v4373, %v4413
        %v4424 = vmul.f32 %v4374, %v4413
        %v4425 = vmul.f32 %v4375, %v4413
        %v4426 = vmul.f32 %v4376, %v4413
        %v4427 = vmul.f32 %v4377, %v4413
        %v4428 = vmul.f32 %v4378, %v4413
        %v4429 = vmul.f32 %v4379, %v4413
        %v4430 = vmul.f32 %v4380, %v4413
        %4447 = vrot.lane.b32.xlu0 %v4415, 96
        %v4448 = vpop.permute.xlu0 %4447
        %4449 = vrot.lane.b32.xlu0 %v4416, 96
        %v4450 = vpop.permute.xlu0 %4449
        %4451 = vrot.lane.b32.xlu0 %v4417, 96
        %v4452 = vpop.permute.xlu0 %4451
        %4453 = vrot.lane.b32.xlu0 %v4418, 96
        %v4454 = vpop.permute.xlu0 %4453
        %4455 = vrot.lane.b32.xlu0 %v4419, 96
        %v4456 = vpop.permute.xlu0 %4455
        %4457 = vrot.lane.b32.xlu0 %v4420, 96
        %v4458 = vpop.permute.xlu0 %4457
        %4459 = vrot.lane.b32.xlu0 %v4421, 96
        %v4460 = vpop.permute.xlu0 %4459
        %4461 = vrot.lane.b32.xlu0 %v4422, 96
        %v4462 = vpop.permute.xlu0 %4461
        %4463 = vrot.lane.b32.xlu0 %v4423, 96
        %v4464 = vpop.permute.xlu0 %4463
        %4465 = vrot.lane.b32.xlu0 %v4424, 96
        %v4466 = vpop.permute.xlu0 %4465
        %4467 = vrot.lane.b32.xlu0 %v4425, 96
        %v4468 = vpop.permute.xlu0 %4467
        %4469 = vrot.lane.b32.xlu0 %v4426, 96
        %v4470 = vpop.permute.xlu0 %4469
        %4471 = vrot.lane.b32.xlu0 %v4427, 96
        %v4472 = vpop.permute.xlu0 %4471
        %4473 = vrot.lane.b32.xlu0 %v4428, 96
        %v4474 = vpop.permute.xlu0 %4473
        %4475 = vrot.lane.b32.xlu0 %v4429, 96
        %v4476 = vpop.permute.xlu0 %4475
        %4477 = vrot.lane.b32.xlu0 %v4430, 96
        %v4478 = vpop.permute.xlu0 %4477
        %v4495 = vadd.f32 %v4391, %v4448
        %v4496 = vadd.f32 %v4392, %v4450
        %v4497 = vadd.f32 %v4393, %v4452
        %v4498 = vadd.f32 %v4394, %v4454
        %v4499 = vadd.f32 %v4395, %v4456
        %v4500 = vadd.f32 %v4396, %v4458
        %v4501 = vadd.f32 %v4397, %v4460
        %v4502 = vadd.f32 %v4398, %v4462
        %v4503 = vadd.f32 %v4399, %v4464
        %v4504 = vadd.f32 %v4400, %v4466
        %v4505 = vadd.f32 %v4401, %v4468
        %v4506 = vadd.f32 %v4402, %v4470
        %v4507 = vadd.f32 %v4403, %v4472
        %v4508 = vadd.f32 %v4404, %v4474
        %v4509 = vadd.f32 %v4405, %v4476
        %v4510 = vadd.f32 %v4406, %v4478
        %v4511 = vsub.f32 0.0, %v4365
        %v4512 = vsub.f32 0.0, %v4366
        %v4513 = vsub.f32 0.0, %v4367
        %v4514 = vsub.f32 0.0, %v4368
        %v4515 = vsub.f32 0.0, %v4369
        %v4516 = vsub.f32 0.0, %v4370
        %v4517 = vsub.f32 0.0, %v4371
        %v4518 = vsub.f32 0.0, %v4372
        %v4519 = vsub.f32 0.0, %v4373
        %v4520 = vsub.f32 0.0, %v4374
        %v4521 = vsub.f32 0.0, %v4375
        %v4522 = vsub.f32 0.0, %v4376
        %v4523 = vsub.f32 0.0, %v4377
        %v4524 = vsub.f32 0.0, %v4378
        %v4525 = vsub.f32 0.0, %v4379
        %v4526 = vsub.f32 0.0, %v4380
        %4527 = vrot.lane.b32.xlu0 %v4410, 64
        %v4528 = vpop.permute.xlu0 %4527
        %v4530 = vmul.f32 %v4511, %v4528
        %v4531 = vmul.f32 %v4512, %v4528
        %v4532 = vmul.f32 %v4513, %v4528
        %v4533 = vmul.f32 %v4514, %v4528
        %v4534 = vmul.f32 %v4515, %v4528
        %v4535 = vmul.f32 %v4516, %v4528
        %v4536 = vmul.f32 %v4517, %v4528
        %v4537 = vmul.f32 %v4518, %v4528
        %v4538 = vmul.f32 %v4519, %v4528
        %v4539 = vmul.f32 %v4520, %v4528
        %v4540 = vmul.f32 %v4521, %v4528
        %v4541 = vmul.f32 %v4522, %v4528
        %v4542 = vmul.f32 %v4523, %v4528
        %v4543 = vmul.f32 %v4524, %v4528
        %v4544 = vmul.f32 %v4525, %v4528
        %v4545 = vmul.f32 %v4526, %v4528
        %4546 = vrot.lane.b32.xlu0 %v4386, 96
        %v4547 = vpop.permute.xlu0 %4546
        %v4549 = vmul.f32 %v4365, %v4547
        %v4550 = vmul.f32 %v4366, %v4547
        %v4551 = vmul.f32 %v4367, %v4547
        %v4552 = vmul.f32 %v4368, %v4547
        %v4553 = vmul.f32 %v4369, %v4547
        %v4554 = vmul.f32 %v4370, %v4547
        %v4555 = vmul.f32 %v4371, %v4547
        %v4556 = vmul.f32 %v4372, %v4547
        %v4557 = vmul.f32 %v4373, %v4547
        %v4558 = vmul.f32 %v4374, %v4547
        %v4559 = vmul.f32 %v4375, %v4547
        %v4560 = vmul.f32 %v4376, %v4547
        %v4561 = vmul.f32 %v4377, %v4547
        %v4562 = vmul.f32 %v4378, %v4547
        %v4563 = vmul.f32 %v4379, %v4547
        %v4564 = vmul.f32 %v4380, %v4547
        %4581 = vrot.lane.b32.xlu0 %v4549, 96
        %v4582 = vpop.permute.xlu0 %4581
        %4583 = vrot.lane.b32.xlu0 %v4550, 96
        %v4584 = vpop.permute.xlu0 %4583
        %4585 = vrot.lane.b32.xlu0 %v4551, 96
        %v4586 = vpop.permute.xlu0 %4585
        %4587 = vrot.lane.b32.xlu0 %v4552, 96
        %v4588 = vpop.permute.xlu0 %4587
        %4589 = vrot.lane.b32.xlu0 %v4553, 96
        %v4590 = vpop.permute.xlu0 %4589
        %4591 = vrot.lane.b32.xlu0 %v4554, 96
        %v4592 = vpop.permute.xlu0 %4591
        %4593 = vrot.lane.b32.xlu0 %v4555, 96
        %v4594 = vpop.permute.xlu0 %4593
        %4595 = vrot.lane.b32.xlu0 %v4556, 96
        %v4596 = vpop.permute.xlu0 %4595
        %4597 = vrot.lane.b32.xlu0 %v4557, 96
        %v4598 = vpop.permute.xlu0 %4597
        %4599 = vrot.lane.b32.xlu0 %v4558, 96
        %v4600 = vpop.permute.xlu0 %4599
        %4601 = vrot.lane.b32.xlu0 %v4559, 96
        %v4602 = vpop.permute.xlu0 %4601
        %4603 = vrot.lane.b32.xlu0 %v4560, 96
        %v4604 = vpop.permute.xlu0 %4603
        %4605 = vrot.lane.b32.xlu0 %v4561, 96
        %v4606 = vpop.permute.xlu0 %4605
        %4607 = vrot.lane.b32.xlu0 %v4562, 96
        %v4608 = vpop.permute.xlu0 %4607
        %4609 = vrot.lane.b32.xlu0 %v4563, 96
        %v4610 = vpop.permute.xlu0 %4609
        %4611 = vrot.lane.b32.xlu0 %v4564, 96
        %v4612 = vpop.permute.xlu0 %4611
        %v4629 = vadd.f32 %v4530, %v4582
        %v4630 = vadd.f32 %v4531, %v4584
        %v4631 = vadd.f32 %v4532, %v4586
        %v4632 = vadd.f32 %v4533, %v4588
        %v4633 = vadd.f32 %v4534, %v4590
        %v4634 = vadd.f32 %v4535, %v4592
        %v4635 = vadd.f32 %v4536, %v4594
        %v4636 = vadd.f32 %v4537, %v4596
        %v4637 = vadd.f32 %v4538, %v4598
        %v4638 = vadd.f32 %v4539, %v4600
        %v4639 = vadd.f32 %v4540, %v4602
        %v4640 = vadd.f32 %v4541, %v4604
        %v4641 = vadd.f32 %v4542, %v4606
        %v4642 = vadd.f32 %v4543, %v4608
        %v4643 = vadd.f32 %v4544, %v4610
        %v4644 = vadd.f32 %v4545, %v4612
        %4661 = vrot.lane.b32.xlu0 %v4495, 64
        %v4662 = vpop.permute.xlu0 %4661
        %4663 = vrot.lane.b32.xlu0 %v4496, 64
        %v4664 = vpop.permute.xlu0 %4663
        %4665 = vrot.lane.b32.xlu0 %v4497, 64
        %v4666 = vpop.permute.xlu0 %4665
        %4667 = vrot.lane.b32.xlu0 %v4498, 64
        %v4668 = vpop.permute.xlu0 %4667
        %4669 = vrot.lane.b32.xlu0 %v4499, 64
        %v4670 = vpop.permute.xlu0 %4669
        %4671 = vrot.lane.b32.xlu0 %v4500, 64
        %v4672 = vpop.permute.xlu0 %4671
        %4673 = vrot.lane.b32.xlu0 %v4501, 64
        %v4674 = vpop.permute.xlu0 %4673
        %4675 = vrot.lane.b32.xlu0 %v4502, 64
        %v4676 = vpop.permute.xlu0 %4675
        %4677 = vrot.lane.b32.xlu0 %v4503, 64
        %v4678 = vpop.permute.xlu0 %4677
        %4679 = vrot.lane.b32.xlu0 %v4504, 64
        %v4680 = vpop.permute.xlu0 %4679
        %4681 = vrot.lane.b32.xlu0 %v4505, 64
        %v4682 = vpop.permute.xlu0 %4681
        %4683 = vrot.lane.b32.xlu0 %v4506, 64
        %v4684 = vpop.permute.xlu0 %4683
        %4685 = vrot.lane.b32.xlu0 %v4507, 64
        %v4686 = vpop.permute.xlu0 %4685
        %4687 = vrot.lane.b32.xlu0 %v4508, 64
        %v4688 = vpop.permute.xlu0 %4687
        %4689 = vrot.lane.b32.xlu0 %v4509, 64
        %v4690 = vpop.permute.xlu0 %4689
        %4691 = vrot.lane.b32.xlu0 %v4510, 64
        %v4692 = vpop.permute.xlu0 %4691
        %4725 = vrot.lane.b32.xlu0 %v4629, 96
        %v4726 = vpop.permute.xlu0 %4725
        %4727 = vrot.lane.b32.xlu0 %v4630, 96
        %v4728 = vpop.permute.xlu0 %4727
        %4729 = vrot.lane.b32.xlu0 %v4631, 96
        %v4730 = vpop.permute.xlu0 %4729
        %4731 = vrot.lane.b32.xlu0 %v4632, 96
        %v4732 = vpop.permute.xlu0 %4731
        %4733 = vrot.lane.b32.xlu0 %v4633, 96
        %v4734 = vpop.permute.xlu0 %4733
        %4735 = vrot.lane.b32.xlu0 %v4634, 96
        %v4736 = vpop.permute.xlu0 %4735
        %4737 = vrot.lane.b32.xlu0 %v4635, 96
        %v4738 = vpop.permute.xlu0 %4737
        %4739 = vrot.lane.b32.xlu0 %v4636, 96
        %v4740 = vpop.permute.xlu0 %4739
        %4741 = vrot.lane.b32.xlu0 %v4637, 96
        %v4742 = vpop.permute.xlu0 %4741
        %4743 = vrot.lane.b32.xlu0 %v4638, 96
        %v4744 = vpop.permute.xlu0 %4743
        %4745 = vrot.lane.b32.xlu0 %v4639, 96
        %v4746 = vpop.permute.xlu0 %4745
        %4747 = vrot.lane.b32.xlu0 %v4640, 96
        %v4748 = vpop.permute.xlu0 %4747
        %4749 = vrot.lane.b32.xlu0 %v4641, 96
        %v4750 = vpop.permute.xlu0 %4749
        %4751 = vrot.lane.b32.xlu0 %v4642, 96
        %v4752 = vpop.permute.xlu0 %4751
        %4753 = vrot.lane.b32.xlu0 %v4643, 96
        %v4754 = vpop.permute.xlu0 %4753
        %4755 = vrot.lane.b32.xlu0 %v4644, 96
        %v4756 = vpop.permute.xlu0 %4755
        %v4773 = vsel %vm1604, %v4662, %v4726
        %v4774 = vsel %vm1604, %v4664, %v4728
        %v4775 = vsel %vm1604, %v4666, %v4730
        %v4776 = vsel %vm1604, %v4668, %v4732
        %v4777 = vsel %vm1604, %v4670, %v4734
        %v4778 = vsel %vm1604, %v4672, %v4736
        %v4779 = vsel %vm1604, %v4674, %v4738
        %v4780 = vsel %vm1604, %v4676, %v4740
        %v4781 = vsel %vm1604, %v4678, %v4742
        %v4782 = vsel %vm1604, %v4680, %v4744
        %v4783 = vsel %vm1604, %v4682, %v4746
        %v4784 = vsel %vm1604, %v4684, %v4748
        %v4785 = vsel %vm1604, %v4686, %v4750
        %v4786 = vsel %vm1604, %v4688, %v4752
        %v4787 = vsel %vm1604, %v4690, %v4754
        %v4788 = vsel %vm1604, %v4692, %v4756
        %v4789 = vpack.c.bf16 %v4774, %v4773
        %v4790 = vpack.c.bf16 %v4776, %v4775
        %v4791 = vpack.c.bf16 %v4778, %v4777
        %v4792 = vpack.c.bf16 %v4780, %v4779
        %v4793 = vpack.c.bf16 %v4782, %v4781
        %v4794 = vpack.c.bf16 %v4784, %v4783
        %v4795 = vpack.c.bf16 %v4786, %v4785
        %v4796 = vpack.c.bf16 %v4788, %v4787
        %v4805 = vunpack.c.l.b16 %v4789
        %v4806 = vunpack.c.h.b16 %v4789
        %v4807 = vunpack.c.l.b16 %v4790
        %v4808 = vunpack.c.h.b16 %v4790
        %v4809 = vunpack.c.l.b16 %v4791
        %v4810 = vunpack.c.h.b16 %v4791
        %v4811 = vunpack.c.l.b16 %v4792
        %v4812 = vunpack.c.h.b16 %v4792
        %v4813 = vunpack.c.l.b16 %v4793
        %v4814 = vunpack.c.h.b16 %v4793
        %v4815 = vunpack.c.l.b16 %v4794
        %v4816 = vunpack.c.h.b16 %v4794
        %v4817 = vunpack.c.l.b16 %v4795
        %v4818 = vunpack.c.h.b16 %v4795
        %v4819 = vunpack.c.l.b16 %v4796
        %v4820 = vunpack.c.h.b16 %v4796
        %v4821 = vpack.c.b16 %v4805, %v4805
        %v4822 = vpack.c.b16 %v4806, %v4806
        %v4823 = vpack.c.b16 %v4807, %v4807
        %v4824 = vpack.c.b16 %v4808, %v4808
        %v4825 = vpack.c.b16 %v4809, %v4809
        %v4826 = vpack.c.b16 %v4810, %v4810
        %v4827 = vpack.c.b16 %v4811, %v4811
        %v4828 = vpack.c.b16 %v4812, %v4812
        %v4829 = vpack.c.b16 %v4813, %v4813
        %v4830 = vpack.c.b16 %v4814, %v4814
        %v4831 = vpack.c.b16 %v4815, %v4815
        %v4832 = vpack.c.b16 %v4816, %v4816
        %v4833 = vpack.c.b16 %v4817, %v4817
        %v4834 = vpack.c.b16 %v4818, %v4818
        %v4835 = vpack.c.b16 %v4819, %v4819
        %v4836 = vpack.c.b16 %v4820, %v4820
        %s4853 = scalar_lea.vmem %s459, 64 [#allocation8]
        %4854 = vst.msk [vmem:[%s4853] sm:$0xf] %vm1685, %v4821
        %4855 = vst.msk [vmem:[%s4853 + $0x4] sm:$0xf] %vm1685, %v4822
        %4856 = vst.msk [vmem:[%s4853 + $0x8] sm:$0xf] %vm1685, %v4823
        %4857 = vst.msk [vmem:[%s4853 + $0xc] sm:$0xf] %vm1685, %v4824
        %4858 = vst.msk [vmem:[%s4853 + $0x10] sm:$0xf] %vm1685, %v4825
        %4859 = vst.msk [vmem:[%s4853 + $0x14] sm:$0xf] %vm1685, %v4826
        %4860 = vst.msk [vmem:[%s4853 + $0x18] sm:$0xf] %vm1685, %v4827
        %4861 = vst.msk [vmem:[%s4853 + $0x1c] sm:$0xf] %vm1685, %v4828
        %4862 = vst.msk [vmem:[%s4853 + $0x20] sm:$0xf] %vm1685, %v4829
        %4863 = vst.msk [vmem:[%s4853 + $0x24] sm:$0xf] %vm1685, %v4830
        %4864 = vst.msk [vmem:[%s4853 + $0x28] sm:$0xf] %vm1685, %v4831
        %4865 = vst.msk [vmem:[%s4853 + $0x2c] sm:$0xf] %vm1685, %v4832
        %4866 = vst.msk [vmem:[%s4853 + $0x30] sm:$0xf] %vm1685, %v4833
        %4867 = vst.msk [vmem:[%s4853 + $0x34] sm:$0xf] %vm1685, %v4834
        %4868 = vst.msk [vmem:[%s4853 + $0x38] sm:$0xf] %vm1685, %v4835
        %4869 = vst.msk [vmem:[%s4853 + $0x3c] sm:$0xf] %vm1685, %v4836
        %4870 = vrot.lane.b32.xlu0 %v4157, 64
        %v4871 = vpop.permute.xlu0 %4870
        %4872 = vrot.lane.b32.xlu0 %v4158, 64
        %v4873 = vpop.permute.xlu0 %4872
        %4874 = vrot.lane.b32.xlu0 %v4159, 64
        %v4875 = vpop.permute.xlu0 %4874
        %4876 = vrot.lane.b32.xlu0 %v4160, 64
        %v4877 = vpop.permute.xlu0 %4876
        %4878 = vrot.lane.b32.xlu0 %v4161, 64
        %v4879 = vpop.permute.xlu0 %4878
        %4880 = vrot.lane.b32.xlu0 %v4162, 64
        %v4881 = vpop.permute.xlu0 %4880
        %4882 = vrot.lane.b32.xlu0 %v4163, 64
        %v4883 = vpop.permute.xlu0 %4882
        %4884 = vrot.lane.b32.xlu0 %v4164, 64
        %v4885 = vpop.permute.xlu0 %4884
        %4886 = vrot.lane.b32.xlu0 %v4165, 64
        %v4887 = vpop.permute.xlu0 %4886
        %4888 = vrot.lane.b32.xlu0 %v4166, 64
        %v4889 = vpop.permute.xlu0 %4888
        %4890 = vrot.lane.b32.xlu0 %v4167, 64
        %v4891 = vpop.permute.xlu0 %4890
        %4892 = vrot.lane.b32.xlu0 %v4168, 64
        %v4893 = vpop.permute.xlu0 %4892
        %4894 = vrot.lane.b32.xlu0 %v4169, 64
        %v4895 = vpop.permute.xlu0 %4894
        %4896 = vrot.lane.b32.xlu0 %v4170, 64
        %v4897 = vpop.permute.xlu0 %4896
        %4898 = vrot.lane.b32.xlu0 %v4171, 64
        %v4899 = vpop.permute.xlu0 %4898
        %4900 = vrot.lane.b32.xlu0 %v4172, 64
        %v4901 = vpop.permute.xlu0 %4900
        %s4918 = scalar_lea.vmem %s465, 64 [#allocation9]
        %4919 = vst.msk [vmem:[%s4918] sm:$0xf] %vm1685, %v4871
        %4920 = vst.msk [vmem:[%s4918 + $0x4] sm:$0xf] %vm1685, %v4873
        %4921 = vst.msk [vmem:[%s4918 + $0x8] sm:$0xf] %vm1685, %v4875
        %4922 = vst.msk [vmem:[%s4918 + $0xc] sm:$0xf] %vm1685, %v4877
        %4923 = vst.msk [vmem:[%s4918 + $0x10] sm:$0xf] %vm1685, %v4879
        %4924 = vst.msk [vmem:[%s4918 + $0x14] sm:$0xf] %vm1685, %v4881
        %4925 = vst.msk [vmem:[%s4918 + $0x18] sm:$0xf] %vm1685, %v4883
        %4926 = vst.msk [vmem:[%s4918 + $0x1c] sm:$0xf] %vm1685, %v4885
        %4927 = vst.msk [vmem:[%s4918 + $0x20] sm:$0xf] %vm1685, %v4887
        %4928 = vst.msk [vmem:[%s4918 + $0x24] sm:$0xf] %vm1685, %v4889
        %4929 = vst.msk [vmem:[%s4918 + $0x28] sm:$0xf] %vm1685, %v4891
        %4930 = vst.msk [vmem:[%s4918 + $0x2c] sm:$0xf] %vm1685, %v4893
        %4931 = vst.msk [vmem:[%s4918 + $0x30] sm:$0xf] %vm1685, %v4895
        %4932 = vst.msk [vmem:[%s4918 + $0x34] sm:$0xf] %vm1685, %v4897
        %4933 = vst.msk [vmem:[%s4918 + $0x38] sm:$0xf] %vm1685, %v4899
        %4934 = vst.msk [vmem:[%s4918 + $0x3c] sm:$0xf] %vm1685, %v4901
        %s4935 = sand.u32 %s245, 1
        %s4936 = sand.u32 %s245, 1
        %s4937 = smul.addr %s4936, 256
        %s4938 = scalar_lea.vmem [#allocation7], %s4937
        %s4939 = sand.u32 %s273, 1
        %s4940 = sand.u32 %s273, 1
        %s4941 = smul.addr %s4940, 128
        %s4942 = scalar_lea.vmem [#allocation8], %s4941
        %s4943 = sand.u32 %s301, 1
        %s4944 = sand.u32 %s301, 1
        %s4945 = smul.addr %s4944, 128
        %s4946 = scalar_lea.vmem [#allocation9], %s4945
        // Predicated region
        $region69: #{tpu_custom_call.1} parent=55 // pred_check
          %p4947 = pneg %p255
        $region70: #{tpu_custom_call.1} parent=55 // pred_check_branch
          %4949 = sbr.rel (%p4947) target = $region72
        $region71: #{tpu_custom_call.1} parent=55 // pred_region
          %s4950 = smul.u32 16, %s32
          %s4951 = smul.addr %s31, 128
          %s4952 = sadd.s32 %s4950, %s4951
          %s4953 = smul.addr %s4952, 4
          %s4954 = scalar_lea.vmem %s9, %s4953
          // Predicated region
          $region73: #{tpu_custom_call.1} parent=71 // pred_check
            _
          $region74: #{tpu_custom_call.1} parent=71 // pred_check_branch
            %4956 = sbr.rel (0) target = $region76
          $region75: #{tpu_custom_call.1} parent=71 // pred_region
            // Predicated region
            $region77: #{tpu_custom_call.1} parent=75 // pred_check
              _
            $region78: #{tpu_custom_call.1} parent=75 // pred_check_branch
              %4958 = sbr.rel target = $region80
            $region79: #{tpu_custom_call.1} parent=75 // pred_region
              // Predicated region
              $region92: #{tpu_custom_call.1} parent=79 // pred_check
                _
              $region93: #{tpu_custom_call.1} parent=79 // pred_check_branch
                %5099 = sbr.rel (0) target = $region95
              $region94: #{tpu_custom_call.1} parent=79 // pred_region
                loop: start=0, step=1, limit=1
                $region96: #{tpu_custom_call.1} parent=94 // loop_pre_header
                  _
                $region97: #{tpu_custom_call.1} parent=94 // loop_header
                  %s5101 = sphi 0, %s5105
                  %p5102 = scmp.ge.s32.totalorder %s5101, 1
                  %s5106 = sphi %s4938, %s4938
                  %s5107 = sphi %s4954, %s4954
                $region98: #{tpu_custom_call.1} parent=94 // loop_header_branch
                  %5104 = sbr.rel (%p5102) target = $region102
                $region99: #{tpu_custom_call.1} parent=94 // loop_body
                  _
                $region100: #{tpu_custom_call.1} parent=94 // loop_footer
                  %s5105 = sadd.s32 1, %s5101
                $region101: #{tpu_custom_call.1} parent=94 // loop_footer_branch
                  %5100 = sbr.rel target = $region97
                $region102: #{tpu_custom_call.1} parent=94 // loop_exit
                  _
                loop: start=0, step=1, limit=1
                $region103: #{tpu_custom_call.1} parent=94 // loop_pre_header
                  _
                $region104: #{tpu_custom_call.1} parent=94 // loop_header
                  %s5110 = sphi 0, %s5114
                  %p5111 = scmp.ge.s32.totalorder %s5110, 1
                  %s5115 = sphi %s4938, %s4938
                  %s5116 = sphi %s4954, %s4954
                $region105: #{tpu_custom_call.1} parent=94 // loop_header_branch
                  %5113 = sbr.rel (%p5111) target = $region109
                $region106: #{tpu_custom_call.1} parent=94 // loop_body
                  %v5117 = vld [vmem:[%s5115] sm:$0xf]
                  %5118 = vst [vmem:[%s5116] sm:$0xf] %v5117
                  %v5119 = vld [vmem:[%s5115 + $0x4] sm:$0xf]
                  %5120 = vst [vmem:[%s5116 + $0x4] sm:$0xf] %v5119
                  %v5121 = vld [vmem:[%s5115 + $0x8] sm:$0xf]
                  %5122 = vst [vmem:[%s5116 + $0x8] sm:$0xf] %v5121
                  %v5123 = vld [vmem:[%s5115 + $0xc] sm:$0xf]
                  %5124 = vst [vmem:[%s5116 + $0xc] sm:$0xf] %v5123
                  %v5125 = vld [vmem:[%s5115 + $0x10] sm:$0xf]
                  %5126 = vst [vmem:[%s5116 + $0x10] sm:$0xf] %v5125
                  %v5127 = vld [vmem:[%s5115 + $0x14] sm:$0xf]
                  %5128 = vst [vmem:[%s5116 + $0x14] sm:$0xf] %v5127
                  %v5129 = vld [vmem:[%s5115 + $0x18] sm:$0xf]
                  %5130 = vst [vmem:[%s5116 + $0x18] sm:$0xf] %v5129
                  %v5131 = vld [vmem:[%s5115 + $0x1c] sm:$0xf]
                  %5132 = vst [vmem:[%s5116 + $0x1c] sm:$0xf] %v5131
                  %v5133 = vld [vmem:[%s5115 + $0x20] sm:$0xf]
                  %5134 = vst [vmem:[%s5116 + $0x20] sm:$0xf] %v5133
                  %v5135 = vld [vmem:[%s5115 + $0x24] sm:$0xf]
                  %5136 = vst [vmem:[%s5116 + $0x24] sm:$0xf] %v5135
                  %v5137 = vld [vmem:[%s5115 + $0x28] sm:$0xf]
                  %5138 = vst [vmem:[%s5116 + $0x28] sm:$0xf] %v5137
                  %v5139 = vld [vmem:[%s5115 + $0x2c] sm:$0xf]
                  %5140 = vst [vmem:[%s5116 + $0x2c] sm:$0xf] %v5139
                  %v5141 = vld [vmem:[%s5115 + $0x30] sm:$0xf]
                  %5142 = vst [vmem:[%s5116 + $0x30] sm:$0xf] %v5141
                  %v5143 = vld [vmem:[%s5115 + $0x34] sm:$0xf]
                  %5144 = vst [vmem:[%s5116 + $0x34] sm:$0xf] %v5143
                  %v5145 = vld [vmem:[%s5115 + $0x38] sm:$0xf]
                  %5146 = vst [vmem:[%s5116 + $0x38] sm:$0xf] %v5145
                  %v5147 = vld [vmem:[%s5115 + $0x3c] sm:$0xf]
                  %5148 = vst [vmem:[%s5116 + $0x3c] sm:$0xf] %v5147
                  %v5149 = vld [vmem:[%s5115 + $0x40] sm:$0xf]
                  %5150 = vst [vmem:[%s5116 + $0x80] sm:$0xf] %v5149
                  %v5151 = vld [vmem:[%s5115 + $0x44] sm:$0xf]
                  %5152 = vst [vmem:[%s5116 + $0x84] sm:$0xf] %v5151
                  %v5153 = vld [vmem:[%s5115 + $0x48] sm:$0xf]
                  %5154 = vst [vmem:[%s5116 + $0x88] sm:$0xf] %v5153
                  %v5155 = vld [vmem:[%s5115 + $0x4c] sm:$0xf]
                  %5156 = vst [vmem:[%s5116 + $0x8c] sm:$0xf] %v5155
                  %v5157 = vld [vmem:[%s5115 + $0x50] sm:$0xf]
                  %5158 = vst [vmem:[%s5116 + $0x90] sm:$0xf] %v5157
                  %v5159 = vld [vmem:[%s5115 + $0x54] sm:$0xf]
                  %5160 = vst [vmem:[%s5116 + $0x94] sm:$0xf] %v5159
                  %v5161 = vld [vmem:[%s5115 + $0x58] sm:$0xf]
                  %5162 = vst [vmem:[%s5116 + $0x98] sm:$0xf] %v5161
                  %v5163 = vld [vmem:[%s5115 + $0x5c] sm:$0xf]
                  %5164 = vst [vmem:[%s5116 + $0x9c] sm:$0xf] %v5163
                  %v5165 = vld [vmem:[%s5115 + $0x60] sm:$0xf]
                  %5166 = vst [vmem:[%s5116 + $0xa0] sm:$0xf] %v5165
                  %v5167 = vld [vmem:[%s5115 + $0x64] sm:$0xf]
                  %5168 = vst [vmem:[%s5116 + $0xa4] sm:$0xf] %v5167
                  %v5169 = vld [vmem:[%s5115 + $0x68] sm:$0xf]
                  %5170 = vst [vmem:[%s5116 + $0xa8] sm:$0xf] %v5169
                  %v5171 = vld [vmem:[%s5115 + $0x6c] sm:$0xf]
                  %5172 = vst [vmem:[%s5116 + $0xac] sm:$0xf] %v5171
                  %v5173 = vld [vmem:[%s5115 + $0x70] sm:$0xf]
                  %5174 = vst [vmem:[%s5116 + $0xb0] sm:$0xf] %v5173
                  %v5175 = vld [vmem:[%s5115 + $0x74] sm:$0xf]
                  %5176 = vst [vmem:[%s5116 + $0xb4] sm:$0xf] %v5175
                  %v5177 = vld [vmem:[%s5115 + $0x78] sm:$0xf]
                  %5178 = vst [vmem:[%s5116 + $0xb8] sm:$0xf] %v5177
                  %v5179 = vld [vmem:[%s5115 + $0x7c] sm:$0xf]
                  %5180 = vst [vmem:[%s5116 + $0xbc] sm:$0xf] %v5179
                  %v5181 = vld [vmem:[%s5115 + $0x80] sm:$0xf]
                  %5182 = vst [vmem:[%s5116 + $0x100] sm:$0xf] %v5181
                  %v5183 = vld [vmem:[%s5115 + $0x84] sm:$0xf]
                  %5184 = vst [vmem:[%s5116 + $0x104] sm:$0xf] %v5183
                  %v5185 = vld [vmem:[%s5115 + $0x88] sm:$0xf]
                  %5186 = vst [vmem:[%s5116 + $0x108] sm:$0xf] %v5185
                  %v5187 = vld [vmem:[%s5115 + $0x8c] sm:$0xf]
                  %5188 = vst [vmem:[%s5116 + $0x10c] sm:$0xf] %v5187
                  %v5189 = vld [vmem:[%s5115 + $0x90] sm:$0xf]
                  %5190 = vst [vmem:[%s5116 + $0x110] sm:$0xf] %v5189
                  %v5191 = vld [vmem:[%s5115 + $0x94] sm:$0xf]
                  %5192 = vst [vmem:[%s5116 + $0x114] sm:$0xf] %v5191
                  %v5193 = vld [vmem:[%s5115 + $0x98] sm:$0xf]
                  %5194 = vst [vmem:[%s5116 + $0x118] sm:$0xf] %v5193
                  %v5195 = vld [vmem:[%s5115 + $0x9c] sm:$0xf]
                  %5196 = vst [vmem:[%s5116 + $0x11c] sm:$0xf] %v5195
                  %v5197 = vld [vmem:[%s5115 + $0xa0] sm:$0xf]
                  %5198 = vst [vmem:[%s5116 + $0x120] sm:$0xf] %v5197
                  %v5199 = vld [vmem:[%s5115 + $0xa4] sm:$0xf]
                  %5200 = vst [vmem:[%s5116 + $0x124] sm:$0xf] %v5199
                  %v5201 = vld [vmem:[%s5115 + $0xa8] sm:$0xf]
                  %5202 = vst [vmem:[%s5116 + $0x128] sm:$0xf] %v5201
                  %v5203 = vld [vmem:[%s5115 + $0xac] sm:$0xf]
                  %5204 = vst [vmem:[%s5116 + $0x12c] sm:$0xf] %v5203
                  %v5205 = vld [vmem:[%s5115 + $0xb0] sm:$0xf]
                  %5206 = vst [vmem:[%s5116 + $0x130] sm:$0xf] %v5205
                  %v5207 = vld [vmem:[%s5115 + $0xb4] sm:$0xf]
                  %5208 = vst [vmem:[%s5116 + $0x134] sm:$0xf] %v5207
                  %v5209 = vld [vmem:[%s5115 + $0xb8] sm:$0xf]
                  %5210 = vst [vmem:[%s5116 + $0x138] sm:$0xf] %v5209
                  %v5211 = vld [vmem:[%s5115 + $0xbc] sm:$0xf]
                  %5212 = vst [vmem:[%s5116 + $0x13c] sm:$0xf] %v5211
                  %v5213 = vld [vmem:[%s5115 + $0xc0] sm:$0xf]
                  %5214 = vst [vmem:[%s5116 + $0x180] sm:$0xf] %v5213
                  %v5215 = vld [vmem:[%s5115 + $0xc4] sm:$0xf]
                  %5216 = vst [vmem:[%s5116 + $0x184] sm:$0xf] %v5215
                  %v5217 = vld [vmem:[%s5115 + $0xc8] sm:$0xf]
                  %5218 = vst [vmem:[%s5116 + $0x188] sm:$0xf] %v5217
                  %v5219 = vld [vmem:[%s5115 + $0xcc] sm:$0xf]
                  %5220 = vst [vmem:[%s5116 + $0x18c] sm:$0xf] %v5219
                  %v5221 = vld [vmem:[%s5115 + $0xd0] sm:$0xf]
                  %5222 = vst [vmem:[%s5116 + $0x190] sm:$0xf] %v5221
                  %v5223 = vld [vmem:[%s5115 + $0xd4] sm:$0xf]
                  %5224 = vst [vmem:[%s5116 + $0x194] sm:$0xf] %v5223
                  %v5225 = vld [vmem:[%s5115 + $0xd8] sm:$0xf]
                  %5226 = vst [vmem:[%s5116 + $0x198] sm:$0xf] %v5225
                  %v5227 = vld [vmem:[%s5115 + $0xdc] sm:$0xf]
                  %5228 = vst [vmem:[%s5116 + $0x19c] sm:$0xf] %v5227
                  %v5229 = vld [vmem:[%s5115 + $0xe0] sm:$0xf]
                  %5230 = vst [vmem:[%s5116 + $0x1a0] sm:$0xf] %v5229
                  %v5231 = vld [vmem:[%s5115 + $0xe4] sm:$0xf]
                  %5232 = vst [vmem:[%s5116 + $0x1a4] sm:$0xf] %v5231
                  %v5233 = vld [vmem:[%s5115 + $0xe8] sm:$0xf]
                  %5234 = vst [vmem:[%s5116 + $0x1a8] sm:$0xf] %v5233
                  %v5235 = vld [vmem:[%s5115 + $0xec] sm:$0xf]
                  %5236 = vst [vmem:[%s5116 + $0x1ac] sm:$0xf] %v5235
                  %v5237 = vld [vmem:[%s5115 + $0xf0] sm:$0xf]
                  %5238 = vst [vmem:[%s5116 + $0x1b0] sm:$0xf] %v5237
                  %v5239 = vld [vmem:[%s5115 + $0xf4] sm:$0xf]
                  %5240 = vst [vmem:[%s5116 + $0x1b4] sm:$0xf] %v5239
                  %v5241 = vld [vmem:[%s5115 + $0xf8] sm:$0xf]
                  %5242 = vst [vmem:[%s5116 + $0x1b8] sm:$0xf] %v5241
                  %v5243 = vld [vmem:[%s5115 + $0xfc] sm:$0xf]
                  %5244 = vst [vmem:[%s5116 + $0x1bc] sm:$0xf] %v5243
                $region107: #{tpu_custom_call.1} parent=94 // loop_footer
                  %s5114 = sadd.s32 1, %s5110
                $region108: #{tpu_custom_call.1} parent=94 // loop_footer_branch
                  %5109 = sbr.rel target = $region104
                $region109: #{tpu_custom_call.1} parent=94 // loop_exit
                  _
              $region95: #{tpu_custom_call.1} parent=79 // pred_fallthru
                _
            $region80: #{tpu_custom_call.1} parent=75 // pred_fallthru
              _
            // Predicated region
            $region81: #{tpu_custom_call.1} parent=75 // pred_check
              _
            $region82: #{tpu_custom_call.1} parent=75 // pred_check_branch
              %4960 = sbr.rel (0) target = $region84
            $region83: #{tpu_custom_call.1} parent=75 // pred_region
              loop: start=0, step=1, limit=1
              $region85: #{tpu_custom_call.1} parent=83 // loop_pre_header
                _
              $region86: #{tpu_custom_call.1} parent=83 // loop_header
                %s4963 = sphi 0, %s4967
                %p4964 = scmp.ge.s32.totalorder %s4963, 1
                %s4968 = sphi %s4938, %s4938
                %s4969 = sphi %s4954, %s4954
              $region87: #{tpu_custom_call.1} parent=83 // loop_header_branch
                %4966 = sbr.rel (%p4964) target = $region91
              $region88: #{tpu_custom_call.1} parent=83 // loop_body
                %v4970 = vld [vmem:[%s4968] sm:$0xf]
                %4971 = vst [vmem:[%s4969] sm:$0xf] %v4970
                %v4972 = vld [vmem:[%s4968 + $0x4] sm:$0xf]
                %4973 = vst [vmem:[%s4969 + $0x4] sm:$0xf] %v4972
                %v4974 = vld [vmem:[%s4968 + $0x8] sm:$0xf]
                %4975 = vst [vmem:[%s4969 + $0x8] sm:$0xf] %v4974
                %v4976 = vld [vmem:[%s4968 + $0xc] sm:$0xf]
                %4977 = vst [vmem:[%s4969 + $0xc] sm:$0xf] %v4976
                %v4978 = vld [vmem:[%s4968 + $0x10] sm:$0xf]
                %4979 = vst [vmem:[%s4969 + $0x10] sm:$0xf] %v4978
                %v4980 = vld [vmem:[%s4968 + $0x14] sm:$0xf]
                %4981 = vst [vmem:[%s4969 + $0x14] sm:$0xf] %v4980
                %v4982 = vld [vmem:[%s4968 + $0x18] sm:$0xf]
                %4983 = vst [vmem:[%s4969 + $0x18] sm:$0xf] %v4982
                %v4984 = vld [vmem:[%s4968 + $0x1c] sm:$0xf]
                %4985 = vst [vmem:[%s4969 + $0x1c] sm:$0xf] %v4984
                %v4986 = vld [vmem:[%s4968 + $0x20] sm:$0xf]
                %4987 = vst [vmem:[%s4969 + $0x20] sm:$0xf] %v4986
                %v4988 = vld [vmem:[%s4968 + $0x24] sm:$0xf]
                %4989 = vst [vmem:[%s4969 + $0x24] sm:$0xf] %v4988
                %v4990 = vld [vmem:[%s4968 + $0x28] sm:$0xf]
                %4991 = vst [vmem:[%s4969 + $0x28] sm:$0xf] %v4990
                %v4992 = vld [vmem:[%s4968 + $0x2c] sm:$0xf]
                %4993 = vst [vmem:[%s4969 + $0x2c] sm:$0xf] %v4992
                %v4994 = vld [vmem:[%s4968 + $0x30] sm:$0xf]
                %4995 = vst [vmem:[%s4969 + $0x30] sm:$0xf] %v4994
                %v4996 = vld [vmem:[%s4968 + $0x34] sm:$0xf]
                %4997 = vst [vmem:[%s4969 + $0x34] sm:$0xf] %v4996
                %v4998 = vld [vmem:[%s4968 + $0x38] sm:$0xf]
                %4999 = vst [vmem:[%s4969 + $0x38] sm:$0xf] %v4998
                %v5000 = vld [vmem:[%s4968 + $0x3c] sm:$0xf]
                %5001 = vst [vmem:[%s4969 + $0x3c] sm:$0xf] %v5000
                %v5002 = vld [vmem:[%s4968 + $0x40] sm:$0xf]
                %5003 = vst [vmem:[%s4969 + $0x80] sm:$0xf] %v5002
                %v5004 = vld [vmem:[%s4968 + $0x44] sm:$0xf]
                %5005 = vst [vmem:[%s4969 + $0x84] sm:$0xf] %v5004
                %v5006 = vld [vmem:[%s4968 + $0x48] sm:$0xf]
                %5007 = vst [vmem:[%s4969 + $0x88] sm:$0xf] %v5006
                %v5008 = vld [vmem:[%s4968 + $0x4c] sm:$0xf]
                %5009 = vst [vmem:[%s4969 + $0x8c] sm:$0xf] %v5008
                %v5010 = vld [vmem:[%s4968 + $0x50] sm:$0xf]
                %5011 = vst [vmem:[%s4969 + $0x90] sm:$0xf] %v5010
                %v5012 = vld [vmem:[%s4968 + $0x54] sm:$0xf]
                %5013 = vst [vmem:[%s4969 + $0x94] sm:$0xf] %v5012
                %v5014 = vld [vmem:[%s4968 + $0x58] sm:$0xf]
                %5015 = vst [vmem:[%s4969 + $0x98] sm:$0xf] %v5014
                %v5016 = vld [vmem:[%s4968 + $0x5c] sm:$0xf]
                %5017 = vst [vmem:[%s4969 + $0x9c] sm:$0xf] %v5016
                %v5018 = vld [vmem:[%s4968 + $0x60] sm:$0xf]
                %5019 = vst [vmem:[%s4969 + $0xa0] sm:$0xf] %v5018
                %v5020 = vld [vmem:[%s4968 + $0x64] sm:$0xf]
                %5021 = vst [vmem:[%s4969 + $0xa4] sm:$0xf] %v5020
                %v5022 = vld [vmem:[%s4968 + $0x68] sm:$0xf]
                %5023 = vst [vmem:[%s4969 + $0xa8] sm:$0xf] %v5022
                %v5024 = vld [vmem:[%s4968 + $0x6c] sm:$0xf]
                %5025 = vst [vmem:[%s4969 + $0xac] sm:$0xf] %v5024
                %v5026 = vld [vmem:[%s4968 + $0x70] sm:$0xf]
                %5027 = vst [vmem:[%s4969 + $0xb0] sm:$0xf] %v5026
                %v5028 = vld [vmem:[%s4968 + $0x74] sm:$0xf]
                %5029 = vst [vmem:[%s4969 + $0xb4] sm:$0xf] %v5028
                %v5030 = vld [vmem:[%s4968 + $0x78] sm:$0xf]
                %5031 = vst [vmem:[%s4969 + $0xb8] sm:$0xf] %v5030
                %v5032 = vld [vmem:[%s4968 + $0x7c] sm:$0xf]
                %5033 = vst [vmem:[%s4969 + $0xbc] sm:$0xf] %v5032
                %v5034 = vld [vmem:[%s4968 + $0x80] sm:$0xf]
                %5035 = vst [vmem:[%s4969 + $0x100] sm:$0xf] %v5034
                %v5036 = vld [vmem:[%s4968 + $0x84] sm:$0xf]
                %5037 = vst [vmem:[%s4969 + $0x104] sm:$0xf] %v5036
                %v5038 = vld [vmem:[%s4968 + $0x88] sm:$0xf]
                %5039 = vst [vmem:[%s4969 + $0x108] sm:$0xf] %v5038
                %v5040 = vld [vmem:[%s4968 + $0x8c] sm:$0xf]
                %5041 = vst [vmem:[%s4969 + $0x10c] sm:$0xf] %v5040
                %v5042 = vld [vmem:[%s4968 + $0x90] sm:$0xf]
                %5043 = vst [vmem:[%s4969 + $0x110] sm:$0xf] %v5042
                %v5044 = vld [vmem:[%s4968 + $0x94] sm:$0xf]
                %5045 = vst [vmem:[%s4969 + $0x114] sm:$0xf] %v5044
                %v5046 = vld [vmem:[%s4968 + $0x98] sm:$0xf]
                %5047 = vst [vmem:[%s4969 + $0x118] sm:$0xf] %v5046
                %v5048 = vld [vmem:[%s4968 + $0x9c] sm:$0xf]
                %5049 = vst [vmem:[%s4969 + $0x11c] sm:$0xf] %v5048
                %v5050 = vld [vmem:[%s4968 + $0xa0] sm:$0xf]
                %5051 = vst [vmem:[%s4969 + $0x120] sm:$0xf] %v5050
                %v5052 = vld [vmem:[%s4968 + $0xa4] sm:$0xf]
                %5053 = vst [vmem:[%s4969 + $0x124] sm:$0xf] %v5052
                %v5054 = vld [vmem:[%s4968 + $0xa8] sm:$0xf]
                %5055 = vst [vmem:[%s4969 + $0x128] sm:$0xf] %v5054
                %v5056 = vld [vmem:[%s4968 + $0xac] sm:$0xf]
                %5057 = vst [vmem:[%s4969 + $0x12c] sm:$0xf] %v5056
                %v5058 = vld [vmem:[%s4968 + $0xb0] sm:$0xf]
                %5059 = vst [vmem:[%s4969 + $0x130] sm:$0xf] %v5058
                %v5060 = vld [vmem:[%s4968 + $0xb4] sm:$0xf]
                %5061 = vst [vmem:[%s4969 + $0x134] sm:$0xf] %v5060
                %v5062 = vld [vmem:[%s4968 + $0xb8] sm:$0xf]
                %5063 = vst [vmem:[%s4969 + $0x138] sm:$0xf] %v5062
                %v5064 = vld [vmem:[%s4968 + $0xbc] sm:$0xf]
                %5065 = vst [vmem:[%s4969 + $0x13c] sm:$0xf] %v5064
                %v5066 = vld [vmem:[%s4968 + $0xc0] sm:$0xf]
                %5067 = vst [vmem:[%s4969 + $0x180] sm:$0xf] %v5066
                %v5068 = vld [vmem:[%s4968 + $0xc4] sm:$0xf]
                %5069 = vst [vmem:[%s4969 + $0x184] sm:$0xf] %v5068
                %v5070 = vld [vmem:[%s4968 + $0xc8] sm:$0xf]
                %5071 = vst [vmem:[%s4969 + $0x188] sm:$0xf] %v5070
                %v5072 = vld [vmem:[%s4968 + $0xcc] sm:$0xf]
                %5073 = vst [vmem:[%s4969 + $0x18c] sm:$0xf] %v5072
                %v5074 = vld [vmem:[%s4968 + $0xd0] sm:$0xf]
                %5075 = vst [vmem:[%s4969 + $0x190] sm:$0xf] %v5074
                %v5076 = vld [vmem:[%s4968 + $0xd4] sm:$0xf]
                %5077 = vst [vmem:[%s4969 + $0x194] sm:$0xf] %v5076
                %v5078 = vld [vmem:[%s4968 + $0xd8] sm:$0xf]
                %5079 = vst [vmem:[%s4969 + $0x198] sm:$0xf] %v5078
                %v5080 = vld [vmem:[%s4968 + $0xdc] sm:$0xf]
                %5081 = vst [vmem:[%s4969 + $0x19c] sm:$0xf] %v5080
                %v5082 = vld [vmem:[%s4968 + $0xe0] sm:$0xf]
                %5083 = vst [vmem:[%s4969 + $0x1a0] sm:$0xf] %v5082
                %v5084 = vld [vmem:[%s4968 + $0xe4] sm:$0xf]
                %5085 = vst [vmem:[%s4969 + $0x1a4] sm:$0xf] %v5084
                %v5086 = vld [vmem:[%s4968 + $0xe8] sm:$0xf]
                %5087 = vst [vmem:[%s4969 + $0x1a8] sm:$0xf] %v5086
                %v5088 = vld [vmem:[%s4968 + $0xec] sm:$0xf]
                %5089 = vst [vmem:[%s4969 + $0x1ac] sm:$0xf] %v5088
                %v5090 = vld [vmem:[%s4968 + $0xf0] sm:$0xf]
                %5091 = vst [vmem:[%s4969 + $0x1b0] sm:$0xf] %v5090
                %v5092 = vld [vmem:[%s4968 + $0xf4] sm:$0xf]
                %5093 = vst [vmem:[%s4969 + $0x1b4] sm:$0xf] %v5092
                %v5094 = vld [vmem:[%s4968 + $0xf8] sm:$0xf]
                %5095 = vst [vmem:[%s4969 + $0x1b8] sm:$0xf] %v5094
                %v5096 = vld [vmem:[%s4968 + $0xfc] sm:$0xf]
                %5097 = vst [vmem:[%s4969 + $0x1bc] sm:$0xf] %v5096
              $region89: #{tpu_custom_call.1} parent=83 // loop_footer
                %s4967 = sadd.s32 1, %s4963
              $region90: #{tpu_custom_call.1} parent=83 // loop_footer_branch
                %4962 = sbr.rel target = $region86
              $region91: #{tpu_custom_call.1} parent=83 // loop_exit
                _
            $region84: #{tpu_custom_call.1} parent=75 // pred_fallthru
              _
          $region76: #{tpu_custom_call.1} parent=71 // pred_fallthru
            _
          %5245 = vnop
        $region72: #{tpu_custom_call.1} parent=55 // pred_fallthru
          _
        // Predicated region
        $region110: #{tpu_custom_call.1} parent=55 // pred_check
          %p5246 = pneg %p283
        $region111: #{tpu_custom_call.1} parent=55 // pred_check_branch
          %5248 = sbr.rel (%p5246) target = $region113
        $region112: #{tpu_custom_call.1} parent=55 // pred_region
          %s5249 = smul.u32 16, %s32
          %s5250 = smul.addr %s31, 64
          %s5251 = sadd.s32 %s5249, %s5250
          %s5252 = smul.addr %s5251, 4
          %s5253 = scalar_lea.vmem %s10, %s5252
          // Predicated region
          $region114: #{tpu_custom_call.1} parent=112 // pred_check
            _
          $region115: #{tpu_custom_call.1} parent=112 // pred_check_branch
            %5255 = sbr.rel (0) target = $region117
          $region116: #{tpu_custom_call.1} parent=112 // pred_region
            // Predicated region
            $region118: #{tpu_custom_call.1} parent=116 // pred_check
              _
            $region119: #{tpu_custom_call.1} parent=116 // pred_check_branch
              %5257 = sbr.rel target = $region121
            $region120: #{tpu_custom_call.1} parent=116 // pred_region
              // Predicated region
              $region133: #{tpu_custom_call.1} parent=120 // pred_check
                _
              $region134: #{tpu_custom_call.1} parent=120 // pred_check_branch
                %5334 = sbr.rel (0) target = $region136
              $region135: #{tpu_custom_call.1} parent=120 // pred_region
                loop: start=0, step=1, limit=1
                $region137: #{tpu_custom_call.1} parent=135 // loop_pre_header
                  _
                $region138: #{tpu_custom_call.1} parent=135 // loop_header
                  %s5336 = sphi 0, %s5340
                  %p5337 = scmp.ge.s32.totalorder %s5336, 1
                  %s5341 = sphi %s4942, %s4942
                  %s5342 = sphi %s5253, %s5253
                $region139: #{tpu_custom_call.1} parent=135 // loop_header_branch
                  %5339 = sbr.rel (%p5337) target = $region143
                $region140: #{tpu_custom_call.1} parent=135 // loop_body
                  _
                $region141: #{tpu_custom_call.1} parent=135 // loop_footer
                  %s5340 = sadd.s32 1, %s5336
                $region142: #{tpu_custom_call.1} parent=135 // loop_footer_branch
                  %5335 = sbr.rel target = $region138
                $region143: #{tpu_custom_call.1} parent=135 // loop_exit
                  _
                loop: start=0, step=1, limit=1
                $region144: #{tpu_custom_call.1} parent=135 // loop_pre_header
                  _
                $region145: #{tpu_custom_call.1} parent=135 // loop_header
                  %s5345 = sphi 0, %s5349
                  %p5346 = scmp.ge.s32.totalorder %s5345, 1
                  %s5350 = sphi %s4942, %s4942
                  %s5351 = sphi %s5253, %s5253
                $region146: #{tpu_custom_call.1} parent=135 // loop_header_branch
                  %5348 = sbr.rel (%p5346) target = $region150
                $region147: #{tpu_custom_call.1} parent=135 // loop_body
                  %v5352 = vld [vmem:[%s5350] sm:$0xf]
                  %5353 = vst [vmem:[%s5351] sm:$0xf] %v5352
                  %v5354 = vld [vmem:[%s5350 + $0x4] sm:$0xf]
                  %5355 = vst [vmem:[%s5351 + $0x4] sm:$0xf] %v5354
                  %v5356 = vld [vmem:[%s5350 + $0x8] sm:$0xf]
                  %5357 = vst [vmem:[%s5351 + $0x8] sm:$0xf] %v5356
                  %v5358 = vld [vmem:[%s5350 + $0xc] sm:$0xf]
                  %5359 = vst [vmem:[%s5351 + $0xc] sm:$0xf] %v5358
                  %v5360 = vld [vmem:[%s5350 + $0x10] sm:$0xf]
                  %5361 = vst [vmem:[%s5351 + $0x10] sm:$0xf] %v5360
                  %v5362 = vld [vmem:[%s5350 + $0x14] sm:$0xf]
                  %5363 = vst [vmem:[%s5351 + $0x14] sm:$0xf] %v5362
                  %v5364 = vld [vmem:[%s5350 + $0x18] sm:$0xf]
                  %5365 = vst [vmem:[%s5351 + $0x18] sm:$0xf] %v5364
                  %v5366 = vld [vmem:[%s5350 + $0x1c] sm:$0xf]
                  %5367 = vst [vmem:[%s5351 + $0x1c] sm:$0xf] %v5366
                  %v5368 = vld [vmem:[%s5350 + $0x20] sm:$0xf]
                  %5369 = vst [vmem:[%s5351 + $0x20] sm:$0xf] %v5368
                  %v5370 = vld [vmem:[%s5350 + $0x24] sm:$0xf]
                  %5371 = vst [vmem:[%s5351 + $0x24] sm:$0xf] %v5370
                  %v5372 = vld [vmem:[%s5350 + $0x28] sm:$0xf]
                  %5373 = vst [vmem:[%s5351 + $0x28] sm:$0xf] %v5372
                  %v5374 = vld [vmem:[%s5350 + $0x2c] sm:$0xf]
                  %5375 = vst [vmem:[%s5351 + $0x2c] sm:$0xf] %v5374
                  %v5376 = vld [vmem:[%s5350 + $0x30] sm:$0xf]
                  %5377 = vst [vmem:[%s5351 + $0x30] sm:$0xf] %v5376
                  %v5378 = vld [vmem:[%s5350 + $0x34] sm:$0xf]
                  %5379 = vst [vmem:[%s5351 + $0x34] sm:$0xf] %v5378
                  %v5380 = vld [vmem:[%s5350 + $0x38] sm:$0xf]
                  %5381 = vst [vmem:[%s5351 + $0x38] sm:$0xf] %v5380
                  %v5382 = vld [vmem:[%s5350 + $0x3c] sm:$0xf]
                  %5383 = vst [vmem:[%s5351 + $0x3c] sm:$0xf] %v5382
                  %v5384 = vld [vmem:[%s5350 + $0x40] sm:$0xf]
                  %5385 = vst [vmem:[%s5351 + $0x80] sm:$0xf] %v5384
                  %v5386 = vld [vmem:[%s5350 + $0x44] sm:$0xf]
                  %5387 = vst [vmem:[%s5351 + $0x84] sm:$0xf] %v5386
                  %v5388 = vld [vmem:[%s5350 + $0x48] sm:$0xf]
                  %5389 = vst [vmem:[%s5351 + $0x88] sm:$0xf] %v5388
                  %v5390 = vld [vmem:[%s5350 + $0x4c] sm:$0xf]
                  %5391 = vst [vmem:[%s5351 + $0x8c] sm:$0xf] %v5390
                  %v5392 = vld [vmem:[%s5350 + $0x50] sm:$0xf]
                  %5393 = vst [vmem:[%s5351 + $0x90] sm:$0xf] %v5392
                  %v5394 = vld [vmem:[%s5350 + $0x54] sm:$0xf]
                  %5395 = vst [vmem:[%s5351 + $0x94] sm:$0xf] %v5394
                  %v5396 = vld [vmem:[%s5350 + $0x58] sm:$0xf]
                  %5397 = vst [vmem:[%s5351 + $0x98] sm:$0xf] %v5396
                  %v5398 = vld [vmem:[%s5350 + $0x5c] sm:$0xf]
                  %5399 = vst [vmem:[%s5351 + $0x9c] sm:$0xf] %v5398
                  %v5400 = vld [vmem:[%s5350 + $0x60] sm:$0xf]
                  %5401 = vst [vmem:[%s5351 + $0xa0] sm:$0xf] %v5400
                  %v5402 = vld [vmem:[%s5350 + $0x64] sm:$0xf]
                  %5403 = vst [vmem:[%s5351 + $0xa4] sm:$0xf] %v5402
                  %v5404 = vld [vmem:[%s5350 + $0x68] sm:$0xf]
                  %5405 = vst [vmem:[%s5351 + $0xa8] sm:$0xf] %v5404
                  %v5406 = vld [vmem:[%s5350 + $0x6c] sm:$0xf]
                  %5407 = vst [vmem:[%s5351 + $0xac] sm:$0xf] %v5406
                  %v5408 = vld [vmem:[%s5350 + $0x70] sm:$0xf]
                  %5409 = vst [vmem:[%s5351 + $0xb0] sm:$0xf] %v5408
                  %v5410 = vld [vmem:[%s5350 + $0x74] sm:$0xf]
                  %5411 = vst [vmem:[%s5351 + $0xb4] sm:$0xf] %v5410
                  %v5412 = vld [vmem:[%s5350 + $0x78] sm:$0xf]
                  %5413 = vst [vmem:[%s5351 + $0xb8] sm:$0xf] %v5412
                  %v5414 = vld [vmem:[%s5350 + $0x7c] sm:$0xf]
                  %5415 = vst [vmem:[%s5351 + $0xbc] sm:$0xf] %v5414
                $region148: #{tpu_custom_call.1} parent=135 // loop_footer
                  %s5349 = sadd.s32 1, %s5345
                $region149: #{tpu_custom_call.1} parent=135 // loop_footer_branch
                  %5344 = sbr.rel target = $region145
                $region150: #{tpu_custom_call.1} parent=135 // loop_exit
                  _
              $region136: #{tpu_custom_call.1} parent=120 // pred_fallthru
                _
            $region121: #{tpu_custom_call.1} parent=116 // pred_fallthru
              _
            // Predicated region
            $region122: #{tpu_custom_call.1} parent=116 // pred_check
              _
            $region123: #{tpu_custom_call.1} parent=116 // pred_check_branch
              %5259 = sbr.rel (0) target = $region125
            $region124: #{tpu_custom_call.1} parent=116 // pred_region
              loop: start=0, step=1, limit=1
              $region126: #{tpu_custom_call.1} parent=124 // loop_pre_header
                _
              $region127: #{tpu_custom_call.1} parent=124 // loop_header
                %s5262 = sphi 0, %s5266
                %p5263 = scmp.ge.s32.totalorder %s5262, 1
                %s5267 = sphi %s4942, %s4942
                %s5268 = sphi %s5253, %s5253
              $region128: #{tpu_custom_call.1} parent=124 // loop_header_branch
                %5265 = sbr.rel (%p5263) target = $region132
              $region129: #{tpu_custom_call.1} parent=124 // loop_body
                %v5269 = vld [vmem:[%s5267] sm:$0xf]
                %5270 = vst [vmem:[%s5268] sm:$0xf] %v5269
                %v5271 = vld [vmem:[%s5267 + $0x4] sm:$0xf]
                %5272 = vst [vmem:[%s5268 + $0x4] sm:$0xf] %v5271
                %v5273 = vld [vmem:[%s5267 + $0x8] sm:$0xf]
                %5274 = vst [vmem:[%s5268 + $0x8] sm:$0xf] %v5273
                %v5275 = vld [vmem:[%s5267 + $0xc] sm:$0xf]
                %5276 = vst [vmem:[%s5268 + $0xc] sm:$0xf] %v5275
                %v5277 = vld [vmem:[%s5267 + $0x10] sm:$0xf]
                %5278 = vst [vmem:[%s5268 + $0x10] sm:$0xf] %v5277
                %v5279 = vld [vmem:[%s5267 + $0x14] sm:$0xf]
                %5280 = vst [vmem:[%s5268 + $0x14] sm:$0xf] %v5279
                %v5281 = vld [vmem:[%s5267 + $0x18] sm:$0xf]
                %5282 = vst [vmem:[%s5268 + $0x18] sm:$0xf] %v5281
                %v5283 = vld [vmem:[%s5267 + $0x1c] sm:$0xf]
                %5284 = vst [vmem:[%s5268 + $0x1c] sm:$0xf] %v5283
                %v5285 = vld [vmem:[%s5267 + $0x20] sm:$0xf]
                %5286 = vst [vmem:[%s5268 + $0x20] sm:$0xf] %v5285
                %v5287 = vld [vmem:[%s5267 + $0x24] sm:$0xf]
                %5288 = vst [vmem:[%s5268 + $0x24] sm:$0xf] %v5287
                %v5289 = vld [vmem:[%s5267 + $0x28] sm:$0xf]
                %5290 = vst [vmem:[%s5268 + $0x28] sm:$0xf] %v5289
                %v5291 = vld [vmem:[%s5267 + $0x2c] sm:$0xf]
                %5292 = vst [vmem:[%s5268 + $0x2c] sm:$0xf] %v5291
                %v5293 = vld [vmem:[%s5267 + $0x30] sm:$0xf]
                %5294 = vst [vmem:[%s5268 + $0x30] sm:$0xf] %v5293
                %v5295 = vld [vmem:[%s5267 + $0x34] sm:$0xf]
                %5296 = vst [vmem:[%s5268 + $0x34] sm:$0xf] %v5295
                %v5297 = vld [vmem:[%s5267 + $0x38] sm:$0xf]
                %5298 = vst [vmem:[%s5268 + $0x38] sm:$0xf] %v5297
                %v5299 = vld [vmem:[%s5267 + $0x3c] sm:$0xf]
                %5300 = vst [vmem:[%s5268 + $0x3c] sm:$0xf] %v5299
                %v5301 = vld [vmem:[%s5267 + $0x40] sm:$0xf]
                %5302 = vst [vmem:[%s5268 + $0x80] sm:$0xf] %v5301
                %v5303 = vld [vmem:[%s5267 + $0x44] sm:$0xf]
                %5304 = vst [vmem:[%s5268 + $0x84] sm:$0xf] %v5303
                %v5305 = vld [vmem:[%s5267 + $0x48] sm:$0xf]
                %5306 = vst [vmem:[%s5268 + $0x88] sm:$0xf] %v5305
                %v5307 = vld [vmem:[%s5267 + $0x4c] sm:$0xf]
                %5308 = vst [vmem:[%s5268 + $0x8c] sm:$0xf] %v5307
                %v5309 = vld [vmem:[%s5267 + $0x50] sm:$0xf]
                %5310 = vst [vmem:[%s5268 + $0x90] sm:$0xf] %v5309
                %v5311 = vld [vmem:[%s5267 + $0x54] sm:$0xf]
                %5312 = vst [vmem:[%s5268 + $0x94] sm:$0xf] %v5311
                %v5313 = vld [vmem:[%s5267 + $0x58] sm:$0xf]
                %5314 = vst [vmem:[%s5268 + $0x98] sm:$0xf] %v5313
                %v5315 = vld [vmem:[%s5267 + $0x5c] sm:$0xf]
                %5316 = vst [vmem:[%s5268 + $0x9c] sm:$0xf] %v5315
                %v5317 = vld [vmem:[%s5267 + $0x60] sm:$0xf]
                %5318 = vst [vmem:[%s5268 + $0xa0] sm:$0xf] %v5317
                %v5319 = vld [vmem:[%s5267 + $0x64] sm:$0xf]
                %5320 = vst [vmem:[%s5268 + $0xa4] sm:$0xf] %v5319
                %v5321 = vld [vmem:[%s5267 + $0x68] sm:$0xf]
                %5322 = vst [vmem:[%s5268 + $0xa8] sm:$0xf] %v5321
                %v5323 = vld [vmem:[%s5267 + $0x6c] sm:$0xf]
                %5324 = vst [vmem:[%s5268 + $0xac] sm:$0xf] %v5323
                %v5325 = vld [vmem:[%s5267 + $0x70] sm:$0xf]
                %5326 = vst [vmem:[%s5268 + $0xb0] sm:$0xf] %v5325
                %v5327 = vld [vmem:[%s5267 + $0x74] sm:$0xf]
                %5328 = vst [vmem:[%s5268 + $0xb4] sm:$0xf] %v5327
                %v5329 = vld [vmem:[%s5267 + $0x78] sm:$0xf]
                %5330 = vst [vmem:[%s5268 + $0xb8] sm:$0xf] %v5329
                %v5331 = vld [vmem:[%s5267 + $0x7c] sm:$0xf]
                %5332 = vst [vmem:[%s5268 + $0xbc] sm:$0xf] %v5331
              $region130: #{tpu_custom_call.1} parent=124 // loop_footer
                %s5266 = sadd.s32 1, %s5262
              $region131: #{tpu_custom_call.1} parent=124 // loop_footer_branch
                %5261 = sbr.rel target = $region127
              $region132: #{tpu_custom_call.1} parent=124 // loop_exit
                _
            $region125: #{tpu_custom_call.1} parent=116 // pred_fallthru
              _
          $region117: #{tpu_custom_call.1} parent=112 // pred_fallthru
            _
          %5416 = vnop
        $region113: #{tpu_custom_call.1} parent=55 // pred_fallthru
          _
        // Predicated region
        $region151: #{tpu_custom_call.1} parent=55 // pred_check
          %p5417 = pneg %p311
        $region152: #{tpu_custom_call.1} parent=55 // pred_check_branch
          %5419 = sbr.rel (%p5417) target = $region154
        $region153: #{tpu_custom_call.1} parent=55 // pred_region
          %s5420 = smul.u32 16, %s32
          %s5421 = smul.addr %s31, 64
          %s5422 = sadd.s32 %s5420, %s5421
          %s5423 = smul.addr %s5422, 4
          %s5424 = scalar_lea.vmem %s11, %s5423
          // Predicated region
          $region155: #{tpu_custom_call.1} parent=153 // pred_check
            _
          $region156: #{tpu_custom_call.1} parent=153 // pred_check_branch
            %5426 = sbr.rel (0) target = $region158
          $region157: #{tpu_custom_call.1} parent=153 // pred_region
            // Predicated region
            $region159: #{tpu_custom_call.1} parent=157 // pred_check
              _
            $region160: #{tpu_custom_call.1} parent=157 // pred_check_branch
              %5428 = sbr.rel target = $region162
            $region161: #{tpu_custom_call.1} parent=157 // pred_region
              // Predicated region
              $region174: #{tpu_custom_call.1} parent=161 // pred_check
                _
              $region175: #{tpu_custom_call.1} parent=161 // pred_check_branch
                %5505 = sbr.rel (0) target = $region177
              $region176: #{tpu_custom_call.1} parent=161 // pred_region
                loop: start=0, step=1, limit=1
                $region178: #{tpu_custom_call.1} parent=176 // loop_pre_header
                  _
                $region179: #{tpu_custom_call.1} parent=176 // loop_header
                  %s5507 = sphi 0, %s5511
                  %p5508 = scmp.ge.s32.totalorder %s5507, 1
                  %s5512 = sphi %s4946, %s4946
                  %s5513 = sphi %s5424, %s5424
                $region180: #{tpu_custom_call.1} parent=176 // loop_header_branch
                  %5510 = sbr.rel (%p5508) target = $region184
                $region181: #{tpu_custom_call.1} parent=176 // loop_body
                  _
                $region182: #{tpu_custom_call.1} parent=176 // loop_footer
                  %s5511 = sadd.s32 1, %s5507
                $region183: #{tpu_custom_call.1} parent=176 // loop_footer_branch
                  %5506 = sbr.rel target = $region179
                $region184: #{tpu_custom_call.1} parent=176 // loop_exit
                  _
                loop: start=0, step=1, limit=1
                $region185: #{tpu_custom_call.1} parent=176 // loop_pre_header
                  _
                $region186: #{tpu_custom_call.1} parent=176 // loop_header
                  %s5516 = sphi 0, %s5520
                  %p5517 = scmp.ge.s32.totalorder %s5516, 1
                  %s5521 = sphi %s4946, %s4946
                  %s5522 = sphi %s5424, %s5424
                $region187: #{tpu_custom_call.1} parent=176 // loop_header_branch
                  %5519 = sbr.rel (%p5517) target = $region191
                $region188: #{tpu_custom_call.1} parent=176 // loop_body
                  %v5523 = vld [vmem:[%s5521] sm:$0xf]
                  %5524 = vst [vmem:[%s5522] sm:$0xf] %v5523
                  %v5525 = vld [vmem:[%s5521 + $0x4] sm:$0xf]
                  %5526 = vst [vmem:[%s5522 + $0x4] sm:$0xf] %v5525
                  %v5527 = vld [vmem:[%s5521 + $0x8] sm:$0xf]
                  %5528 = vst [vmem:[%s5522 + $0x8] sm:$0xf] %v5527
                  %v5529 = vld [vmem:[%s5521 + $0xc] sm:$0xf]
                  %5530 = vst [vmem:[%s5522 + $0xc] sm:$0xf] %v5529
                  %v5531 = vld [vmem:[%s5521 + $0x10] sm:$0xf]
                  %5532 = vst [vmem:[%s5522 + $0x10] sm:$0xf] %v5531
                  %v5533 = vld [vmem:[%s5521 + $0x14] sm:$0xf]
                  %5534 = vst [vmem:[%s5522 + $0x14] sm:$0xf] %v5533
                  %v5535 = vld [vmem:[%s5521 + $0x18] sm:$0xf]
                  %5536 = vst [vmem:[%s5522 + $0x18] sm:$0xf] %v5535
                  %v5537 = vld [vmem:[%s5521 + $0x1c] sm:$0xf]
                  %5538 = vst [vmem:[%s5522 + $0x1c] sm:$0xf] %v5537
                  %v5539 = vld [vmem:[%s5521 + $0x20] sm:$0xf]
                  %5540 = vst [vmem:[%s5522 + $0x20] sm:$0xf] %v5539
                  %v5541 = vld [vmem:[%s5521 + $0x24] sm:$0xf]
                  %5542 = vst [vmem:[%s5522 + $0x24] sm:$0xf] %v5541
                  %v5543 = vld [vmem:[%s5521 + $0x28] sm:$0xf]
                  %5544 = vst [vmem:[%s5522 + $0x28] sm:$0xf] %v5543
                  %v5545 = vld [vmem:[%s5521 + $0x2c] sm:$0xf]
                  %5546 = vst [vmem:[%s5522 + $0x2c] sm:$0xf] %v5545
                  %v5547 = vld [vmem:[%s5521 + $0x30] sm:$0xf]
                  %5548 = vst [vmem:[%s5522 + $0x30] sm:$0xf] %v5547
                  %v5549 = vld [vmem:[%s5521 + $0x34] sm:$0xf]
                  %5550 = vst [vmem:[%s5522 + $0x34] sm:$0xf] %v5549
                  %v5551 = vld [vmem:[%s5521 + $0x38] sm:$0xf]
                  %5552 = vst [vmem:[%s5522 + $0x38] sm:$0xf] %v5551
                  %v5553 = vld [vmem:[%s5521 + $0x3c] sm:$0xf]
                  %5554 = vst [vmem:[%s5522 + $0x3c] sm:$0xf] %v5553
                  %v5555 = vld [vmem:[%s5521 + $0x40] sm:$0xf]
                  %5556 = vst [vmem:[%s5522 + $0x80] sm:$0xf] %v5555
                  %v5557 = vld [vmem:[%s5521 + $0x44] sm:$0xf]
                  %5558 = vst [vmem:[%s5522 + $0x84] sm:$0xf] %v5557
                  %v5559 = vld [vmem:[%s5521 + $0x48] sm:$0xf]
                  %5560 = vst [vmem:[%s5522 + $0x88] sm:$0xf] %v5559
                  %v5561 = vld [vmem:[%s5521 + $0x4c] sm:$0xf]
                  %5562 = vst [vmem:[%s5522 + $0x8c] sm:$0xf] %v5561
                  %v5563 = vld [vmem:[%s5521 + $0x50] sm:$0xf]
                  %5564 = vst [vmem:[%s5522 + $0x90] sm:$0xf] %v5563
                  %v5565 = vld [vmem:[%s5521 + $0x54] sm:$0xf]
                  %5566 = vst [vmem:[%s5522 + $0x94] sm:$0xf] %v5565
                  %v5567 = vld [vmem:[%s5521 + $0x58] sm:$0xf]
                  %5568 = vst [vmem:[%s5522 + $0x98] sm:$0xf] %v5567
                  %v5569 = vld [vmem:[%s5521 + $0x5c] sm:$0xf]
                  %5570 = vst [vmem:[%s5522 + $0x9c] sm:$0xf] %v5569
                  %v5571 = vld [vmem:[%s5521 + $0x60] sm:$0xf]
                  %5572 = vst [vmem:[%s5522 + $0xa0] sm:$0xf] %v5571
                  %v5573 = vld [vmem:[%s5521 + $0x64] sm:$0xf]
                  %5574 = vst [vmem:[%s5522 + $0xa4] sm:$0xf] %v5573
                  %v5575 = vld [vmem:[%s5521 + $0x68] sm:$0xf]
                  %5576 = vst [vmem:[%s5522 + $0xa8] sm:$0xf] %v5575
                  %v5577 = vld [vmem:[%s5521 + $0x6c] sm:$0xf]
                  %5578 = vst [vmem:[%s5522 + $0xac] sm:$0xf] %v5577
                  %v5579 = vld [vmem:[%s5521 + $0x70] sm:$0xf]
                  %5580 = vst [vmem:[%s5522 + $0xb0] sm:$0xf] %v5579
                  %v5581 = vld [vmem:[%s5521 + $0x74] sm:$0xf]
                  %5582 = vst [vmem:[%s5522 + $0xb4] sm:$0xf] %v5581
                  %v5583 = vld [vmem:[%s5521 + $0x78] sm:$0xf]
                  %5584 = vst [vmem:[%s5522 + $0xb8] sm:$0xf] %v5583
                  %v5585 = vld [vmem:[%s5521 + $0x7c] sm:$0xf]
                  %5586 = vst [vmem:[%s5522 + $0xbc] sm:$0xf] %v5585
                $region189: #{tpu_custom_call.1} parent=176 // loop_footer
                  %s5520 = sadd.s32 1, %s5516
                $region190: #{tpu_custom_call.1} parent=176 // loop_footer_branch
                  %5515 = sbr.rel target = $region186
                $region191: #{tpu_custom_call.1} parent=176 // loop_exit
                  _
              $region177: #{tpu_custom_call.1} parent=161 // pred_fallthru
                _
            $region162: #{tpu_custom_call.1} parent=157 // pred_fallthru
              _
            // Predicated region
            $region163: #{tpu_custom_call.1} parent=157 // pred_check
              _
            $region164: #{tpu_custom_call.1} parent=157 // pred_check_branch
              %5430 = sbr.rel (0) target = $region166
            $region165: #{tpu_custom_call.1} parent=157 // pred_region
              loop: start=0, step=1, limit=1
              $region167: #{tpu_custom_call.1} parent=165 // loop_pre_header
                _
              $region168: #{tpu_custom_call.1} parent=165 // loop_header
                %s5433 = sphi 0, %s5437
                %p5434 = scmp.ge.s32.totalorder %s5433, 1
                %s5438 = sphi %s4946, %s4946
                %s5439 = sphi %s5424, %s5424
              $region169: #{tpu_custom_call.1} parent=165 // loop_header_branch
                %5436 = sbr.rel (%p5434) target = $region173
              $region170: #{tpu_custom_call.1} parent=165 // loop_body
                %v5440 = vld [vmem:[%s5438] sm:$0xf]
                %5441 = vst [vmem:[%s5439] sm:$0xf] %v5440
                %v5442 = vld [vmem:[%s5438 + $0x4] sm:$0xf]
                %5443 = vst [vmem:[%s5439 + $0x4] sm:$0xf] %v5442
                %v5444 = vld [vmem:[%s5438 + $0x8] sm:$0xf]
                %5445 = vst [vmem:[%s5439 + $0x8] sm:$0xf] %v5444
                %v5446 = vld [vmem:[%s5438 + $0xc] sm:$0xf]
                %5447 = vst [vmem:[%s5439 + $0xc] sm:$0xf] %v5446
                %v5448 = vld [vmem:[%s5438 + $0x10] sm:$0xf]
                %5449 = vst [vmem:[%s5439 + $0x10] sm:$0xf] %v5448
                %v5450 = vld [vmem:[%s5438 + $0x14] sm:$0xf]
                %5451 = vst [vmem:[%s5439 + $0x14] sm:$0xf] %v5450
                %v5452 = vld [vmem:[%s5438 + $0x18] sm:$0xf]
                %5453 = vst [vmem:[%s5439 + $0x18] sm:$0xf] %v5452
                %v5454 = vld [vmem:[%s5438 + $0x1c] sm:$0xf]
                %5455 = vst [vmem:[%s5439 + $0x1c] sm:$0xf] %v5454
                %v5456 = vld [vmem:[%s5438 + $0x20] sm:$0xf]
                %5457 = vst [vmem:[%s5439 + $0x20] sm:$0xf] %v5456
                %v5458 = vld [vmem:[%s5438 + $0x24] sm:$0xf]
                %5459 = vst [vmem:[%s5439 + $0x24] sm:$0xf] %v5458
                %v5460 = vld [vmem:[%s5438 + $0x28] sm:$0xf]
                %5461 = vst [vmem:[%s5439 + $0x28] sm:$0xf] %v5460
                %v5462 = vld [vmem:[%s5438 + $0x2c] sm:$0xf]
                %5463 = vst [vmem:[%s5439 + $0x2c] sm:$0xf] %v5462
                %v5464 = vld [vmem:[%s5438 + $0x30] sm:$0xf]
                %5465 = vst [vmem:[%s5439 + $0x30] sm:$0xf] %v5464
                %v5466 = vld [vmem:[%s5438 + $0x34] sm:$0xf]
                %5467 = vst [vmem:[%s5439 + $0x34] sm:$0xf] %v5466
                %v5468 = vld [vmem:[%s5438 + $0x38] sm:$0xf]
                %5469 = vst [vmem:[%s5439 + $0x38] sm:$0xf] %v5468
                %v5470 = vld [vmem:[%s5438 + $0x3c] sm:$0xf]
                %5471 = vst [vmem:[%s5439 + $0x3c] sm:$0xf] %v5470
                %v5472 = vld [vmem:[%s5438 + $0x40] sm:$0xf]
                %5473 = vst [vmem:[%s5439 + $0x80] sm:$0xf] %v5472
                %v5474 = vld [vmem:[%s5438 + $0x44] sm:$0xf]
                %5475 = vst [vmem:[%s5439 + $0x84] sm:$0xf] %v5474
                %v5476 = vld [vmem:[%s5438 + $0x48] sm:$0xf]
                %5477 = vst [vmem:[%s5439 + $0x88] sm:$0xf] %v5476
                %v5478 = vld [vmem:[%s5438 + $0x4c] sm:$0xf]
                %5479 = vst [vmem:[%s5439 + $0x8c] sm:$0xf] %v5478
                %v5480 = vld [vmem:[%s5438 + $0x50] sm:$0xf]
                %5481 = vst [vmem:[%s5439 + $0x90] sm:$0xf] %v5480
                %v5482 = vld [vmem:[%s5438 + $0x54] sm:$0xf]
                %5483 = vst [vmem:[%s5439 + $0x94] sm:$0xf] %v5482
                %v5484 = vld [vmem:[%s5438 + $0x58] sm:$0xf]
                %5485 = vst [vmem:[%s5439 + $0x98] sm:$0xf] %v5484
                %v5486 = vld [vmem:[%s5438 + $0x5c] sm:$0xf]
                %5487 = vst [vmem:[%s5439 + $0x9c] sm:$0xf] %v5486
                %v5488 = vld [vmem:[%s5438 + $0x60] sm:$0xf]
                %5489 = vst [vmem:[%s5439 + $0xa0] sm:$0xf] %v5488
                %v5490 = vld [vmem:[%s5438 + $0x64] sm:$0xf]
                %5491 = vst [vmem:[%s5439 + $0xa4] sm:$0xf] %v5490
                %v5492 = vld [vmem:[%s5438 + $0x68] sm:$0xf]
                %5493 = vst [vmem:[%s5439 + $0xa8] sm:$0xf] %v5492
                %v5494 = vld [vmem:[%s5438 + $0x6c] sm:$0xf]
                %5495 = vst [vmem:[%s5439 + $0xac] sm:$0xf] %v5494
                %v5496 = vld [vmem:[%s5438 + $0x70] sm:$0xf]
                %5497 = vst [vmem:[%s5439 + $0xb0] sm:$0xf] %v5496
                %v5498 = vld [vmem:[%s5438 + $0x74] sm:$0xf]
                %5499 = vst [vmem:[%s5439 + $0xb4] sm:$0xf] %v5498
                %v5500 = vld [vmem:[%s5438 + $0x78] sm:$0xf]
                %5501 = vst [vmem:[%s5439 + $0xb8] sm:$0xf] %v5500
                %v5502 = vld [vmem:[%s5438 + $0x7c] sm:$0xf]
                %5503 = vst [vmem:[%s5439 + $0xbc] sm:$0xf] %v5502
              $region171: #{tpu_custom_call.1} parent=165 // loop_footer
                %s5437 = sadd.s32 1, %s5433
              $region172: #{tpu_custom_call.1} parent=165 // loop_footer_branch
                %5432 = sbr.rel target = $region168
              $region173: #{tpu_custom_call.1} parent=165 // loop_exit
                _
            $region166: #{tpu_custom_call.1} parent=157 // pred_fallthru
              _
          $region158: #{tpu_custom_call.1} parent=153 // pred_fallthru
            _
          %5587 = vnop
        $region154: #{tpu_custom_call.1} parent=55 // pred_fallthru
          _
      $region56: #{tpu_custom_call.1} parent=5 // pred_fallthru
        _
      %p5588 = scmp.le.s32.totalorder 2, %s22
      // Predicated region
      $region192: #{tpu_custom_call.1} parent=5 // pred_check
        %p5589 = pneg %p5588
      $region193: #{tpu_custom_call.1} parent=5 // pred_check_branch
        %5591 = sbr.rel (%p5589) target = $region195
      $region194: #{tpu_custom_call.1} parent=5 // pred_region
        %s5592 = ssub.s32 %s22, 2
        // Predicated region
        $region196: #{tpu_custom_call.1} parent=194 // pred_check
          %p5593 = pneg %p261
        $region197: #{tpu_custom_call.1} parent=194 // pred_check_branch
          %5595 = sbr.rel (%p5593) target = $region199
        $region198: #{tpu_custom_call.1} parent=194 // pred_region
          %s5596 = sand.u32 %s246, 1
          %s5597 = sand.u32 %s246, 1
          %s5598 = smul.addr %s5597, 256
          %s5599 = scalar_lea.vmem [#allocation7], %s5598
        $region199: #{tpu_custom_call.1} parent=194 // pred_fallthru
          _
        // Predicated region
        $region200: #{tpu_custom_call.1} parent=194 // pred_check
          %p5600 = pneg %p289
        $region201: #{tpu_custom_call.1} parent=194 // pred_check_branch
          %5602 = sbr.rel (%p5600) target = $region203
        $region202: #{tpu_custom_call.1} parent=194 // pred_region
          %s5603 = sand.u32 %s274, 1
          %s5604 = sand.u32 %s274, 1
          %s5605 = smul.addr %s5604, 128
          %s5606 = scalar_lea.vmem [#allocation8], %s5605
        $region203: #{tpu_custom_call.1} parent=194 // pred_fallthru
          _
        // Predicated region
        $region204: #{tpu_custom_call.1} parent=194 // pred_check
          %p5607 = pneg %p317
        $region205: #{tpu_custom_call.1} parent=194 // pred_check_branch
          %5609 = sbr.rel (%p5607) target = $region207
        $region206: #{tpu_custom_call.1} parent=194 // pred_region
          %s5610 = sand.u32 %s302, 1
          %s5611 = sand.u32 %s302, 1
          %s5612 = smul.addr %s5611, 128
          %s5613 = scalar_lea.vmem [#allocation9], %s5612
        $region207: #{tpu_custom_call.1} parent=194 // pred_fallthru
          _
      $region195: #{tpu_custom_call.1} parent=5 // pred_fallthru
        _
    $region6: #{tpu_custom_call.1} parent=1 // loop_footer
      %s26 = sadd.s32 1, %s22
    $region7: #{tpu_custom_call.1} parent=1 // loop_footer_branch
      %21 = sbr.rel target = $region3
    $region8: #{tpu_custom_call.1} parent=1 // loop_exit
      _
    %5614 = vsyncpa [#allocation3], 1
    %s5615 = scalar_lea.sflag [#allocation3], 1
    %5616 = vsyncpa %s5615, 1
    %5617 = vsyncpa [#allocation5], 1

</llo_original>
